<compile_context>
chip_gen: v7x
topology: tpu7x:2x2x1
jax: 0.10.0
libtpu: 0.0.40
codegen_flags: <defaults>
</compile_context>

<pallas_src>
import math

import numpy as np

import jax
import jax.numpy as jnp
from jax.experimental import pallas as pl
from jax.experimental.pallas import tpu as pltpu

# ----------------------------- configuration -------------------------------
IMG = 16          # img_size
PATCH = 8         # patch_size
IN_CHANS = 4      # in_chans
EMBED = 32        # embed_dim
DEPTH = 2         # depth
HEADS = 4         # num_heads
MLP_RATIO = 4.0
NUM_CLASSES = 10
LN_EPS = 1e-6
NUM_PATCHES = (IMG // PATCH) ** 2
SEQ = NUM_PATCHES + 1          # + cls token (real tokens)
PAD_SEQ = 8                    # padded tokens per sample (aligned sublanes)
HEAD_DIM = EMBED // HEADS
PATCH_DIM = IN_CHANS * PATCH * PATCH

BLOCK_PARAM_NAMES = ['ln1_w', 'ln1_b', 'qkv_w', 'qkv_b', 'proj_w', 'proj_b',
                     'ln2_w', 'ln2_b', 'fc1_w', 'fc1_b', 'fc2_w', 'fc2_b']


# ------------------------------ fused kernel --------------------------------
def _make_kernel(offs):
    """Build the fused ViT kernel; `offs` maps name -> (row_off, rows, cols)
    inside the single packed (rows, 128) weight slab (static Python ints)."""
    inv_sqrt2 = 1.0 / math.sqrt(2.0)
    scale = HEAD_DIM ** (-0.5)
    unbias = HEAD_DIM / (HEAD_DIM - 1.0)       # torch .std() is unbiased
    C = EMBED

    def kernel(p_ref, w_ref, o_ref):
        f32 = jnp.float32

        def get(name):
            r0, r, c = offs[name]
            return w_ref[r0:r0 + r, :c]

        def layernorm(t, w, b):
            mu = jnp.mean(t, axis=-1, keepdims=True)
            var = jnp.mean((t - mu) ** 2, axis=-1, keepdims=True)
            return (t - mu) * jax.lax.rsqrt(var + LN_EPS) * w + b

        m_std = get('m_std')          # (C, C) block-diag 1/head_dim matrix

        def standardize(t):
            # fused per-head mean + unbiased std over head_dim: 2 matmuls.
            mean_b = jnp.dot(t, m_std, preferred_element_type=f32)
            cen = t - mean_b
            var_b = jnp.dot(cen * cen, m_std, preferred_element_type=f32) * unbias
            # TODO(synk): torch .std() has no eps (var==0 -> inf); tiny clamp
            # only guards padded rows / exact-zero-variance degenerate case.
            return cen * jax.lax.rsqrt(jnp.maximum(var_b, 1e-12))

        # ---- patch embed GEMM; cls/pos/conv-bias live in the additive const
        # (pad & cls rows of p_ref are zero, so they get no patch bias). ----
        x = jnp.dot(p_ref[...], get('patch_w'), preferred_element_type=f32)
        x = x + get('add_const')
        mask = get('mask')            # (R, R) additive block-diag / pad mask

        for d in range(DEPTH):
            pfx = f'b{d}_'

            # --- attention branch ---
            xn = layernorm(x, get(pfx + 'ln1_w'), get(pfx + 'ln1_b'))
            qkv = (jnp.dot(xn, get(pfx + 'qkv_w'), preferred_element_type=f32)
                   + get(pfx + 'qkv_b'))
            q = standardize(qkv[:, 0:C]) * scale    # fold softmax scale into q
            k = standardize(qkv[:, C:2 * C])
            v = qkv[:, 2 * C:3 * C]
            projw = get(pfx + 'proj_w')

            attn = None
            for h in range(HEADS):                  # unrolled, nh = 4
                lo, hi = h * HEAD_DIM, (h + 1) * HEAD_DIM
                s = jax.lax.dot_general(q[:, lo:hi], k[:, lo:hi],
                                        (((1,), (1,)), ((), ())),
                                        preferred_element_type=f32)  # (R, R)
                s = s + mask                         # batch isolation + pad kill
                s = s - jnp.max(s, axis=-1, keepdims=True)
                e = jnp.exp(s)
                p_att = e * pl.reciprocal(
                    jnp.sum(e, axis=-1, keepdims=True), approx=True)
                oh = jnp.dot(p_att, v[:, lo:hi], preferred_element_type=f32)
                # accumulate straight through the matching proj_w row slice.
                contrib = jnp.dot(oh, projw[lo:hi, :],
                                  preferred_element_type=f32)        # (R, C)
                attn = contrib if attn is None else attn + contrib
            x = x + attn + get(pfx + 'proj_b')

            # --- MLP branch ---
            xn2 = layernorm(x, get(pfx + 'ln2_w'), get(pfx + 'ln2_b'))
            h1 = (jnp.dot(xn2, get(pfx + 'fc1_w'), preferred_element_type=f32)
                  + get(pfx + 'fc1_b'))
            h1 = 0.5 * h1 * (1.0 + jax.lax.erf(h1 * inv_sqrt2))   # exact GELU
            x = x + (jnp.dot(h1, get(pfx + 'fc2_w'), preferred_element_type=f32)
                     + get(pfx + 'fc2_b'))

        # ---- final LN + head on every slab row (lane-dense 128-wide store);
        # cls rows (g*8) and the 10 real classes are sliced outside. ----
        xn = layernorm(x, get('ln_w'), get('ln_b'))
        o_ref[...] = (jnp.dot(xn, get('head_w'), preferred_element_type=f32)
                      + get('head_b'))

    return kernel


# ----------------------- host-side packing / constants -----------------------
def _pack_params(params, cb):
    """Pack every weight / bias / constant into one (rows, 128) f32 slab.
    Each entry starts on an 8-row boundary; returns (slab, offsets)."""
    C = EMBED
    R = cb * PAD_SEQ

    # combined additive constant: row 0 = cls + pos[0]; rows 1..4 = conv bias
    # + pos[1..4]; rows 5..7 = 0 (padding). Tiled per sample in the chunk.
    add = jnp.zeros((PAD_SEQ, C), jnp.float32)
    add = add.at[0, :].set(params['cls_token'][0] + params['pos_embed'][0])
    add = add.at[1:1 + NUM_PATCHES, :].set(
        params['patch_b'] + params['pos_embed'][1:SEQ])
    add = jnp.tile(add, (cb, 1))                          # (R, C)

    # block-diagonal additive attention mask; kills cross-batch and pad-key
    # columns (pad query rows produce garbage that is never read back).
    ii = np.arange(R)
    same_group = (ii[:, None] // PAD_SEQ) == (ii[None, :] // PAD_SEQ)
    real_col = (ii[None, :] % PAD_SEQ) < SEQ
    mask = np.where(same_group & real_col, 0.0, -1e30).astype(np.float32)

    # fused per-head mean/broadcast matrix (block-diag of 1/head_dim).
    m_std = np.zeros((C, C), np.float32)
    for h in range(HEADS):
        m_std[h * HEAD_DIM:(h + 1) * HEAD_DIM,
              h * HEAD_DIM:(h + 1) * HEAD_DIM] = 1.0 / HEAD_DIM

    head_w = jnp.pad(params['head_w'], ((0, 0), (0, 128 - NUM_CLASSES)))
    head_b = jnp.pad(params['head_b'], ((0, 0), (0, 128 - NUM_CLASSES)))

    entries = [('patch_w', params['patch_w']),
               ('add_const', add),
               ('mask', jnp.asarray(mask)),
               ('m_std', jnp.asarray(m_std))]
    for d, bp in enumerate(params['blocks']):
        for n in BLOCK_PARAM_NAMES:
            entries.append((f'b{d}_{n}', bp[n]))
    entries += [('ln_w', params['ln_w']), ('ln_b', params['ln_b']),
                ('head_w', head_w), ('head_b', head_b)]

    offs, parts, row = {}, [], 0
    for name, a in entries:
        a = jnp.asarray(a, jnp.float32)
        r, c = a.shape
        rp = ((r + 7) // 8) * 8                     # 8-sublane aligned start
        parts.append(jnp.pad(a, ((0, rp - r), (0, 128 - c))))
        offs[name] = (row, r, c)
        row += rp
    return jnp.concatenate(parts, axis=0), offs


def _extract_patches(x_img):
    """NCHW -> (B*PAD_SEQ, Cin*p*p): patch p of sample b sits at row b*8+1+p,
    flattened in (c, di, dj) order to match the flattened Conv2d weight;
    cls/pad rows are zero (their contribution lives in add_const)."""
    B = x_img.shape[0]
    g = IMG // PATCH
    p = x_img.reshape(B, IN_CHANS, g, PATCH, g, PATCH)
    p = p.transpose(0, 2, 4, 1, 3, 5).reshape(B, NUM_PATCHES, PATCH_DIM)
    p = jnp.pad(p, ((0, 0), (1, PAD_SEQ - 1 - NUM_PATCHES), (0, 0)))
    return p.reshape(B * PAD_SEQ, PATCH_DIM)


def _num_parallel_chunks(batch):
    """Split the batch across TensorCores only on multi-TC chips (v7x);
    on single-TC v5e/v6e an extra grid step is pure pipeline overhead."""
    if batch < 2 or batch % 2 != 0:
        return 1
    try:
        kind = jax.devices()[0].device_kind.lower()
    except Exception:
        return 1
    return 2 if ('v7' in kind or 'tpu7' in kind) else 1


def build_forward(params, batch):
    """Returns (jitted forward fn, packed weight slab)."""
    num_chunks = _num_parallel_chunks(batch)
    cb = batch // num_chunks
    slab, offs = _pack_params(params, cb)
    kernel = _make_kernel(offs)
    rows = cb * PAD_SEQ
    slab_shape = tuple(slab.shape)

    def fwd(x_img, slab):
        patches = _extract_patches(x_img)
        out = pl.pallas_call(
            kernel,
            out_shape=jax.ShapeDtypeStruct((batch * PAD_SEQ, 128), jnp.float32),
            grid_spec=pltpu.PrefetchScalarGridSpec(
                num_scalar_prefetch=0,
                grid=(num_chunks,),
                in_specs=[pl.BlockSpec((rows, PATCH_DIM), lambda i: (i, 0)),
                          pl.BlockSpec(slab_shape, lambda i: (0, 0))],
                out_specs=pl.BlockSpec((rows, 128), lambda i: (i, 0))),
            compiler_params=pltpu.CompilerParams(
                dimension_semantics=("parallel",)),
        )(patches, slab)
        # cls rows sit at sample strides of PAD_SEQ; head was 128-lane padded.
        return out[::PAD_SEQ, :NUM_CLASSES]

    return jax.jit(fwd), slab


# --------------------------- parameter init ---------------------------------
def init_params(key):
    keys = jax.random.split(key, 8 + DEPTH * 8)
    kit = iter(keys)

    def nrm(shape, std=0.02):
        return jax.random.normal(next(kit), shape, jnp.float32) * std

    hidden = int(EMBED * MLP_RATIO)
    params = {
        # conv weight stored pre-flattened/transposed: (Cin*p*p, E)
        'patch_w': nrm((PATCH_DIM, EMBED)),
        'patch_b': jnp.zeros((1, EMBED), jnp.float32),
        'cls_token': nrm((1, EMBED)),
        'pos_embed': nrm((SEQ, EMBED)),
        'ln_w': jnp.ones((1, EMBED), jnp.float32),
        'ln_b': jnp.zeros((1, EMBED), jnp.float32),
        'head_w': nrm((EMBED, NUM_CLASSES)),
        'head_b': jnp.zeros((1, NUM_CLASSES), jnp.float32),
        'blocks': [],
    }
    for _ in range(DEPTH):
        bp = {
            'ln1_w': jnp.ones((1, EMBED), jnp.float32),
            'ln1_b': jnp.zeros((1, EMBED), jnp.float32),
            'qkv_w': nrm((EMBED, 3 * EMBED)),        # (in, out) pre-transposed
            'qkv_b': nrm((1, 3 * EMBED), 0.01),      # qkv_bias=True
            'proj_w': nrm((EMBED, EMBED)),
            'proj_b': nrm((1, EMBED), 0.01),
            'ln2_w': jnp.ones((1, EMBED), jnp.float32),
            'ln2_b': jnp.zeros((1, EMBED), jnp.float32),
            'fc1_w': nrm((EMBED, hidden)),
            'fc1_b': nrm((1, hidden), 0.01),
            'fc2_w': nrm((hidden, EMBED)),
            'fc2_b': nrm((1, EMBED), 0.01),
        }
        params['blocks'].append(bp)
    return params


# ------------------------------- main ----------------------------------------
if __name__ == "__main__":
    key = jax.random.PRNGKey(0)
    pkey, xkey = jax.random.split(key)
    params = init_params(pkey)

    # input image batch: NCHW like the PyTorch module
    x = jax.random.normal(xkey, (2, IN_CHANS, IMG, IMG), jnp.float32)

    fwd, slab = build_forward(params, batch=x.shape[0])
    logits = jax.block_until_ready(fwd(x, slab))
    assert logits.shape == (2, NUM_CLASSES)
    assert bool(jnp.all(jnp.isfinite(logits)))
    # TODO(synk): the `reconstruct` diagnostic branch (train/test reconstruction
    # error bookkeeping + wandb logging) is stateful debugging code outside the
    # numeric forward path and is not translated.
    print("KERNEL_OK")
</pallas_src>

<mosaic_0001>
module attributes {stable_mosaic.version = 11 : i64} {
  func.func @kernel(%arg0: i32, %arg1: memref<16x256xf32, #tpu.memory_space<vmem>>, %arg2: memref<952x128xf32, #tpu.memory_space<vmem>>, %arg3: memref<16x128xf32, #tpu.memory_space<vmem>>) attributes {dimension_semantics = [#tpu.dimension_semantics<parallel>], iteration_bounds = array<i64: 1>, scalar_prefetch = 0 : i64, scratch_operands = 0 : i64, tpu.core_type = #tpu.core_type<tc>, window_params = [{transform_indices = @transform_0, window_bounds = array<i64: 16, 256>}, {pipeline_mode = #tpu.pipeline_mode<synchronous>, transform_indices = @transform_1, window_bounds = array<i64: 952, 128>}, {transform_indices = @transform_2, window_bounds = array<i64: 16, 128>}]} {
    %c288 = arith.constant 288 : index
    %c0 = arith.constant 0 : index
    %0 = vector.load %arg2[%c288, %c0] : memref<952x128xf32, #tpu.memory_space<vmem>>, vector<32x32xf32>
    %c0_0 = arith.constant 0 : index
    %c0_1 = arith.constant 0 : index
    %1 = vector.load %arg1[%c0_0, %c0_1] : memref<16x256xf32, #tpu.memory_space<vmem>>, vector<16x256xf32>
    %c0_2 = arith.constant 0 : index
    %c0_3 = arith.constant 0 : index
    %2 = vector.load %arg2[%c0_2, %c0_3] : memref<952x128xf32, #tpu.memory_space<vmem>>, vector<256x32xf32>
    %cst = arith.constant dense<0.000000e+00> : vector<16x32xf32>
    %3 = tpu.matmul %1, %2, %cst {dimension_numbers = #tpu.dot_dimension_numbers<[1], [0], [0], [1], [0, 0, 1, 1], [], []>} : vector<16x256xf32>, vector<256x32xf32>, vector<16x32xf32> -> vector<16x32xf32>
    %c256 = arith.constant 256 : index
    %c0_4 = arith.constant 0 : index
    %4 = vector.load %arg2[%c256, %c0_4] : memref<952x128xf32, #tpu.memory_space<vmem>>, vector<16x32xf32>
    %5 = arith.addf %3, %4 : vector<16x32xf32>
    %c272 = arith.constant 272 : index
    %c0_5 = arith.constant 0 : index
    %6 = vector.load %arg2[%c272, %c0_5] : memref<952x128xf32, #tpu.memory_space<vmem>>, vector<16x16xf32>
    %c320 = arith.constant 320 : index
    %c0_6 = arith.constant 0 : index
    %7 = vector.load %arg2[%c320, %c0_6] : memref<952x128xf32, #tpu.memory_space<vmem>>, vector<1x32xf32>
    %c328 = arith.constant 328 : index
    %c0_7 = arith.constant 0 : index
    %8 = vector.load %arg2[%c328, %c0_7] : memref<952x128xf32, #tpu.memory_space<vmem>>, vector<1x32xf32>
    %cst_8 = arith.constant dense<0.000000e+00> : vector<16xf32>
    %9 = vector.multi_reduction <add>, %5, %cst_8 [1] : vector<16x32xf32> to vector<16xf32>
    %10 = vector.shape_cast %9 : vector<16xf32> to vector<16x1xf32>
    %cst_9 = arith.constant 3.200000e+01 : f32
    %11 = vector.broadcast %cst_9 : f32 to vector<16x1xf32>
    %12 = arith.divf %10, %11 : vector<16x1xf32>
    %13 = vector.broadcast %12 : vector<16x1xf32> to vector<16x32xf32>
    %14 = arith.subf %5, %13 : vector<16x32xf32>
    %15 = arith.mulf %14, %14 : vector<16x32xf32>
    %cst_10 = arith.constant dense<0.000000e+00> : vector<16xf32>
    %16 = vector.multi_reduction <add>, %15, %cst_10 [1] : vector<16x32xf32> to vector<16xf32>
    %17 = vector.shape_cast %16 : vector<16xf32> to vector<16x1xf32>
    %cst_11 = arith.constant 3.200000e+01 : f32
    %18 = vector.broadcast %cst_11 : f32 to vector<16x1xf32>
    %19 = arith.divf %17, %18 : vector<16x1xf32>
    %20 = vector.broadcast %12 : vector<16x1xf32> to vector<16x32xf32>
    %21 = arith.subf %5, %20 : vector<16x32xf32>
    %cst_12 = arith.constant 9.99999997E-7 : f32
    %22 = vector.broadcast %cst_12 : f32 to vector<16x1xf32>
    %23 = arith.addf %19, %22 : vector<16x1xf32>
    %24 = math.rsqrt %23 : vector<16x1xf32>
    %25 = vector.broadcast %24 : vector<16x1xf32> to vector<16x32xf32>
    %26 = arith.mulf %21, %25 : vector<16x32xf32>
    %27 = vector.broadcast %7 : vector<1x32xf32> to vector<16x32xf32>
    %28 = arith.mulf %26, %27 : vector<16x32xf32>
    %29 = vector.broadcast %8 : vector<1x32xf32> to vector<16x32xf32>
    %30 = arith.addf %28, %29 : vector<16x32xf32>
    %c336 = arith.constant 336 : index
    %c0_13 = arith.constant 0 : index
    %31 = vector.load %arg2[%c336, %c0_13] : memref<952x128xf32, #tpu.memory_space<vmem>>, vector<32x96xf32>
    %cst_14 = arith.constant dense<0.000000e+00> : vector<16x96xf32>
    %32 = tpu.matmul %30, %31, %cst_14 {dimension_numbers = #tpu.dot_dimension_numbers<[1], [0], [0], [1], [0, 0, 1, 1], [], []>} : vector<16x32xf32>, vector<32x96xf32>, vector<16x96xf32> -> vector<16x96xf32>
    %c368 = arith.constant 368 : index
    %c0_15 = arith.constant 0 : index
    %33 = vector.load %arg2[%c368, %c0_15] : memref<952x128xf32, #tpu.memory_space<vmem>>, vector<1x96xf32>
    %34 = vector.broadcast %33 : vector<1x96xf32> to vector<16x96xf32>
    %35 = arith.addf %32, %34 : vector<16x96xf32>
    %36 = vector.extract_strided_slice %35 {offsets = [0, 0], sizes = [16, 32], strides = [1, 1]} : vector<16x96xf32> to vector<16x32xf32>
    %cst_16 = arith.constant dense<0.000000e+00> : vector<16x32xf32>
    %37 = tpu.matmul %36, %0, %cst_16 {dimension_numbers = #tpu.dot_dimension_numbers<[1], [0], [0], [1], [0, 0, 1, 1], [], []>} : vector<16x32xf32>, vector<32x32xf32>, vector<16x32xf32> -> vector<16x32xf32>
    %38 = arith.subf %36, %37 : vector<16x32xf32>
    %39 = arith.mulf %38, %38 : vector<16x32xf32>
    %cst_17 = arith.constant dense<0.000000e+00> : vector<16x32xf32>
    %40 = tpu.matmul %39, %0, %cst_17 {dimension_numbers = #tpu.dot_dimension_numbers<[1], [0], [0], [1], [0, 0, 1, 1], [], []>} : vector<16x32xf32>, vector<32x32xf32>, vector<16x32xf32> -> vector<16x32xf32>
    %cst_18 = arith.constant 1.14285719 : f32
    %41 = vector.broadcast %cst_18 : f32 to vector<16x32xf32>
    %42 = arith.mulf %40, %41 : vector<16x32xf32>
    %cst_19 = arith.constant 9.99999996E-13 : f32
    %43 = vector.broadcast %cst_19 : f32 to vector<16x32xf32>
    %44 = arith.maximumf %42, %43 : vector<16x32xf32>
    %45 = math.rsqrt %44 : vector<16x32xf32>
    %46 = arith.mulf %38, %45 : vector<16x32xf32>
    %cst_20 = arith.constant 0.353553385 : f32
    %47 = vector.broadcast %cst_20 : f32 to vector<16x32xf32>
    %48 = arith.mulf %46, %47 : vector<16x32xf32>
    %49 = vector.extract_strided_slice %35 {offsets = [0, 32], sizes = [16, 32], strides = [1, 1]} : vector<16x96xf32> to vector<16x32xf32>
    %cst_21 = arith.constant dense<0.000000e+00> : vector<16x32xf32>
    %50 = tpu.matmul %49, %0, %cst_21 {dimension_numbers = #tpu.dot_dimension_numbers<[1], [0], [0], [1], [0, 0, 1, 1], [], []>} : vector<16x32xf32>, vector<32x32xf32>, vector<16x32xf32> -> vector<16x32xf32>
    %51 = arith.subf %49, %50 : vector<16x32xf32>
    %52 = arith.mulf %51, %51 : vector<16x32xf32>
    %cst_22 = arith.constant dense<0.000000e+00> : vector<16x32xf32>
    %53 = tpu.matmul %52, %0, %cst_22 {dimension_numbers = #tpu.dot_dimension_numbers<[1], [0], [0], [1], [0, 0, 1, 1], [], []>} : vector<16x32xf32>, vector<32x32xf32>, vector<16x32xf32> -> vector<16x32xf32>
    %cst_23 = arith.constant 1.14285719 : f32
    %54 = vector.broadcast %cst_23 : f32 to vector<16x32xf32>
    %55 = arith.mulf %53, %54 : vector<16x32xf32>
    %cst_24 = arith.constant 9.99999996E-13 : f32
    %56 = vector.broadcast %cst_24 : f32 to vector<16x32xf32>
    %57 = arith.maximumf %55, %56 : vector<16x32xf32>
    %58 = math.rsqrt %57 : vector<16x32xf32>
    %59 = arith.mulf %51, %58 : vector<16x32xf32>
    %60 = vector.extract_strided_slice %35 {offsets = [0, 64], sizes = [16, 32], strides = [1, 1]} : vector<16x96xf32> to vector<16x32xf32>
    %c376 = arith.constant 376 : index
    %c0_25 = arith.constant 0 : index
    %61 = vector.load %arg2[%c376, %c0_25] : memref<952x128xf32, #tpu.memory_space<vmem>>, vector<32x32xf32>
    %62 = vector.extract_strided_slice %48 {offsets = [0, 0], sizes = [16, 8], strides = [1, 1]} : vector<16x32xf32> to vector<16x8xf32>
    %63 = vector.extract_strided_slice %59 {offsets = [0, 0], sizes = [16, 8], strides = [1, 1]} : vector<16x32xf32> to vector<16x8xf32>
    %cst_26 = arith.constant dense<0.000000e+00> : vector<16x16xf32>
    %64 = tpu.matmul %62, %63, %cst_26 {dimension_numbers = #tpu.dot_dimension_numbers<[1], [1], [0], [0], [0, 0, 1, 0], [], []>} : vector<16x8xf32>, vector<16x8xf32>, vector<16x16xf32> -> vector<16x16xf32>
    %65 = arith.addf %64, %6 : vector<16x16xf32>
    %cst_27 = arith.constant dense<0xFF800000> : vector<16xf32>
    %66 = vector.multi_reduction <maximumf>, %65, %cst_27 [1] : vector<16x16xf32> to vector<16xf32>
    %67 = vector.shape_cast %66 : vector<16xf32> to vector<16x1xf32>
    %68 = vector.broadcast %67 : vector<16x1xf32> to vector<16x16xf32>
    %69 = arith.subf %65, %68 : vector<16x16xf32>
    %70 = math.exp %69 : vector<16x16xf32>
    %cst_28 = arith.constant dense<0.000000e+00> : vector<16xf32>
    %71 = vector.multi_reduction <add>, %70, %cst_28 [1] : vector<16x16xf32> to vector<16xf32>
    %72 = vector.shape_cast %71 : vector<16xf32> to vector<16x1xf32>
    %73 = tpu.reciprocal %72 {approx = true} : vector<16x1xf32> -> vector<16x1xf32>
    %74 = vector.broadcast %73 : vector<16x1xf32> to vector<16x16xf32>
    %75 = arith.mulf %70, %74 : vector<16x16xf32>
    %76 = vector.extract_strided_slice %60 {offsets = [0, 0], sizes = [16, 8], strides = [1, 1]} : vector<16x32xf32> to vector<16x8xf32>
    %cst_29 = arith.constant dense<0.000000e+00> : vector<16x8xf32>
    %77 = tpu.matmul %75, %76, %cst_29 {dimension_numbers = #tpu.dot_dimension_numbers<[1], [0], [0], [1], [0, 0, 1, 1], [], []>} : vector<16x16xf32>, vector<16x8xf32>, vector<16x8xf32> -> vector<16x8xf32>
    %78 = vector.extract_strided_slice %61 {offsets = [0, 0], sizes = [8, 32], strides = [1, 1]} : vector<32x32xf32> to vector<8x32xf32>
    %cst_30 = arith.constant dense<0.000000e+00> : vector<16x32xf32>
    %79 = tpu.matmul %77, %78, %cst_30 {dimension_numbers = #tpu.dot_dimension_numbers<[1], [0], [0], [1], [0, 0, 1, 1], [], []>} : vector<16x8xf32>, vector<8x32xf32>, vector<16x32xf32> -> vector<16x32xf32>
    %80 = vector.extract_strided_slice %48 {offsets = [0, 8], sizes = [16, 8], strides = [1, 1]} : vector<16x32xf32> to vector<16x8xf32>
    %81 = vector.extract_strided_slice %59 {offsets = [0, 8], sizes = [16, 8], strides = [1, 1]} : vector<16x32xf32> to vector<16x8xf32>
    %cst_31 = arith.constant dense<0.000000e+00> : vector<16x16xf32>
    %82 = tpu.matmul %80, %81, %cst_31 {dimension_numbers = #tpu.dot_dimension_numbers<[1], [1], [0], [0], [0, 0, 1, 0], [], []>} : vector<16x8xf32>, vector<16x8xf32>, vector<16x16xf32> -> vector<16x16xf32>
    %83 = arith.addf %82, %6 : vector<16x16xf32>
    %cst_32 = arith.constant dense<0xFF800000> : vector<16xf32>
    %84 = vector.multi_reduction <maximumf>, %83, %cst_32 [1] : vector<16x16xf32> to vector<16xf32>
    %85 = vector.shape_cast %84 : vector<16xf32> to vector<16x1xf32>
    %86 = vector.broadcast %85 : vector<16x1xf32> to vector<16x16xf32>
    %87 = arith.subf %83, %86 : vector<16x16xf32>
    %88 = math.exp %87 : vector<16x16xf32>
    %cst_33 = arith.constant dense<0.000000e+00> : vector<16xf32>
    %89 = vector.multi_reduction <add>, %88, %cst_33 [1] : vector<16x16xf32> to vector<16xf32>
    %90 = vector.shape_cast %89 : vector<16xf32> to vector<16x1xf32>
    %91 = tpu.reciprocal %90 {approx = true} : vector<16x1xf32> -> vector<16x1xf32>
    %92 = vector.broadcast %91 : vector<16x1xf32> to vector<16x16xf32>
    %93 = arith.mulf %88, %92 : vector<16x16xf32>
    %94 = vector.extract_strided_slice %60 {offsets = [0, 8], sizes = [16, 8], strides = [1, 1]} : vector<16x32xf32> to vector<16x8xf32>
    %cst_34 = arith.constant dense<0.000000e+00> : vector<16x8xf32>
    %95 = tpu.matmul %93, %94, %cst_34 {dimension_numbers = #tpu.dot_dimension_numbers<[1], [0], [0], [1], [0, 0, 1, 1], [], []>} : vector<16x16xf32>, vector<16x8xf32>, vector<16x8xf32> -> vector<16x8xf32>
    %96 = vector.extract_strided_slice %61 {offsets = [8, 0], sizes = [8, 32], strides = [1, 1]} : vector<32x32xf32> to vector<8x32xf32>
    %cst_35 = arith.constant dense<0.000000e+00> : vector<16x32xf32>
    %97 = tpu.matmul %95, %96, %cst_35 {dimension_numbers = #tpu.dot_dimension_numbers<[1], [0], [0], [1], [0, 0, 1, 1], [], []>} : vector<16x8xf32>, vector<8x32xf32>, vector<16x32xf32> -> vector<16x32xf32>
    %98 = arith.addf %79, %97 : vector<16x32xf32>
    %99 = vector.extract_strided_slice %48 {offsets = [0, 16], sizes = [16, 8], strides = [1, 1]} : vector<16x32xf32> to vector<16x8xf32>
    %100 = vector.extract_strided_slice %59 {offsets = [0, 16], sizes = [16, 8], strides = [1, 1]} : vector<16x32xf32> to vector<16x8xf32>
    %cst_36 = arith.constant dense<0.000000e+00> : vector<16x16xf32>
    %101 = tpu.matmul %99, %100, %cst_36 {dimension_numbers = #tpu.dot_dimension_numbers<[1], [1], [0], [0], [0, 0, 1, 0], [], []>} : vector<16x8xf32>, vector<16x8xf32>, vector<16x16xf32> -> vector<16x16xf32>
    %102 = arith.addf %101, %6 : vector<16x16xf32>
    %cst_37 = arith.constant dense<0xFF800000> : vector<16xf32>
    %103 = vector.multi_reduction <maximumf>, %102, %cst_37 [1] : vector<16x16xf32> to vector<16xf32>
    %104 = vector.shape_cast %103 : vector<16xf32> to vector<16x1xf32>
    %105 = vector.broadcast %104 : vector<16x1xf32> to vector<16x16xf32>
    %106 = arith.subf %102, %105 : vector<16x16xf32>
    %107 = math.exp %106 : vector<16x16xf32>
    %cst_38 = arith.constant dense<0.000000e+00> : vector<16xf32>
    %108 = vector.multi_reduction <add>, %107, %cst_38 [1] : vector<16x16xf32> to vector<16xf32>
    %109 = vector.shape_cast %108 : vector<16xf32> to vector<16x1xf32>
    %110 = tpu.reciprocal %109 {approx = true} : vector<16x1xf32> -> vector<16x1xf32>
    %111 = vector.broadcast %110 : vector<16x1xf32> to vector<16x16xf32>
    %112 = arith.mulf %107, %111 : vector<16x16xf32>
    %113 = vector.extract_strided_slice %60 {offsets = [0, 16], sizes = [16, 8], strides = [1, 1]} : vector<16x32xf32> to vector<16x8xf32>
    %cst_39 = arith.constant dense<0.000000e+00> : vector<16x8xf32>
    %114 = tpu.matmul %112, %113, %cst_39 {dimension_numbers = #tpu.dot_dimension_numbers<[1], [0], [0], [1], [0, 0, 1, 1], [], []>} : vector<16x16xf32>, vector<16x8xf32>, vector<16x8xf32> -> vector<16x8xf32>
    %115 = vector.extract_strided_slice %61 {offsets = [16, 0], sizes = [8, 32], strides = [1, 1]} : vector<32x32xf32> to vector<8x32xf32>
    %cst_40 = arith.constant dense<0.000000e+00> : vector<16x32xf32>
    %116 = tpu.matmul %114, %115, %cst_40 {dimension_numbers = #tpu.dot_dimension_numbers<[1], [0], [0], [1], [0, 0, 1, 1], [], []>} : vector<16x8xf32>, vector<8x32xf32>, vector<16x32xf32> -> vector<16x32xf32>
    %117 = arith.addf %98, %116 : vector<16x32xf32>
    %118 = vector.extract_strided_slice %48 {offsets = [0, 24], sizes = [16, 8], strides = [1, 1]} : vector<16x32xf32> to vector<16x8xf32>
    %119 = vector.extract_strided_slice %59 {offsets = [0, 24], sizes = [16, 8], strides = [1, 1]} : vector<16x32xf32> to vector<16x8xf32>
    %cst_41 = arith.constant dense<0.000000e+00> : vector<16x16xf32>
    %120 = tpu.matmul %118, %119, %cst_41 {dimension_numbers = #tpu.dot_dimension_numbers<[1], [1], [0], [0], [0, 0, 1, 0], [], []>} : vector<16x8xf32>, vector<16x8xf32>, vector<16x16xf32> -> vector<16x16xf32>
    %121 = arith.addf %120, %6 : vector<16x16xf32>
    %cst_42 = arith.constant dense<0xFF800000> : vector<16xf32>
    %122 = vector.multi_reduction <maximumf>, %121, %cst_42 [1] : vector<16x16xf32> to vector<16xf32>
    %123 = vector.shape_cast %122 : vector<16xf32> to vector<16x1xf32>
    %124 = vector.broadcast %123 : vector<16x1xf32> to vector<16x16xf32>
    %125 = arith.subf %121, %124 : vector<16x16xf32>
    %126 = math.exp %125 : vector<16x16xf32>
    %cst_43 = arith.constant dense<0.000000e+00> : vector<16xf32>
    %127 = vector.multi_reduction <add>, %126, %cst_43 [1] : vector<16x16xf32> to vector<16xf32>
    %128 = vector.shape_cast %127 : vector<16xf32> to vector<16x1xf32>
    %129 = tpu.reciprocal %128 {approx = true} : vector<16x1xf32> -> vector<16x1xf32>
    %130 = vector.broadcast %129 : vector<16x1xf32> to vector<16x16xf32>
    %131 = arith.mulf %126, %130 : vector<16x16xf32>
    %132 = vector.extract_strided_slice %60 {offsets = [0, 24], sizes = [16, 8], strides = [1, 1]} : vector<16x32xf32> to vector<16x8xf32>
    %cst_44 = arith.constant dense<0.000000e+00> : vector<16x8xf32>
    %133 = tpu.matmul %131, %132, %cst_44 {dimension_numbers = #tpu.dot_dimension_numbers<[1], [0], [0], [1], [0, 0, 1, 1], [], []>} : vector<16x16xf32>, vector<16x8xf32>, vector<16x8xf32> -> vector<16x8xf32>
    %134 = vector.extract_strided_slice %61 {offsets = [24, 0], sizes = [8, 32], strides = [1, 1]} : vector<32x32xf32> to vector<8x32xf32>
    %cst_45 = arith.constant dense<0.000000e+00> : vector<16x32xf32>
    %135 = tpu.matmul %133, %134, %cst_45 {dimension_numbers = #tpu.dot_dimension_numbers<[1], [0], [0], [1], [0, 0, 1, 1], [], []>} : vector<16x8xf32>, vector<8x32xf32>, vector<16x32xf32> -> vector<16x32xf32>
    %136 = arith.addf %117, %135 : vector<16x32xf32>
    %137 = arith.addf %5, %136 : vector<16x32xf32>
    %c408 = arith.constant 408 : index
    %c0_46 = arith.constant 0 : index
    %138 = vector.load %arg2[%c408, %c0_46] : memref<952x128xf32, #tpu.memory_space<vmem>>, vector<1x32xf32>
    %139 = vector.broadcast %138 : vector<1x32xf32> to vector<16x32xf32>
    %140 = arith.addf %137, %139 : vector<16x32xf32>
    %c416 = arith.constant 416 : index
    %c0_47 = arith.constant 0 : index
    %141 = vector.load %arg2[%c416, %c0_47] : memref<952x128xf32, #tpu.memory_space<vmem>>, vector<1x32xf32>
    %c424 = arith.constant 424 : index
    %c0_48 = arith.constant 0 : index
    %142 = vector.load %arg2[%c424, %c0_48] : memref<952x128xf32, #tpu.memory_space<vmem>>, vector<1x32xf32>
    %cst_49 = arith.constant dense<0.000000e+00> : vector<16xf32>
    %143 = vector.multi_reduction <add>, %140, %cst_49 [1] : vector<16x32xf32> to vector<16xf32>
    %144 = vector.shape_cast %143 : vector<16xf32> to vector<16x1xf32>
    %cst_50 = arith.constant 3.200000e+01 : f32
    %145 = vector.broadcast %cst_50 : f32 to vector<16x1xf32>
    %146 = arith.divf %144, %145 : vector<16x1xf32>
    %147 = vector.broadcast %146 : vector<16x1xf32> to vector<16x32xf32>
    %148 = arith.subf %140, %147 : vector<16x32xf32>
    %149 = arith.mulf %148, %148 : vector<16x32xf32>
    %cst_51 = arith.constant dense<0.000000e+00> : vector<16xf32>
    %150 = vector.multi_reduction <add>, %149, %cst_51 [1] : vector<16x32xf32> to vector<16xf32>
    %151 = vector.shape_cast %150 : vector<16xf32> to vector<16x1xf32>
    %cst_52 = arith.constant 3.200000e+01 : f32
    %152 = vector.broadcast %cst_52 : f32 to vector<16x1xf32>
    %153 = arith.divf %151, %152 : vector<16x1xf32>
    %154 = vector.broadcast %146 : vector<16x1xf32> to vector<16x32xf32>
    %155 = arith.subf %140, %154 : vector<16x32xf32>
    %cst_53 = arith.constant 9.99999997E-7 : f32
    %156 = vector.broadcast %cst_53 : f32 to vector<16x1xf32>
    %157 = arith.addf %153, %156 : vector<16x1xf32>
    %158 = math.rsqrt %157 : vector<16x1xf32>
    %159 = vector.broadcast %158 : vector<16x1xf32> to vector<16x32xf32>
    %160 = arith.mulf %155, %159 : vector<16x32xf32>
    %161 = vector.broadcast %141 : vector<1x32xf32> to vector<16x32xf32>
    %162 = arith.mulf %160, %161 : vector<16x32xf32>
    %163 = vector.broadcast %142 : vector<1x32xf32> to vector<16x32xf32>
    %164 = arith.addf %162, %163 : vector<16x32xf32>
    %c432 = arith.constant 432 : index
    %c0_54 = arith.constant 0 : index
    %165 = vector.load %arg2[%c432, %c0_54] : memref<952x128xf32, #tpu.memory_space<vmem>>, vector<32x128xf32>
    %cst_55 = arith.constant dense<0.000000e+00> : vector<16x128xf32>
    %166 = tpu.matmul %164, %165, %cst_55 {dimension_numbers = #tpu.dot_dimension_numbers<[1], [0], [0], [1], [0, 0, 1, 1], [], []>} : vector<16x32xf32>, vector<32x128xf32>, vector<16x128xf32> -> vector<16x128xf32>
    %c464 = arith.constant 464 : index
    %c0_56 = arith.constant 0 : index
    %167 = vector.load %arg2[%c464, %c0_56] : memref<952x128xf32, #tpu.memory_space<vmem>>, vector<1x128xf32>
    %168 = vector.broadcast %167 : vector<1x128xf32> to vector<16x128xf32>
    %169 = arith.addf %166, %168 : vector<16x128xf32>
    %cst_57 = arith.constant 5.000000e-01 : f32
    %170 = vector.broadcast %cst_57 : f32 to vector<16x128xf32>
    %171 = arith.mulf %170, %169 : vector<16x128xf32>
    %cst_58 = arith.constant 0.707106769 : f32
    %172 = vector.broadcast %cst_58 : f32 to vector<16x128xf32>
    %173 = arith.mulf %169, %172 : vector<16x128xf32>
    %174 = math.erf %173 : vector<16x128xf32>
    %cst_59 = arith.constant 1.000000e+00 : f32
    %175 = vector.broadcast %cst_59 : f32 to vector<16x128xf32>
    %176 = arith.addf %175, %174 : vector<16x128xf32>
    %177 = arith.mulf %171, %176 : vector<16x128xf32>
    %c472 = arith.constant 472 : index
    %c0_60 = arith.constant 0 : index
    %178 = vector.load %arg2[%c472, %c0_60] : memref<952x128xf32, #tpu.memory_space<vmem>>, vector<128x32xf32>
    %cst_61 = arith.constant dense<0.000000e+00> : vector<16x32xf32>
    %179 = tpu.matmul %177, %178, %cst_61 {dimension_numbers = #tpu.dot_dimension_numbers<[1], [0], [0], [1], [0, 0, 1, 1], [], []>} : vector<16x128xf32>, vector<128x32xf32>, vector<16x32xf32> -> vector<16x32xf32>
    %c600 = arith.constant 600 : index
    %c0_62 = arith.constant 0 : index
    %180 = vector.load %arg2[%c600, %c0_62] : memref<952x128xf32, #tpu.memory_space<vmem>>, vector<1x32xf32>
    %181 = vector.broadcast %180 : vector<1x32xf32> to vector<16x32xf32>
    %182 = arith.addf %179, %181 : vector<16x32xf32>
    %183 = arith.addf %140, %182 : vector<16x32xf32>
    %c608 = arith.constant 608 : index
    %c0_63 = arith.constant 0 : index
    %184 = vector.load %arg2[%c608, %c0_63] : memref<952x128xf32, #tpu.memory_space<vmem>>, vector<1x32xf32>
    %c616 = arith.constant 616 : index
    %c0_64 = arith.constant 0 : index
    %185 = vector.load %arg2[%c616, %c0_64] : memref<952x128xf32, #tpu.memory_space<vmem>>, vector<1x32xf32>
    %cst_65 = arith.constant dense<0.000000e+00> : vector<16xf32>
    %186 = vector.multi_reduction <add>, %183, %cst_65 [1] : vector<16x32xf32> to vector<16xf32>
    %187 = vector.shape_cast %186 : vector<16xf32> to vector<16x1xf32>
    %cst_66 = arith.constant 3.200000e+01 : f32
    %188 = vector.broadcast %cst_66 : f32 to vector<16x1xf32>
    %189 = arith.divf %187, %188 : vector<16x1xf32>
    %190 = vector.broadcast %189 : vector<16x1xf32> to vector<16x32xf32>
    %191 = arith.subf %183, %190 : vector<16x32xf32>
    %192 = arith.mulf %191, %191 : vector<16x32xf32>
    %cst_67 = arith.constant dense<0.000000e+00> : vector<16xf32>
    %193 = vector.multi_reduction <add>, %192, %cst_67 [1] : vector<16x32xf32> to vector<16xf32>
    %194 = vector.shape_cast %193 : vector<16xf32> to vector<16x1xf32>
    %cst_68 = arith.constant 3.200000e+01 : f32
    %195 = vector.broadcast %cst_68 : f32 to vector<16x1xf32>
    %196 = arith.divf %194, %195 : vector<16x1xf32>
    %197 = vector.broadcast %189 : vector<16x1xf32> to vector<16x32xf32>
    %198 = arith.subf %183, %197 : vector<16x32xf32>
    %cst_69 = arith.constant 9.99999997E-7 : f32
    %199 = vector.broadcast %cst_69 : f32 to vector<16x1xf32>
    %200 = arith.addf %196, %199 : vector<16x1xf32>
    %201 = math.rsqrt %200 : vector<16x1xf32>
    %202 = vector.broadcast %201 : vector<16x1xf32> to vector<16x32xf32>
    %203 = arith.mulf %198, %202 : vector<16x32xf32>
    %204 = vector.broadcast %184 : vector<1x32xf32> to vector<16x32xf32>
    %205 = arith.mulf %203, %204 : vector<16x32xf32>
    %206 = vector.broadcast %185 : vector<1x32xf32> to vector<16x32xf32>
    %207 = arith.addf %205, %206 : vector<16x32xf32>
    %c624 = arith.constant 624 : index
    %c0_70 = arith.constant 0 : index
    %208 = vector.load %arg2[%c624, %c0_70] : memref<952x128xf32, #tpu.memory_space<vmem>>, vector<32x96xf32>
    %cst_71 = arith.constant dense<0.000000e+00> : vector<16x96xf32>
    %209 = tpu.matmul %207, %208, %cst_71 {dimension_numbers = #tpu.dot_dimension_numbers<[1], [0], [0], [1], [0, 0, 1, 1], [], []>} : vector<16x32xf32>, vector<32x96xf32>, vector<16x96xf32> -> vector<16x96xf32>
    %c656 = arith.constant 656 : index
    %c0_72 = arith.constant 0 : index
    %210 = vector.load %arg2[%c656, %c0_72] : memref<952x128xf32, #tpu.memory_space<vmem>>, vector<1x96xf32>
    %211 = vector.broadcast %210 : vector<1x96xf32> to vector<16x96xf32>
    %212 = arith.addf %209, %211 : vector<16x96xf32>
    %213 = vector.extract_strided_slice %212 {offsets = [0, 0], sizes = [16, 32], strides = [1, 1]} : vector<16x96xf32> to vector<16x32xf32>
    %cst_73 = arith.constant dense<0.000000e+00> : vector<16x32xf32>
    %214 = tpu.matmul %213, %0, %cst_73 {dimension_numbers = #tpu.dot_dimension_numbers<[1], [0], [0], [1], [0, 0, 1, 1], [], []>} : vector<16x32xf32>, vector<32x32xf32>, vector<16x32xf32> -> vector<16x32xf32>
    %215 = arith.subf %213, %214 : vector<16x32xf32>
    %216 = arith.mulf %215, %215 : vector<16x32xf32>
    %cst_74 = arith.constant dense<0.000000e+00> : vector<16x32xf32>
    %217 = tpu.matmul %216, %0, %cst_74 {dimension_numbers = #tpu.dot_dimension_numbers<[1], [0], [0], [1], [0, 0, 1, 1], [], []>} : vector<16x32xf32>, vector<32x32xf32>, vector<16x32xf32> -> vector<16x32xf32>
    %cst_75 = arith.constant 1.14285719 : f32
    %218 = vector.broadcast %cst_75 : f32 to vector<16x32xf32>
    %219 = arith.mulf %217, %218 : vector<16x32xf32>
    %cst_76 = arith.constant 9.99999996E-13 : f32
    %220 = vector.broadcast %cst_76 : f32 to vector<16x32xf32>
    %221 = arith.maximumf %219, %220 : vector<16x32xf32>
    %222 = math.rsqrt %221 : vector<16x32xf32>
    %223 = arith.mulf %215, %222 : vector<16x32xf32>
    %cst_77 = arith.constant 0.353553385 : f32
    %224 = vector.broadcast %cst_77 : f32 to vector<16x32xf32>
    %225 = arith.mulf %223, %224 : vector<16x32xf32>
    %226 = vector.extract_strided_slice %212 {offsets = [0, 32], sizes = [16, 32], strides = [1, 1]} : vector<16x96xf32> to vector<16x32xf32>
    %cst_78 = arith.constant dense<0.000000e+00> : vector<16x32xf32>
    %227 = tpu.matmul %226, %0, %cst_78 {dimension_numbers = #tpu.dot_dimension_numbers<[1], [0], [0], [1], [0, 0, 1, 1], [], []>} : vector<16x32xf32>, vector<32x32xf32>, vector<16x32xf32> -> vector<16x32xf32>
    %228 = arith.subf %226, %227 : vector<16x32xf32>
    %229 = arith.mulf %228, %228 : vector<16x32xf32>
    %cst_79 = arith.constant dense<0.000000e+00> : vector<16x32xf32>
    %230 = tpu.matmul %229, %0, %cst_79 {dimension_numbers = #tpu.dot_dimension_numbers<[1], [0], [0], [1], [0, 0, 1, 1], [], []>} : vector<16x32xf32>, vector<32x32xf32>, vector<16x32xf32> -> vector<16x32xf32>
    %cst_80 = arith.constant 1.14285719 : f32
    %231 = vector.broadcast %cst_80 : f32 to vector<16x32xf32>
    %232 = arith.mulf %230, %231 : vector<16x32xf32>
    %cst_81 = arith.constant 9.99999996E-13 : f32
    %233 = vector.broadcast %cst_81 : f32 to vector<16x32xf32>
    %234 = arith.maximumf %232, %233 : vector<16x32xf32>
    %235 = math.rsqrt %234 : vector<16x32xf32>
    %236 = arith.mulf %228, %235 : vector<16x32xf32>
    %237 = vector.extract_strided_slice %212 {offsets = [0, 64], sizes = [16, 32], strides = [1, 1]} : vector<16x96xf32> to vector<16x32xf32>
    %c664 = arith.constant 664 : index
    %c0_82 = arith.constant 0 : index
    %238 = vector.load %arg2[%c664, %c0_82] : memref<952x128xf32, #tpu.memory_space<vmem>>, vector<32x32xf32>
    %239 = vector.extract_strided_slice %225 {offsets = [0, 0], sizes = [16, 8], strides = [1, 1]} : vector<16x32xf32> to vector<16x8xf32>
    %240 = vector.extract_strided_slice %236 {offsets = [0, 0], sizes = [16, 8], strides = [1, 1]} : vector<16x32xf32> to vector<16x8xf32>
    %cst_83 = arith.constant dense<0.000000e+00> : vector<16x16xf32>
    %241 = tpu.matmul %239, %240, %cst_83 {dimension_numbers = #tpu.dot_dimension_numbers<[1], [1], [0], [0], [0, 0, 1, 0], [], []>} : vector<16x8xf32>, vector<16x8xf32>, vector<16x16xf32> -> vector<16x16xf32>
    %242 = arith.addf %241, %6 : vector<16x16xf32>
    %cst_84 = arith.constant dense<0xFF800000> : vector<16xf32>
    %243 = vector.multi_reduction <maximumf>, %242, %cst_84 [1] : vector<16x16xf32> to vector<16xf32>
    %244 = vector.shape_cast %243 : vector<16xf32> to vector<16x1xf32>
    %245 = vector.broadcast %244 : vector<16x1xf32> to vector<16x16xf32>
    %246 = arith.subf %242, %245 : vector<16x16xf32>
    %247 = math.exp %246 : vector<16x16xf32>
    %cst_85 = arith.constant dense<0.000000e+00> : vector<16xf32>
    %248 = vector.multi_reduction <add>, %247, %cst_85 [1] : vector<16x16xf32> to vector<16xf32>
    %249 = vector.shape_cast %248 : vector<16xf32> to vector<16x1xf32>
    %250 = tpu.reciprocal %249 {approx = true} : vector<16x1xf32> -> vector<16x1xf32>
    %251 = vector.broadcast %250 : vector<16x1xf32> to vector<16x16xf32>
    %252 = arith.mulf %247, %251 : vector<16x16xf32>
    %253 = vector.extract_strided_slice %237 {offsets = [0, 0], sizes = [16, 8], strides = [1, 1]} : vector<16x32xf32> to vector<16x8xf32>
    %cst_86 = arith.constant dense<0.000000e+00> : vector<16x8xf32>
    %254 = tpu.matmul %252, %253, %cst_86 {dimension_numbers = #tpu.dot_dimension_numbers<[1], [0], [0], [1], [0, 0, 1, 1], [], []>} : vector<16x16xf32>, vector<16x8xf32>, vector<16x8xf32> -> vector<16x8xf32>
    %255 = vector.extract_strided_slice %238 {offsets = [0, 0], sizes = [8, 32], strides = [1, 1]} : vector<32x32xf32> to vector<8x32xf32>
    %cst_87 = arith.constant dense<0.000000e+00> : vector<16x32xf32>
    %256 = tpu.matmul %254, %255, %cst_87 {dimension_numbers = #tpu.dot_dimension_numbers<[1], [0], [0], [1], [0, 0, 1, 1], [], []>} : vector<16x8xf32>, vector<8x32xf32>, vector<16x32xf32> -> vector<16x32xf32>
    %257 = vector.extract_strided_slice %225 {offsets = [0, 8], sizes = [16, 8], strides = [1, 1]} : vector<16x32xf32> to vector<16x8xf32>
    %258 = vector.extract_strided_slice %236 {offsets = [0, 8], sizes = [16, 8], strides = [1, 1]} : vector<16x32xf32> to vector<16x8xf32>
    %cst_88 = arith.constant dense<0.000000e+00> : vector<16x16xf32>
    %259 = tpu.matmul %257, %258, %cst_88 {dimension_numbers = #tpu.dot_dimension_numbers<[1], [1], [0], [0], [0, 0, 1, 0], [], []>} : vector<16x8xf32>, vector<16x8xf32>, vector<16x16xf32> -> vector<16x16xf32>
    %260 = arith.addf %259, %6 : vector<16x16xf32>
    %cst_89 = arith.constant dense<0xFF800000> : vector<16xf32>
    %261 = vector.multi_reduction <maximumf>, %260, %cst_89 [1] : vector<16x16xf32> to vector<16xf32>
    %262 = vector.shape_cast %261 : vector<16xf32> to vector<16x1xf32>
    %263 = vector.broadcast %262 : vector<16x1xf32> to vector<16x16xf32>
    %264 = arith.subf %260, %263 : vector<16x16xf32>
    %265 = math.exp %264 : vector<16x16xf32>
    %cst_90 = arith.constant dense<0.000000e+00> : vector<16xf32>
    %266 = vector.multi_reduction <add>, %265, %cst_90 [1] : vector<16x16xf32> to vector<16xf32>
    %267 = vector.shape_cast %266 : vector<16xf32> to vector<16x1xf32>
    %268 = tpu.reciprocal %267 {approx = true} : vector<16x1xf32> -> vector<16x1xf32>
    %269 = vector.broadcast %268 : vector<16x1xf32> to vector<16x16xf32>
    %270 = arith.mulf %265, %269 : vector<16x16xf32>
    %271 = vector.extract_strided_slice %237 {offsets = [0, 8], sizes = [16, 8], strides = [1, 1]} : vector<16x32xf32> to vector<16x8xf32>
    %cst_91 = arith.constant dense<0.000000e+00> : vector<16x8xf32>
    %272 = tpu.matmul %270, %271, %cst_91 {dimension_numbers = #tpu.dot_dimension_numbers<[1], [0], [0], [1], [0, 0, 1, 1], [], []>} : vector<16x16xf32>, vector<16x8xf32>, vector<16x8xf32> -> vector<16x8xf32>
    %273 = vector.extract_strided_slice %238 {offsets = [8, 0], sizes = [8, 32], strides = [1, 1]} : vector<32x32xf32> to vector<8x32xf32>
    %cst_92 = arith.constant dense<0.000000e+00> : vector<16x32xf32>
    %274 = tpu.matmul %272, %273, %cst_92 {dimension_numbers = #tpu.dot_dimension_numbers<[1], [0], [0], [1], [0, 0, 1, 1], [], []>} : vector<16x8xf32>, vector<8x32xf32>, vector<16x32xf32> -> vector<16x32xf32>
    %275 = arith.addf %256, %274 : vector<16x32xf32>
    %276 = vector.extract_strided_slice %225 {offsets = [0, 16], sizes = [16, 8], strides = [1, 1]} : vector<16x32xf32> to vector<16x8xf32>
    %277 = vector.extract_strided_slice %236 {offsets = [0, 16], sizes = [16, 8], strides = [1, 1]} : vector<16x32xf32> to vector<16x8xf32>
    %cst_93 = arith.constant dense<0.000000e+00> : vector<16x16xf32>
    %278 = tpu.matmul %276, %277, %cst_93 {dimension_numbers = #tpu.dot_dimension_numbers<[1], [1], [0], [0], [0, 0, 1, 0], [], []>} : vector<16x8xf32>, vector<16x8xf32>, vector<16x16xf32> -> vector<16x16xf32>
    %279 = arith.addf %278, %6 : vector<16x16xf32>
    %cst_94 = arith.constant dense<0xFF800000> : vector<16xf32>
    %280 = vector.multi_reduction <maximumf>, %279, %cst_94 [1] : vector<16x16xf32> to vector<16xf32>
    %281 = vector.shape_cast %280 : vector<16xf32> to vector<16x1xf32>
    %282 = vector.broadcast %281 : vector<16x1xf32> to vector<16x16xf32>
    %283 = arith.subf %279, %282 : vector<16x16xf32>
    %284 = math.exp %283 : vector<16x16xf32>
    %cst_95 = arith.constant dense<0.000000e+00> : vector<16xf32>
    %285 = vector.multi_reduction <add>, %284, %cst_95 [1] : vector<16x16xf32> to vector<16xf32>
    %286 = vector.shape_cast %285 : vector<16xf32> to vector<16x1xf32>
    %287 = tpu.reciprocal %286 {approx = true} : vector<16x1xf32> -> vector<16x1xf32>
    %288 = vector.broadcast %287 : vector<16x1xf32> to vector<16x16xf32>
    %289 = arith.mulf %284, %288 : vector<16x16xf32>
    %290 = vector.extract_strided_slice %237 {offsets = [0, 16], sizes = [16, 8], strides = [1, 1]} : vector<16x32xf32> to vector<16x8xf32>
    %cst_96 = arith.constant dense<0.000000e+00> : vector<16x8xf32>
    %291 = tpu.matmul %289, %290, %cst_96 {dimension_numbers = #tpu.dot_dimension_numbers<[1], [0], [0], [1], [0, 0, 1, 1], [], []>} : vector<16x16xf32>, vector<16x8xf32>, vector<16x8xf32> -> vector<16x8xf32>
    %292 = vector.extract_strided_slice %238 {offsets = [16, 0], sizes = [8, 32], strides = [1, 1]} : vector<32x32xf32> to vector<8x32xf32>
    %cst_97 = arith.constant dense<0.000000e+00> : vector<16x32xf32>
    %293 = tpu.matmul %291, %292, %cst_97 {dimension_numbers = #tpu.dot_dimension_numbers<[1], [0], [0], [1], [0, 0, 1, 1], [], []>} : vector<16x8xf32>, vector<8x32xf32>, vector<16x32xf32> -> vector<16x32xf32>
    %294 = arith.addf %275, %293 : vector<16x32xf32>
    %295 = vector.extract_strided_slice %225 {offsets = [0, 24], sizes = [16, 8], strides = [1, 1]} : vector<16x32xf32> to vector<16x8xf32>
    %296 = vector.extract_strided_slice %236 {offsets = [0, 24], sizes = [16, 8], strides = [1, 1]} : vector<16x32xf32> to vector<16x8xf32>
    %cst_98 = arith.constant dense<0.000000e+00> : vector<16x16xf32>
    %297 = tpu.matmul %295, %296, %cst_98 {dimension_numbers = #tpu.dot_dimension_numbers<[1], [1], [0], [0], [0, 0, 1, 0], [], []>} : vector<16x8xf32>, vector<16x8xf32>, vector<16x16xf32> -> vector<16x16xf32>
    %298 = arith.addf %297, %6 : vector<16x16xf32>
    %cst_99 = arith.constant dense<0xFF800000> : vector<16xf32>
    %299 = vector.multi_reduction <maximumf>, %298, %cst_99 [1] : vector<16x16xf32> to vector<16xf32>
    %300 = vector.shape_cast %299 : vector<16xf32> to vector<16x1xf32>
    %301 = vector.broadcast %300 : vector<16x1xf32> to vector<16x16xf32>
    %302 = arith.subf %298, %301 : vector<16x16xf32>
    %303 = math.exp %302 : vector<16x16xf32>
    %cst_100 = arith.constant dense<0.000000e+00> : vector<16xf32>
    %304 = vector.multi_reduction <add>, %303, %cst_100 [1] : vector<16x16xf32> to vector<16xf32>
    %305 = vector.shape_cast %304 : vector<16xf32> to vector<16x1xf32>
    %306 = tpu.reciprocal %305 {approx = true} : vector<16x1xf32> -> vector<16x1xf32>
    %307 = vector.broadcast %306 : vector<16x1xf32> to vector<16x16xf32>
    %308 = arith.mulf %303, %307 : vector<16x16xf32>
    %309 = vector.extract_strided_slice %237 {offsets = [0, 24], sizes = [16, 8], strides = [1, 1]} : vector<16x32xf32> to vector<16x8xf32>
    %cst_101 = arith.constant dense<0.000000e+00> : vector<16x8xf32>
    %310 = tpu.matmul %308, %309, %cst_101 {dimension_numbers = #tpu.dot_dimension_numbers<[1], [0], [0], [1], [0, 0, 1, 1], [], []>} : vector<16x16xf32>, vector<16x8xf32>, vector<16x8xf32> -> vector<16x8xf32>
    %311 = vector.extract_strided_slice %238 {offsets = [24, 0], sizes = [8, 32], strides = [1, 1]} : vector<32x32xf32> to vector<8x32xf32>
    %cst_102 = arith.constant dense<0.000000e+00> : vector<16x32xf32>
    %312 = tpu.matmul %310, %311, %cst_102 {dimension_numbers = #tpu.dot_dimension_numbers<[1], [0], [0], [1], [0, 0, 1, 1], [], []>} : vector<16x8xf32>, vector<8x32xf32>, vector<16x32xf32> -> vector<16x32xf32>
    %313 = arith.addf %294, %312 : vector<16x32xf32>
    %314 = arith.addf %183, %313 : vector<16x32xf32>
    %c696 = arith.constant 696 : index
    %c0_103 = arith.constant 0 : index
    %315 = vector.load %arg2[%c696, %c0_103] : memref<952x128xf32, #tpu.memory_space<vmem>>, vector<1x32xf32>
    %316 = vector.broadcast %315 : vector<1x32xf32> to vector<16x32xf32>
    %317 = arith.addf %314, %316 : vector<16x32xf32>
    %c704 = arith.constant 704 : index
    %c0_104 = arith.constant 0 : index
    %318 = vector.load %arg2[%c704, %c0_104] : memref<952x128xf32, #tpu.memory_space<vmem>>, vector<1x32xf32>
    %c712 = arith.constant 712 : index
    %c0_105 = arith.constant 0 : index
    %319 = vector.load %arg2[%c712, %c0_105] : memref<952x128xf32, #tpu.memory_space<vmem>>, vector<1x32xf32>
    %cst_106 = arith.constant dense<0.000000e+00> : vector<16xf32>
    %320 = vector.multi_reduction <add>, %317, %cst_106 [1] : vector<16x32xf32> to vector<16xf32>
    %321 = vector.shape_cast %320 : vector<16xf32> to vector<16x1xf32>
    %cst_107 = arith.constant 3.200000e+01 : f32
    %322 = vector.broadcast %cst_107 : f32 to vector<16x1xf32>
    %323 = arith.divf %321, %322 : vector<16x1xf32>
    %324 = vector.broadcast %323 : vector<16x1xf32> to vector<16x32xf32>
    %325 = arith.subf %317, %324 : vector<16x32xf32>
    %326 = arith.mulf %325, %325 : vector<16x32xf32>
    %cst_108 = arith.constant dense<0.000000e+00> : vector<16xf32>
    %327 = vector.multi_reduction <add>, %326, %cst_108 [1] : vector<16x32xf32> to vector<16xf32>
    %328 = vector.shape_cast %327 : vector<16xf32> to vector<16x1xf32>
    %cst_109 = arith.constant 3.200000e+01 : f32
    %329 = vector.broadcast %cst_109 : f32 to vector<16x1xf32>
    %330 = arith.divf %328, %329 : vector<16x1xf32>
    %331 = vector.broadcast %323 : vector<16x1xf32> to vector<16x32xf32>
    %332 = arith.subf %317, %331 : vector<16x32xf32>
    %cst_110 = arith.constant 9.99999997E-7 : f32
    %333 = vector.broadcast %cst_110 : f32 to vector<16x1xf32>
    %334 = arith.addf %330, %333 : vector<16x1xf32>
    %335 = math.rsqrt %334 : vector<16x1xf32>
    %336 = vector.broadcast %335 : vector<16x1xf32> to vector<16x32xf32>
    %337 = arith.mulf %332, %336 : vector<16x32xf32>
    %338 = vector.broadcast %318 : vector<1x32xf32> to vector<16x32xf32>
    %339 = arith.mulf %337, %338 : vector<16x32xf32>
    %340 = vector.broadcast %319 : vector<1x32xf32> to vector<16x32xf32>
    %341 = arith.addf %339, %340 : vector<16x32xf32>
    %c720 = arith.constant 720 : index
    %c0_111 = arith.constant 0 : index
    %342 = vector.load %arg2[%c720, %c0_111] : memref<952x128xf32, #tpu.memory_space<vmem>>, vector<32x128xf32>
    %cst_112 = arith.constant dense<0.000000e+00> : vector<16x128xf32>
    %343 = tpu.matmul %341, %342, %cst_112 {dimension_numbers = #tpu.dot_dimension_numbers<[1], [0], [0], [1], [0, 0, 1, 1], [], []>} : vector<16x32xf32>, vector<32x128xf32>, vector<16x128xf32> -> vector<16x128xf32>
    %c752 = arith.constant 752 : index
    %c0_113 = arith.constant 0 : index
    %344 = vector.load %arg2[%c752, %c0_113] : memref<952x128xf32, #tpu.memory_space<vmem>>, vector<1x128xf32>
    %345 = vector.broadcast %344 : vector<1x128xf32> to vector<16x128xf32>
    %346 = arith.addf %343, %345 : vector<16x128xf32>
    %cst_114 = arith.constant 5.000000e-01 : f32
    %347 = vector.broadcast %cst_114 : f32 to vector<16x128xf32>
    %348 = arith.mulf %347, %346 : vector<16x128xf32>
    %cst_115 = arith.constant 0.707106769 : f32
    %349 = vector.broadcast %cst_115 : f32 to vector<16x128xf32>
    %350 = arith.mulf %346, %349 : vector<16x128xf32>
    %351 = math.erf %350 : vector<16x128xf32>
    %cst_116 = arith.constant 1.000000e+00 : f32
    %352 = vector.broadcast %cst_116 : f32 to vector<16x128xf32>
    %353 = arith.addf %352, %351 : vector<16x128xf32>
    %354 = arith.mulf %348, %353 : vector<16x128xf32>
    %c760 = arith.constant 760 : index
    %c0_117 = arith.constant 0 : index
    %355 = vector.load %arg2[%c760, %c0_117] : memref<952x128xf32, #tpu.memory_space<vmem>>, vector<128x32xf32>
    %cst_118 = arith.constant dense<0.000000e+00> : vector<16x32xf32>
    %356 = tpu.matmul %354, %355, %cst_118 {dimension_numbers = #tpu.dot_dimension_numbers<[1], [0], [0], [1], [0, 0, 1, 1], [], []>} : vector<16x128xf32>, vector<128x32xf32>, vector<16x32xf32> -> vector<16x32xf32>
    %c888 = arith.constant 888 : index
    %c0_119 = arith.constant 0 : index
    %357 = vector.load %arg2[%c888, %c0_119] : memref<952x128xf32, #tpu.memory_space<vmem>>, vector<1x32xf32>
    %358 = vector.broadcast %357 : vector<1x32xf32> to vector<16x32xf32>
    %359 = arith.addf %356, %358 : vector<16x32xf32>
    %360 = arith.addf %317, %359 : vector<16x32xf32>
    %c896 = arith.constant 896 : index
    %c0_120 = arith.constant 0 : index
    %361 = vector.load %arg2[%c896, %c0_120] : memref<952x128xf32, #tpu.memory_space<vmem>>, vector<1x32xf32>
    %c904 = arith.constant 904 : index
    %c0_121 = arith.constant 0 : index
    %362 = vector.load %arg2[%c904, %c0_121] : memref<952x128xf32, #tpu.memory_space<vmem>>, vector<1x32xf32>
    %cst_122 = arith.constant dense<0.000000e+00> : vector<16xf32>
    %363 = vector.multi_reduction <add>, %360, %cst_122 [1] : vector<16x32xf32> to vector<16xf32>
    %364 = vector.shape_cast %363 : vector<16xf32> to vector<16x1xf32>
    %cst_123 = arith.constant 3.200000e+01 : f32
    %365 = vector.broadcast %cst_123 : f32 to vector<16x1xf32>
    %366 = arith.divf %364, %365 : vector<16x1xf32>
    %367 = vector.broadcast %366 : vector<16x1xf32> to vector<16x32xf32>
    %368 = arith.subf %360, %367 : vector<16x32xf32>
    %369 = arith.mulf %368, %368 : vector<16x32xf32>
    %cst_124 = arith.constant dense<0.000000e+00> : vector<16xf32>
    %370 = vector.multi_reduction <add>, %369, %cst_124 [1] : vector<16x32xf32> to vector<16xf32>
    %371 = vector.shape_cast %370 : vector<16xf32> to vector<16x1xf32>
    %cst_125 = arith.constant 3.200000e+01 : f32
    %372 = vector.broadcast %cst_125 : f32 to vector<16x1xf32>
    %373 = arith.divf %371, %372 : vector<16x1xf32>
    %374 = vector.broadcast %366 : vector<16x1xf32> to vector<16x32xf32>
    %375 = arith.subf %360, %374 : vector<16x32xf32>
    %cst_126 = arith.constant 9.99999997E-7 : f32
    %376 = vector.broadcast %cst_126 : f32 to vector<16x1xf32>
    %377 = arith.addf %373, %376 : vector<16x1xf32>
    %378 = math.rsqrt %377 : vector<16x1xf32>
    %379 = vector.broadcast %378 : vector<16x1xf32> to vector<16x32xf32>
    %380 = arith.mulf %375, %379 : vector<16x32xf32>
    %381 = vector.broadcast %361 : vector<1x32xf32> to vector<16x32xf32>
    %382 = arith.mulf %380, %381 : vector<16x32xf32>
    %383 = vector.broadcast %362 : vector<1x32xf32> to vector<16x32xf32>
    %384 = arith.addf %382, %383 : vector<16x32xf32>
    %c912 = arith.constant 912 : index
    %c0_127 = arith.constant 0 : index
    %385 = vector.load %arg2[%c912, %c0_127] : memref<952x128xf32, #tpu.memory_space<vmem>>, vector<32x128xf32>
    %cst_128 = arith.constant dense<0.000000e+00> : vector<16x128xf32>
    %386 = tpu.matmul %384, %385, %cst_128 {dimension_numbers = #tpu.dot_dimension_numbers<[1], [0], [0], [1], [0, 0, 1, 1], [], []>} : vector<16x32xf32>, vector<32x128xf32>, vector<16x128xf32> -> vector<16x128xf32>
    %c944 = arith.constant 944 : index
    %c0_129 = arith.constant 0 : index
    %387 = vector.load %arg2[%c944, %c0_129] : memref<952x128xf32, #tpu.memory_space<vmem>>, vector<1x128xf32>
    %388 = vector.broadcast %387 : vector<1x128xf32> to vector<16x128xf32>
    %389 = arith.addf %386, %388 : vector<16x128xf32>
    %c0_130 = arith.constant 0 : index
    %c0_131 = arith.constant 0 : index
    %390 = vector.load %arg3[%c0_130, %c0_131] : memref<16x128xf32, #tpu.memory_space<vmem>>, vector<16x128xf32>
    tpu.vector_store %arg3[%c0_130, %c0_131], %389 {strides = array<i32>} : memref<16x128xf32, #tpu.memory_space<vmem>>, vector<16x128xf32>,
    return
  }
  func.func @transform_0(%arg0: i32) -> (i32, i32) {
    %c0_i32 = arith.constant 0 : i32
    %c0_i32_0 = arith.constant 0 : i32
    return %arg0, %c0_i32 : i32, i32
  }
  func.func @transform_1(%arg0: i32) -> (i32, i32) {
    %c0_i32 = arith.constant 0 : i32
    %c0_i32_0 = arith.constant 0 : i32
    %c0_i32_1 = arith.constant 0 : i32
    return %c0_i32, %c0_i32_0 : i32, i32
  }
  func.func @transform_2(%arg0: i32) -> (i32, i32) {
    %c0_i32 = arith.constant 0 : i32
    %c0_i32_0 = arith.constant 0 : i32
    return %arg0, %c0_i32 : i32, i32
  }
}

</mosaic_0001>

<llo_original>
// kernel: fwd.1
$region0: #{fwd.1}
  #allocation0 [shape = 'u32[]', space=smem, size = 0x4, offset = 0x4, fixed_abs, tag = 'smem constant byte address 0x4 - core index']
  #allocation1 [shape = 'u32[144,128]{1,0:T(1,128)}', space=vmem, size = 0x12000, scoped, tag = 'internal scratch']
  %s0 = inlined_call_operand.vmem [shape: f32[16,256], index: 0, kind: input, shape index: {}]
  %s1 = inlined_call_operand.vmem [shape: f32[952,128], index: 1, kind: input, shape index: {}]
  %s2 = inlined_call_operand.vmem [shape: f32[16,128], index: 2, kind: output, shape index: {}]
  %s3 = sld [smem:[#allocation0]]
  $region18: #{fwd.1} parent=0
    _
  %s5 = ssub.s32 1, %s3
  %s6 = scalar_select 0, %s5, %s3
  // Predicated region
  $region2: #{fwd.1} parent=0 // pred_check
    _
  $region3: #{fwd.1} parent=0 // pred_check_branch
    %8 = sbr.rel (0) target = $region5
  $region4: #{fwd.1} parent=0 // pred_region
    _
  $region5: #{fwd.1} parent=0 // pred_fallthru
    _
  // Predicated region
  $region6: #{fwd.1} parent=0 // pred_check
    _
  $region7: #{fwd.1} parent=0 // pred_check_branch
    %10 = sbr.rel (0) target = $region9
  $region8: #{fwd.1} parent=0 // pred_region
    _
  $region9: #{fwd.1} parent=0 // pred_fallthru
    _
  %v11 = vld [vmem:[%s1 + $0x120] sm:$0xff]
  %v12 = vld [vmem:[%s1 + $0x128] sm:$0xff]
  %v13 = vld [vmem:[%s1 + $0x130] sm:$0xff]
  %v14 = vld [vmem:[%s1 + $0x138] sm:$0xff]
  %v15 = vld [vmem:[%s0] sm:$0xff]
  %v16 = vld [vmem:[%s0 + $0x8] sm:$0xff]
  %v17 = vld [vmem:[%s0 + $0x10] sm:$0xff]
  %v18 = vld [vmem:[%s0 + $0x18] sm:$0xff]
  %v19 = vld [vmem:[%s1] sm:$0xff]
  %v20 = vld [vmem:[%s1 + $0x8] sm:$0xff]
  %v21 = vld [vmem:[%s1 + $0x10] sm:$0xff]
  %v22 = vld [vmem:[%s1 + $0x18] sm:$0xff]
  %v23 = vld [vmem:[%s1 + $0x20] sm:$0xff]
  %v24 = vld [vmem:[%s1 + $0x28] sm:$0xff]
  %v25 = vld [vmem:[%s1 + $0x30] sm:$0xff]
  %v26 = vld [vmem:[%s1 + $0x38] sm:$0xff]
  %v27 = vld [vmem:[%s1 + $0x40] sm:$0xff]
  %v28 = vld [vmem:[%s1 + $0x48] sm:$0xff]
  %v29 = vld [vmem:[%s1 + $0x50] sm:$0xff]
  %v30 = vld [vmem:[%s1 + $0x58] sm:$0xff]
  %v31 = vld [vmem:[%s1 + $0x60] sm:$0xff]
  %v32 = vld [vmem:[%s1 + $0x68] sm:$0xff]
  %v33 = vld [vmem:[%s1 + $0x70] sm:$0xff]
  %v34 = vld [vmem:[%s1 + $0x78] sm:$0xff]
  %v35 = vld [vmem:[%s1 + $0x80] sm:$0xff]
  %v36 = vld [vmem:[%s1 + $0x88] sm:$0xff]
  %v37 = vld [vmem:[%s1 + $0x90] sm:$0xff]
  %v38 = vld [vmem:[%s1 + $0x98] sm:$0xff]
  %v39 = vld [vmem:[%s1 + $0xa0] sm:$0xff]
  %v40 = vld [vmem:[%s1 + $0xa8] sm:$0xff]
  %v41 = vld [vmem:[%s1 + $0xb0] sm:$0xff]
  %v42 = vld [vmem:[%s1 + $0xb8] sm:$0xff]
  %v43 = vld [vmem:[%s1 + $0xc0] sm:$0xff]
  %v44 = vld [vmem:[%s1 + $0xc8] sm:$0xff]
  %v45 = vld [vmem:[%s1 + $0xd0] sm:$0xff]
  %v46 = vld [vmem:[%s1 + $0xd8] sm:$0xff]
  %v47 = vld [vmem:[%s1 + $0xe0] sm:$0xff]
  %v48 = vld [vmem:[%s1 + $0xe8] sm:$0xff]
  %v49 = vld [vmem:[%s1 + $0xf0] sm:$0xff]
  %v50 = vld [vmem:[%s1 + $0xf8] sm:$0xff]
  %v51 = vld [vmem:[%s1 + $0x100] sm:$0xff]
  %v52 = vld [vmem:[%s1 + $0x108] sm:$0xff]
  %53 = vmatprep.subr.mxu0 0.0
  %54 = vmatpush1.msra.mxu0 %v19
  %55 = vmatprep.subr.mxu0 0.0
  %56 = vmatpush1.msra.mxu0 %v20
  %57 = vmatprep.subr.mxu0 0.0
  %58 = vmatpush1.msra.mxu0 %v21
  %59 = vmatprep.subr.mxu0 0.0
  %60 = vmatpush1.msra.mxu0 %v22
  %61 = vmatprep.subr.mxu0 0.0
  %62 = vmatpush1.msra.mxu0 %v23
  %63 = vmatprep.subr.mxu0 0.0
  %64 = vmatpush1.msra.mxu0 %v24
  %65 = vmatprep.subr.mxu0 0.0
  %66 = vmatpush1.msra.mxu0 %v25
  %67 = vmatprep.subr.mxu0 0.0
  %68 = vmatpush1.msra.mxu0 %v26
  %69 = vmatprep.subr.mxu0 0.0
  %70 = vmatpush1.msra.mxu0 %v27
  %71 = vmatprep.subr.mxu0 0.0
  %72 = vmatpush1.msra.mxu0 %v28
  %73 = vmatprep.subr.mxu0 0.0
  %74 = vmatpush1.msra.mxu0 %v29
  %75 = vmatprep.subr.mxu0 0.0
  %76 = vmatpush1.msra.mxu0 %v30
  %77 = vmatprep.subr.mxu0 0.0
  %78 = vmatpush1.msra.mxu0 %v31
  %79 = vmatprep.subr.mxu0 0.0
  %80 = vmatpush1.msra.mxu0 %v32
  %81 = vmatprep.subr.mxu0 0.0
  %82 = vmatpush1.msra.mxu0 %v33
  %83 = vmatprep.subr.mxu0 0.0
  %84 = vmatpush1.msra.mxu0 %v34
  %85 = vmatprep.subr.mxu0 0.0
  %86 = vmatpush1.msra.mxu0 %v35
  %87 = vmatprep.subr.mxu0 0.0
  %88 = vmatpush1.msra.mxu0 %v36
  %89 = vmatprep.subr.mxu0 0.0
  %90 = vmatpush1.msra.mxu0 %v37
  %91 = vmatprep.subr.mxu0 0.0
  %92 = vmatpush1.msra.mxu0 %v38
  %93 = vmatprep.subr.mxu0 0.0
  %94 = vmatpush1.msra.mxu0 %v39
  %95 = vmatprep.subr.mxu0 0.0
  %96 = vmatpush1.msra.mxu0 %v40
  %97 = vmatprep.subr.mxu0 0.0
  %98 = vmatpush1.msra.mxu0 %v41
  %99 = vmatprep.subr.mxu0 0.0
  %100 = vmatpush1.msra.mxu0 %v42
  %101 = vmatprep.subr.mxu0 0.0
  %102 = vmatpush1.msra.mxu0 %v43
  %103 = vmatprep.subr.mxu0 0.0
  %104 = vmatpush1.msra.mxu0 %v44
  %105 = vmatprep.subr.mxu0 0.0
  %106 = vmatpush1.msra.mxu0 %v45
  %107 = vmatprep.subr.mxu0 0.0
  %108 = vmatpush1.msra.mxu0 %v46
  %109 = vmatprep.subr.mxu0 0.0
  %110 = vmatpush1.msra.mxu0 %v47
  %111 = vmatprep.subr.mxu0 0.0
  %112 = vmatpush1.msra.mxu0 %v48
  %113 = vmatprep.subr.mxu0 0.0
  %114 = vmatpush1.msra.mxu0 %v49
  %115 = vmatprep.subr.mxu0 0.0
  %116 = vmatpush1.msra.mxu0 %v50
  %117 = vmatprep.mubr.f32.mxu0 %v16
  %118 = vmatmul.mubr.f32.gmra.mrb[0].mxu0 %v15
  %v119 = vpop.f32.mrb[0].mxu0
  %v120 = vadd.f32 %v51, %v119
  %v121 = vpop.f32.mrb[0].mxu0
  %122 = vmatprep.mubr.f32.mxu0 %v18
  %123 = vmatmul.mubr.f32.gmra.mrb[0].mxu0 %v17
  %v124 = vpop.f32.mrb[0].mxu0
  %v125 = vadd.f32 %v52, %v124
  %v126 = vpop.f32.mrb[0].mxu0
  %127 = vdwg.mxu0
  %v128 = vld [vmem:[%s1 + $0x110] sm:$0xff]
  %v129 = vld [vmem:[%s1 + $0x118] sm:$0xff]
  %v130 = vld [vmem:[%s1 + $0x140] sm:$0x1]
  %v131 = vld [vmem:[%s1 + $0x148] sm:$0x1]
  %vm132 = vcmask 261120
  %v133 = vsel %vm132, %v120, 0.0
  %134 = vadd.xlane.f32.xlu0 %v133
  %v135 = vpop.xlane.xlu0 %134
  %v136 = vsel %vm132, %v125, 0.0
  %137 = vadd.xlane.f32.xlu0 %v136
  %v138 = vpop.xlane.xlu0 %137
  %v139 = vrcp.pop 32.0
  %v140 = vmul.f32 %v135, %v139
  %v141 = vmul.f32 %v138, %v139
  %v142 = vsub.f32 %v120, %v140
  %v143 = vsub.f32 %v125, %v141
  %v144 = vmul.f32 %v142, %v142
  %v145 = vmul.f32 %v143, %v143
  %v146 = vsel %vm132, %v144, 0.0
  %147 = vadd.xlane.f32.xlu0 %v146
  %v148 = vpop.xlane.xlu0 %147
  %v149 = vsel %vm132, %v145, 0.0
  %150 = vadd.xlane.f32.xlu0 %v149
  %v151 = vpop.xlane.xlu0 %150
  %v152 = vmul.f32 %v148, %v139
  %v153 = vmul.f32 %v151, %v139
  %v154 = vadd.f32 %v152, 1e-06
  %v155 = vadd.f32 %v153, 1e-06
  %v156 = vrsqrt.pop %v154
  %v157 = vrsqrt.pop %v155
  %v158 = vmul.f32 %v142, %v156
  %v159 = vmul.f32 %v143, %v157
  %v160 = vlaneseq
  %v161 = vshrl.u32 %v160, 7
  %v162 = vsub.s32 0, %v161
  %v163 = vrot.slane %v130, %v162
  %v164 = vmul.f32 %v158, %v163
  %v165 = vmul.f32 %v159, %v163
  %v166 = vlaneseq
  %v167 = vshrl.u32 %v166, 7
  %v168 = vsub.s32 0, %v167
  %v169 = vrot.slane %v131, %v168
  %v170 = vadd.f32 %v164, %v169
  %v171 = vadd.f32 %v165, %v169
  %v172 = vld [vmem:[%s1 + $0x150] sm:$0xff]
  %v173 = vld [vmem:[%s1 + $0x158] sm:$0xff]
  %v174 = vld [vmem:[%s1 + $0x160] sm:$0xff]
  %v175 = vld [vmem:[%s1 + $0x168] sm:$0xff]
  %v176 = vld [vmem:[%s1 + $0x170] sm:$0x1]
  %v177 = vlaneseq
  %v178 = vshrl.u32 %v177, 7
  %v179 = vsub.s32 0, %v178
  %v180 = vrot.slane %v176, %v179
  %v182 = vsel %vm132, %v170, 0
  %v185 = vsel %vm132, %v171, 0
  %187 = vmatprep.subr.mxu0 0.0
  %188 = vmatpush1.msra.mxu0 %v172
  %189 = vmatprep.subr.mxu0 0.0
  %190 = vmatpush1.msra.mxu0 %v173
  %191 = vmatprep.subr.mxu0 0.0
  %192 = vmatpush1.msra.mxu0 %v174
  %193 = vmatprep.subr.mxu0 0.0
  %194 = vmatpush1.msra.mxu0 %v175
  %195 = vmatprep.subr.mxu0 0.0
  %196 = vmatpush1.msra.mxu0 0.0
  %197 = vmatprep.subr.mxu0 0.0
  %198 = vmatpush1.msra.mxu0 0.0
  %199 = vmatprep.subr.mxu0 0.0
  %200 = vmatpush1.msra.mxu0 0.0
  %201 = vmatprep.subr.mxu0 0.0
  %202 = vmatpush1.msra.mxu0 0.0
  %203 = vmatprep.subr.mxu0 0.0
  %204 = vmatpush1.msra.mxu0 0.0
  %205 = vmatprep.subr.mxu0 0.0
  %206 = vmatpush1.msra.mxu0 0.0
  %207 = vmatprep.subr.mxu0 0.0
  %208 = vmatpush1.msra.mxu0 0.0
  %209 = vmatprep.subr.mxu0 0.0
  %210 = vmatpush1.msra.mxu0 0.0
  %211 = vmatprep.subr.mxu0 0.0
  %212 = vmatpush1.msra.mxu0 0.0
  %213 = vmatprep.subr.mxu0 0.0
  %214 = vmatpush1.msra.mxu0 0.0
  %215 = vmatprep.subr.mxu0 0.0
  %216 = vmatpush1.msra.mxu0 0.0
  %217 = vmatprep.subr.mxu0 0.0
  %218 = vmatpush1.msra.mxu0 0.0
  %219 = vmatprep.subr.mxu0 0.0
  %220 = vmatpush1.msra.mxu0 0.0
  %221 = vmatprep.subr.mxu0 0.0
  %222 = vmatpush1.msra.mxu0 0.0
  %223 = vmatprep.subr.mxu0 0.0
  %224 = vmatpush1.msra.mxu0 0.0
  %225 = vmatprep.subr.mxu0 0.0
  %226 = vmatpush1.msra.mxu0 0.0
  %227 = vmatprep.subr.mxu0 0.0
  %228 = vmatpush1.msra.mxu0 0.0
  %229 = vmatprep.subr.mxu0 0.0
  %230 = vmatpush1.msra.mxu0 0.0
  %231 = vmatprep.subr.mxu0 0.0
  %232 = vmatpush1.msra.mxu0 0.0
  %233 = vmatprep.subr.mxu0 0.0
  %234 = vmatpush1.msra.mxu0 0.0
  %235 = vmatprep.subr.mxu0 0.0
  %236 = vmatpush1.msra.mxu0 0.0
  %237 = vmatprep.subr.mxu0 0.0
  %238 = vmatpush1.msra.mxu0 0.0
  %239 = vmatprep.subr.mxu0 0.0
  %240 = vmatpush1.msra.mxu0 0.0
  %241 = vmatprep.subr.mxu0 0.0
  %242 = vmatpush1.msra.mxu0 0.0
  %243 = vmatprep.subr.mxu0 0.0
  %244 = vmatpush1.msra.mxu0 0.0
  %245 = vmatprep.subr.mxu0 0.0
  %246 = vmatpush1.msra.mxu0 0.0
  %247 = vmatprep.subr.mxu0 0.0
  %248 = vmatpush1.msra.mxu0 0.0
  %249 = vmatprep.subr.mxu0 0.0
  %250 = vmatpush1.msra.mxu0 0.0
  %251 = vmatprep.mubr.f32.mxu0 0.0
  %252 = vmatmul.mubr.f32.gmra.mrb[0].mxu0 %v182
  %v253 = vpop.f32.mrb[0].mxu0
  %v254 = vadd.f32 %v180, %v253
  %v255 = vpop.f32.mrb[0].mxu0
  %256 = vmatprep.mubr.f32.mxu0 0.0
  %257 = vmatmul.mubr.f32.gmra.mrb[0].mxu0 %v185
  %v258 = vpop.f32.mrb[0].mxu0
  %v259 = vadd.f32 %v180, %v258
  %v260 = vpop.f32.mrb[0].mxu0
  %261 = vdwg.mxu0
  %v263 = vsel %vm132, %v254, 0
  %v266 = vsel %vm132, %v259, 0
  %268 = vmatprep.subr.mxu0 0.0
  %269 = vmatpush1.msra.mxu0 %v11
  %270 = vmatprep.subr.mxu0 0.0
  %271 = vmatpush1.msra.mxu0 %v12
  %272 = vmatprep.subr.mxu0 0.0
  %273 = vmatpush1.msra.mxu0 %v13
  %274 = vmatprep.subr.mxu0 0.0
  %275 = vmatpush1.msra.mxu0 %v14
  %276 = vmatprep.subr.mxu0 0.0
  %277 = vmatpush1.msra.mxu0 0.0
  %278 = vmatprep.subr.mxu0 0.0
  %279 = vmatpush1.msra.mxu0 0.0
  %280 = vmatprep.subr.mxu0 0.0
  %281 = vmatpush1.msra.mxu0 0.0
  %282 = vmatprep.subr.mxu0 0.0
  %283 = vmatpush1.msra.mxu0 0.0
  %284 = vmatprep.subr.mxu0 0.0
  %285 = vmatpush1.msra.mxu0 0.0
  %286 = vmatprep.subr.mxu0 0.0
  %287 = vmatpush1.msra.mxu0 0.0
  %288 = vmatprep.subr.mxu0 0.0
  %289 = vmatpush1.msra.mxu0 0.0
  %290 = vmatprep.subr.mxu0 0.0
  %291 = vmatpush1.msra.mxu0 0.0
  %292 = vmatprep.subr.mxu0 0.0
  %293 = vmatpush1.msra.mxu0 0.0
  %294 = vmatprep.subr.mxu0 0.0
  %295 = vmatpush1.msra.mxu0 0.0
  %296 = vmatprep.subr.mxu0 0.0
  %297 = vmatpush1.msra.mxu0 0.0
  %298 = vmatprep.subr.mxu0 0.0
  %299 = vmatpush1.msra.mxu0 0.0
  %300 = vmatprep.subr.mxu0 0.0
  %301 = vmatpush1.msra.mxu0 0.0
  %302 = vmatprep.subr.mxu0 0.0
  %303 = vmatpush1.msra.mxu0 0.0
  %304 = vmatprep.subr.mxu0 0.0
  %305 = vmatpush1.msra.mxu0 0.0
  %306 = vmatprep.subr.mxu0 0.0
  %307 = vmatpush1.msra.mxu0 0.0
  %308 = vmatprep.subr.mxu0 0.0
  %309 = vmatpush1.msra.mxu0 0.0
  %310 = vmatprep.subr.mxu0 0.0
  %311 = vmatpush1.msra.mxu0 0.0
  %312 = vmatprep.subr.mxu0 0.0
  %313 = vmatpush1.msra.mxu0 0.0
  %314 = vmatprep.subr.mxu0 0.0
  %315 = vmatpush1.msra.mxu0 0.0
  %316 = vmatprep.subr.mxu0 0.0
  %317 = vmatpush1.msra.mxu0 0.0
  %318 = vmatprep.subr.mxu0 0.0
  %319 = vmatpush1.msra.mxu0 0.0
  %320 = vmatprep.subr.mxu0 0.0
  %321 = vmatpush1.msra.mxu0 0.0
  %322 = vmatprep.subr.mxu0 0.0
  %323 = vmatpush1.msra.mxu0 0.0
  %324 = vmatprep.subr.mxu0 0.0
  %325 = vmatpush1.msra.mxu0 0.0
  %326 = vmatprep.subr.mxu0 0.0
  %327 = vmatpush1.msra.mxu0 0.0
  %328 = vmatprep.subr.mxu0 0.0
  %329 = vmatpush1.msra.mxu0 0.0
  %330 = vmatprep.subr.mxu0 0.0
  %331 = vmatpush1.msra.mxu0 0.0
  %332 = vmatprep.mubr.f32.mxu0 0.0
  %333 = vmatmul.mubr.f32.gmra.mrb[0].mxu0 %v263
  %v334 = vpop.f32.mrb[0].mxu0
  %v335 = vadd.f32 0.0, %v334
  %v336 = vpop.f32.mrb[0].mxu0
  %337 = vmatprep.mubr.f32.mxu0 0.0
  %338 = vmatmul.mubr.f32.gmra.mrb[0].mxu0 %v266
  %v339 = vpop.f32.mrb[0].mxu0
  %v340 = vadd.f32 0.0, %v339
  %v341 = vpop.f32.mrb[0].mxu0
  %342 = vdwg.mxu0
  %v343 = vsub.f32 %v254, %v335
  %v344 = vsub.f32 %v259, %v340
  %v345 = vmul.f32 %v343, %v343
  %v346 = vmul.f32 %v344, %v344
  %v348 = vsel %vm132, %v345, 0
  %v351 = vsel %vm132, %v346, 0
  %353 = vmatprep.subr.mxu0 0.0
  %354 = vmatpush1.msra.mxu0 %v11
  %355 = vmatprep.subr.mxu0 0.0
  %356 = vmatpush1.msra.mxu0 %v12
  %357 = vmatprep.subr.mxu0 0.0
  %358 = vmatpush1.msra.mxu0 %v13
  %359 = vmatprep.subr.mxu0 0.0
  %360 = vmatpush1.msra.mxu0 %v14
  %361 = vmatprep.subr.mxu0 0.0
  %362 = vmatpush1.msra.mxu0 0.0
  %363 = vmatprep.subr.mxu0 0.0
  %364 = vmatpush1.msra.mxu0 0.0
  %365 = vmatprep.subr.mxu0 0.0
  %366 = vmatpush1.msra.mxu0 0.0
  %367 = vmatprep.subr.mxu0 0.0
  %368 = vmatpush1.msra.mxu0 0.0
  %369 = vmatprep.subr.mxu0 0.0
  %370 = vmatpush1.msra.mxu0 0.0
  %371 = vmatprep.subr.mxu0 0.0
  %372 = vmatpush1.msra.mxu0 0.0
  %373 = vmatprep.subr.mxu0 0.0
  %374 = vmatpush1.msra.mxu0 0.0
  %375 = vmatprep.subr.mxu0 0.0
  %376 = vmatpush1.msra.mxu0 0.0
  %377 = vmatprep.subr.mxu0 0.0
  %378 = vmatpush1.msra.mxu0 0.0
  %379 = vmatprep.subr.mxu0 0.0
  %380 = vmatpush1.msra.mxu0 0.0
  %381 = vmatprep.subr.mxu0 0.0
  %382 = vmatpush1.msra.mxu0 0.0
  %383 = vmatprep.subr.mxu0 0.0
  %384 = vmatpush1.msra.mxu0 0.0
  %385 = vmatprep.subr.mxu0 0.0
  %386 = vmatpush1.msra.mxu0 0.0
  %387 = vmatprep.subr.mxu0 0.0
  %388 = vmatpush1.msra.mxu0 0.0
  %389 = vmatprep.subr.mxu0 0.0
  %390 = vmatpush1.msra.mxu0 0.0
  %391 = vmatprep.subr.mxu0 0.0
  %392 = vmatpush1.msra.mxu0 0.0
  %393 = vmatprep.subr.mxu0 0.0
  %394 = vmatpush1.msra.mxu0 0.0
  %395 = vmatprep.subr.mxu0 0.0
  %396 = vmatpush1.msra.mxu0 0.0
  %397 = vmatprep.subr.mxu0 0.0
  %398 = vmatpush1.msra.mxu0 0.0
  %399 = vmatprep.subr.mxu0 0.0
  %400 = vmatpush1.msra.mxu0 0.0
  %401 = vmatprep.subr.mxu0 0.0
  %402 = vmatpush1.msra.mxu0 0.0
  %403 = vmatprep.subr.mxu0 0.0
  %404 = vmatpush1.msra.mxu0 0.0
  %405 = vmatprep.subr.mxu0 0.0
  %406 = vmatpush1.msra.mxu0 0.0
  %407 = vmatprep.subr.mxu0 0.0
  %408 = vmatpush1.msra.mxu0 0.0
  %409 = vmatprep.subr.mxu0 0.0
  %410 = vmatpush1.msra.mxu0 0.0
  %411 = vmatprep.subr.mxu0 0.0
  %412 = vmatpush1.msra.mxu0 0.0
  %413 = vmatprep.subr.mxu0 0.0
  %414 = vmatpush1.msra.mxu0 0.0
  %415 = vmatprep.subr.mxu0 0.0
  %416 = vmatpush1.msra.mxu0 0.0
  %417 = vmatprep.mubr.f32.mxu0 0.0
  %418 = vmatmul.mubr.f32.gmra.mrb[0].mxu0 %v348
  %v419 = vpop.f32.mrb[0].mxu0
  %v420 = vadd.f32 0.0, %v419
  %v421 = vpop.f32.mrb[0].mxu0
  %422 = vmatprep.mubr.f32.mxu0 0.0
  %423 = vmatmul.mubr.f32.gmra.mrb[0].mxu0 %v351
  %v424 = vpop.f32.mrb[0].mxu0
  %v425 = vadd.f32 0.0, %v424
  %v426 = vpop.f32.mrb[0].mxu0
  %427 = vdwg.mxu0
  %v428 = vmul.f32 %v420, 1.1428572
  %v429 = vmul.f32 %v425, 1.1428572
  %v430 = vmax.f32 %v428, 1e-12
  %v431 = vmax.f32 %v429, 1e-12
  %v432 = vrsqrt.pop %v430
  %v433 = vrsqrt.pop %v431
  %v434 = vmul.f32 %v343, %v432
  %v435 = vmul.f32 %v344, %v433
  %v436 = vmul.f32 %v434, 0.35355338
  %v437 = vmul.f32 %v435, 0.35355338
  %438 = vrot.lane.b32.xlu0 %v254, 96
  %v439 = vpop.permute.xlu0 %438
  %440 = vrot.lane.b32.xlu0 %v259, 96
  %v441 = vpop.permute.xlu0 %440
  %v442 = vsel %vm132, %v439, 0
  %v444 = vsel %vm132, %v441, 0
  %446 = vmatprep.subr.mxu0 0.0
  %447 = vmatpush1.msra.mxu0 %v11
  %448 = vmatprep.subr.mxu0 0.0
  %449 = vmatpush1.msra.mxu0 %v12
  %450 = vmatprep.subr.mxu0 0.0
  %451 = vmatpush1.msra.mxu0 %v13
  %452 = vmatprep.subr.mxu0 0.0
  %453 = vmatpush1.msra.mxu0 %v14
  %454 = vmatprep.subr.mxu0 0.0
  %455 = vmatpush1.msra.mxu0 0.0
  %456 = vmatprep.subr.mxu0 0.0
  %457 = vmatpush1.msra.mxu0 0.0
  %458 = vmatprep.subr.mxu0 0.0
  %459 = vmatpush1.msra.mxu0 0.0
  %460 = vmatprep.subr.mxu0 0.0
  %461 = vmatpush1.msra.mxu0 0.0
  %462 = vmatprep.subr.mxu0 0.0
  %463 = vmatpush1.msra.mxu0 0.0
  %464 = vmatprep.subr.mxu0 0.0
  %465 = vmatpush1.msra.mxu0 0.0
  %466 = vmatprep.subr.mxu0 0.0
  %467 = vmatpush1.msra.mxu0 0.0
  %468 = vmatprep.subr.mxu0 0.0
  %469 = vmatpush1.msra.mxu0 0.0
  %470 = vmatprep.subr.mxu0 0.0
  %471 = vmatpush1.msra.mxu0 0.0
  %472 = vmatprep.subr.mxu0 0.0
  %473 = vmatpush1.msra.mxu0 0.0
  %474 = vmatprep.subr.mxu0 0.0
  %475 = vmatpush1.msra.mxu0 0.0
  %476 = vmatprep.subr.mxu0 0.0
  %477 = vmatpush1.msra.mxu0 0.0
  %478 = vmatprep.subr.mxu0 0.0
  %479 = vmatpush1.msra.mxu0 0.0
  %480 = vmatprep.subr.mxu0 0.0
  %481 = vmatpush1.msra.mxu0 0.0
  %482 = vmatprep.subr.mxu0 0.0
  %483 = vmatpush1.msra.mxu0 0.0
  %484 = vmatprep.subr.mxu0 0.0
  %485 = vmatpush1.msra.mxu0 0.0
  %486 = vmatprep.subr.mxu0 0.0
  %487 = vmatpush1.msra.mxu0 0.0
  %488 = vmatprep.subr.mxu0 0.0
  %489 = vmatpush1.msra.mxu0 0.0
  %490 = vmatprep.subr.mxu0 0.0
  %491 = vmatpush1.msra.mxu0 0.0
  %492 = vmatprep.subr.mxu0 0.0
  %493 = vmatpush1.msra.mxu0 0.0
  %494 = vmatprep.subr.mxu0 0.0
  %495 = vmatpush1.msra.mxu0 0.0
  %496 = vmatprep.subr.mxu0 0.0
  %497 = vmatpush1.msra.mxu0 0.0
  %498 = vmatprep.subr.mxu0 0.0
  %499 = vmatpush1.msra.mxu0 0.0
  %500 = vmatprep.subr.mxu0 0.0
  %501 = vmatpush1.msra.mxu0 0.0
  %502 = vmatprep.subr.mxu0 0.0
  %503 = vmatpush1.msra.mxu0 0.0
  %504 = vmatprep.subr.mxu0 0.0
  %505 = vmatpush1.msra.mxu0 0.0
  %506 = vmatprep.subr.mxu0 0.0
  %507 = vmatpush1.msra.mxu0 0.0
  %508 = vmatprep.subr.mxu0 0.0
  %509 = vmatpush1.msra.mxu0 0.0
  %510 = vmatprep.mubr.f32.mxu0 0.0
  %511 = vmatmul.mubr.f32.gmra.mrb[0].mxu0 %v442
  %v512 = vpop.f32.mrb[0].mxu0
  %v513 = vadd.f32 0.0, %v512
  %v514 = vpop.f32.mrb[0].mxu0
  %515 = vmatprep.mubr.f32.mxu0 0.0
  %516 = vmatmul.mubr.f32.gmra.mrb[0].mxu0 %v444
  %v517 = vpop.f32.mrb[0].mxu0
  %v518 = vadd.f32 0.0, %v517
  %v519 = vpop.f32.mrb[0].mxu0
  %520 = vdwg.mxu0
  %523 = vrot.lane.b32.xlu0 %v513, 32
  %v524 = vpop.permute.xlu0 %523
  %525 = vrot.lane.b32.xlu0 %v518, 32
  %v526 = vpop.permute.xlu0 %525
  %v529 = vsub.f32 %v254, %v524
  %v530 = vsub.f32 %v259, %v526
  %v531 = vmul.f32 %v529, %v529
  %v532 = vmul.f32 %v530, %v530
  %535 = vrot.lane.b32.xlu0 %v531, 96
  %v536 = vpop.permute.xlu0 %535
  %537 = vrot.lane.b32.xlu0 %v532, 96
  %v538 = vpop.permute.xlu0 %537
  %v539 = vsel %vm132, %v536, 0
  %v541 = vsel %vm132, %v538, 0
  %543 = vmatprep.subr.mxu0 0.0
  %544 = vmatpush1.msra.mxu0 %v11
  %545 = vmatprep.subr.mxu0 0.0
  %546 = vmatpush1.msra.mxu0 %v12
  %547 = vmatprep.subr.mxu0 0.0
  %548 = vmatpush1.msra.mxu0 %v13
  %549 = vmatprep.subr.mxu0 0.0
  %550 = vmatpush1.msra.mxu0 %v14
  %551 = vmatprep.subr.mxu0 0.0
  %552 = vmatpush1.msra.mxu0 0.0
  %553 = vmatprep.subr.mxu0 0.0
  %554 = vmatpush1.msra.mxu0 0.0
  %555 = vmatprep.subr.mxu0 0.0
  %556 = vmatpush1.msra.mxu0 0.0
  %557 = vmatprep.subr.mxu0 0.0
  %558 = vmatpush1.msra.mxu0 0.0
  %559 = vmatprep.subr.mxu0 0.0
  %560 = vmatpush1.msra.mxu0 0.0
  %561 = vmatprep.subr.mxu0 0.0
  %562 = vmatpush1.msra.mxu0 0.0
  %563 = vmatprep.subr.mxu0 0.0
  %564 = vmatpush1.msra.mxu0 0.0
  %565 = vmatprep.subr.mxu0 0.0
  %566 = vmatpush1.msra.mxu0 0.0
  %567 = vmatprep.subr.mxu0 0.0
  %568 = vmatpush1.msra.mxu0 0.0
  %569 = vmatprep.subr.mxu0 0.0
  %570 = vmatpush1.msra.mxu0 0.0
  %571 = vmatprep.subr.mxu0 0.0
  %572 = vmatpush1.msra.mxu0 0.0
  %573 = vmatprep.subr.mxu0 0.0
  %574 = vmatpush1.msra.mxu0 0.0
  %575 = vmatprep.subr.mxu0 0.0
  %576 = vmatpush1.msra.mxu0 0.0
  %577 = vmatprep.subr.mxu0 0.0
  %578 = vmatpush1.msra.mxu0 0.0
  %579 = vmatprep.subr.mxu0 0.0
  %580 = vmatpush1.msra.mxu0 0.0
  %581 = vmatprep.subr.mxu0 0.0
  %582 = vmatpush1.msra.mxu0 0.0
  %583 = vmatprep.subr.mxu0 0.0
  %584 = vmatpush1.msra.mxu0 0.0
  %585 = vmatprep.subr.mxu0 0.0
  %586 = vmatpush1.msra.mxu0 0.0
  %587 = vmatprep.subr.mxu0 0.0
  %588 = vmatpush1.msra.mxu0 0.0
  %589 = vmatprep.subr.mxu0 0.0
  %590 = vmatpush1.msra.mxu0 0.0
  %591 = vmatprep.subr.mxu0 0.0
  %592 = vmatpush1.msra.mxu0 0.0
  %593 = vmatprep.subr.mxu0 0.0
  %594 = vmatpush1.msra.mxu0 0.0
  %595 = vmatprep.subr.mxu0 0.0
  %596 = vmatpush1.msra.mxu0 0.0
  %597 = vmatprep.subr.mxu0 0.0
  %598 = vmatpush1.msra.mxu0 0.0
  %599 = vmatprep.subr.mxu0 0.0
  %600 = vmatpush1.msra.mxu0 0.0
  %601 = vmatprep.subr.mxu0 0.0
  %602 = vmatpush1.msra.mxu0 0.0
  %603 = vmatprep.subr.mxu0 0.0
  %604 = vmatpush1.msra.mxu0 0.0
  %605 = vmatprep.subr.mxu0 0.0
  %606 = vmatpush1.msra.mxu0 0.0
  %607 = vmatprep.mubr.f32.mxu0 0.0
  %608 = vmatmul.mubr.f32.gmra.mrb[0].mxu0 %v539
  %v609 = vpop.f32.mrb[0].mxu0
  %v610 = vadd.f32 0.0, %v609
  %v611 = vpop.f32.mrb[0].mxu0
  %612 = vmatprep.mubr.f32.mxu0 0.0
  %613 = vmatmul.mubr.f32.gmra.mrb[0].mxu0 %v541
  %v614 = vpop.f32.mrb[0].mxu0
  %v615 = vadd.f32 0.0, %v614
  %v616 = vpop.f32.mrb[0].mxu0
  %617 = vdwg.mxu0
  %v618 = vmul.f32 %v610, 1.1428572
  %v619 = vmul.f32 %v615, 1.1428572
  %v620 = vmax.f32 %v618, 1e-12
  %v621 = vmax.f32 %v619, 1e-12
  %v622 = vrsqrt.pop %v620
  %v623 = vrsqrt.pop %v621
  %626 = vrot.lane.b32.xlu0 %v622, 32
  %v627 = vpop.permute.xlu0 %626
  %628 = vrot.lane.b32.xlu0 %v623, 32
  %v629 = vpop.permute.xlu0 %628
  %v632 = vmul.f32 %v529, %v627
  %v633 = vmul.f32 %v530, %v629
  %v634 = vld [vmem:[%s1 + $0x178] sm:$0xff]
  %v635 = vld [vmem:[%s1 + $0x180] sm:$0xff]
  %v636 = vld [vmem:[%s1 + $0x188] sm:$0xff]
  %v637 = vld [vmem:[%s1 + $0x190] sm:$0xff]
  %640 = vrot.lane.b32.xlu0 %v632, 96
  %v641 = vpop.permute.xlu0 %640
  %642 = vrot.lane.b32.xlu0 %v633, 96
  %v643 = vpop.permute.xlu0 %642
  %vm644 = vcmask 64512
  %v646 = vsel %vm644, %v436, 0
  %v649 = vsel %vm644, %v437, 0
  %v651 = vsel %vm644, %v641, 0
  %v653 = vsel %vm644, %v643, 0
  %655 = vmatprep.subr.mxu0 0.0
  %656 = vmatpush1.xpose.msra.mxu0 %v651
  %657 = vmatprep.subr.mxu0 0.0
  %658 = vmatpush1.xpose.msra.mxu0 %v653
  %659 = vmatprep.subr.mxu0 0.0
  %660 = vmatpush1.xpose.msra.mxu0 0.0
  %661 = vmatprep.subr.mxu0 0.0
  %662 = vmatpush1.xpose.msra.mxu0 0.0
  %663 = vmatprep.subr.mxu0 0.0
  %664 = vmatpush1.xpose.msra.mxu0 0.0
  %665 = vmatprep.subr.mxu0 0.0
  %666 = vmatpush1.xpose.msra.mxu0 0.0
  %667 = vmatprep.subr.mxu0 0.0
  %668 = vmatpush1.xpose.msra.mxu0 0.0
  %669 = vmatprep.subr.mxu0 0.0
  %670 = vmatpush1.xpose.msra.mxu0 0.0
  %671 = vmatprep.subr.mxu0 0.0
  %672 = vmatpush1.xpose.msra.mxu0 0.0
  %673 = vmatprep.subr.mxu0 0.0
  %674 = vmatpush1.xpose.msra.mxu0 0.0
  %675 = vmatprep.subr.mxu0 0.0
  %676 = vmatpush1.xpose.msra.mxu0 0.0
  %677 = vmatprep.subr.mxu0 0.0
  %678 = vmatpush1.xpose.msra.mxu0 0.0
  %679 = vmatprep.subr.mxu0 0.0
  %680 = vmatpush1.xpose.msra.mxu0 0.0
  %681 = vmatprep.subr.mxu0 0.0
  %682 = vmatpush1.xpose.msra.mxu0 0.0
  %683 = vmatprep.subr.mxu0 0.0
  %684 = vmatpush1.xpose.msra.mxu0 0.0
  %685 = vmatprep.subr.mxu0 0.0
  %686 = vmatpush1.xpose.msra.mxu0 0.0
  %687 = vmatprep.subr.mxu0 0.0
  %688 = vmatpush1.xpose.msra.mxu0 0.0
  %689 = vmatprep.subr.mxu0 0.0
  %690 = vmatpush1.xpose.msra.mxu0 0.0
  %691 = vmatprep.subr.mxu0 0.0
  %692 = vmatpush1.xpose.msra.mxu0 0.0
  %693 = vmatprep.subr.mxu0 0.0
  %694 = vmatpush1.xpose.msra.mxu0 0.0
  %695 = vmatprep.subr.mxu0 0.0
  %696 = vmatpush1.xpose.msra.mxu0 0.0
  %697 = vmatprep.subr.mxu0 0.0
  %698 = vmatpush1.xpose.msra.mxu0 0.0
  %699 = vmatprep.subr.mxu0 0.0
  %700 = vmatpush1.xpose.msra.mxu0 0.0
  %701 = vmatprep.subr.mxu0 0.0
  %702 = vmatpush1.xpose.msra.mxu0 0.0
  %703 = vmatprep.subr.mxu0 0.0
  %704 = vmatpush1.xpose.msra.mxu0 0.0
  %705 = vmatprep.subr.mxu0 0.0
  %706 = vmatpush1.xpose.msra.mxu0 0.0
  %707 = vmatprep.subr.mxu0 0.0
  %708 = vmatpush1.xpose.msra.mxu0 0.0
  %709 = vmatprep.subr.mxu0 0.0
  %710 = vmatpush1.xpose.msra.mxu0 0.0
  %711 = vmatprep.subr.mxu0 0.0
  %712 = vmatpush1.xpose.msra.mxu0 0.0
  %713 = vmatprep.subr.mxu0 0.0
  %714 = vmatpush1.xpose.msra.mxu0 0.0
  %715 = vmatprep.subr.mxu0 0.0
  %716 = vmatpush1.xpose.msra.mxu0 0.0
  %717 = vmatprep.subr.mxu0 0.0
  %718 = vmatpush1.xpose.msra.mxu0 0.0
  %719 = vmatprep.mubr.f32.mxu0 0.0
  %720 = vmatmul.mubr.f32.gmra.mrb[0].mxu0 %v646
  %v721 = vpop.f32.mrb[0].mxu0
  %v722 = vadd.f32 %v128, %v721
  %v723 = vpop.f32.mrb[0].mxu0
  %724 = vmatprep.mubr.f32.mxu0 0.0
  %725 = vmatmul.mubr.f32.gmra.mrb[0].mxu0 %v649
  %v726 = vpop.f32.mrb[0].mxu0
  %v727 = vadd.f32 %v129, %v726
  %v728 = vpop.f32.mrb[0].mxu0
  %729 = vdwg.mxu0
  %vm730 = vcmask 130048
  %v731 = vsel %vm730, %v722, -inf
  %732 = vmax.xlane.f32.xlu0 %v731
  %v733 = vpop.xlane.xlu0 %732
  %v734 = vsel %vm730, %v727, -inf
  %735 = vmax.xlane.f32.xlu0 %v734
  %v736 = vpop.xlane.xlu0 %735
  %v737 = vsub.f32 %v722, %v733
  %v738 = vsub.f32 %v727, %v736
  %v739 = vmul.f32 %v737, 1.442695
  %v740 = vpow.pop %v739
  %v741 = vmul.f32 %v738, 1.442695
  %v742 = vpow.pop %v741
  %v743 = vsel %vm730, %v740, 0.0
  %744 = vadd.xlane.f32.xlu0 %v743
  %v745 = vpop.xlane.xlu0 %744
  %v746 = vsel %vm730, %v742, 0.0
  %747 = vadd.xlane.f32.xlu0 %v746
  %v748 = vpop.xlane.xlu0 %747
  %v749 = vrcp.pop %v745
  %v750 = vrcp.pop %v748
  %v751 = vmul.f32 %v740, %v749
  %v752 = vmul.f32 %v742, %v750
  %753 = vrot.lane.b32.xlu0 %v254, 64
  %v754 = vpop.permute.xlu0 %753
  %755 = vrot.lane.b32.xlu0 %v259, 64
  %v756 = vpop.permute.xlu0 %755
  %v760 = vsel %vm730, %v751, 0
  %v763 = vsel %vm730, %v752, 0
  %765 = vmatprep.subr.mxu0 0.0
  %766 = vmatpush1.msra.mxu0 %v754
  %767 = vmatprep.subr.mxu0 0.0
  %768 = vmatpush1.msra.mxu0 %v756
  %769 = vmatprep.subr.mxu0 0.0
  %770 = vmatpush1.msra.mxu0 0.0
  %771 = vmatprep.subr.mxu0 0.0
  %772 = vmatpush1.msra.mxu0 0.0
  %773 = vmatprep.subr.mxu0 0.0
  %774 = vmatpush1.msra.mxu0 0.0
  %775 = vmatprep.subr.mxu0 0.0
  %776 = vmatpush1.msra.mxu0 0.0
  %777 = vmatprep.subr.mxu0 0.0
  %778 = vmatpush1.msra.mxu0 0.0
  %779 = vmatprep.subr.mxu0 0.0
  %780 = vmatpush1.msra.mxu0 0.0
  %781 = vmatprep.subr.mxu0 0.0
  %782 = vmatpush1.msra.mxu0 0.0
  %783 = vmatprep.subr.mxu0 0.0
  %784 = vmatpush1.msra.mxu0 0.0
  %785 = vmatprep.subr.mxu0 0.0
  %786 = vmatpush1.msra.mxu0 0.0
  %787 = vmatprep.subr.mxu0 0.0
  %788 = vmatpush1.msra.mxu0 0.0
  %789 = vmatprep.subr.mxu0 0.0
  %790 = vmatpush1.msra.mxu0 0.0
  %791 = vmatprep.subr.mxu0 0.0
  %792 = vmatpush1.msra.mxu0 0.0
  %793 = vmatprep.subr.mxu0 0.0
  %794 = vmatpush1.msra.mxu0 0.0
  %795 = vmatprep.subr.mxu0 0.0
  %796 = vmatpush1.msra.mxu0 0.0
  %797 = vmatprep.subr.mxu0 0.0
  %798 = vmatpush1.msra.mxu0 0.0
  %799 = vmatprep.subr.mxu0 0.0
  %800 = vmatpush1.msra.mxu0 0.0
  %801 = vmatprep.subr.mxu0 0.0
  %802 = vmatpush1.msra.mxu0 0.0
  %803 = vmatprep.subr.mxu0 0.0
  %804 = vmatpush1.msra.mxu0 0.0
  %805 = vmatprep.subr.mxu0 0.0
  %806 = vmatpush1.msra.mxu0 0.0
  %807 = vmatprep.subr.mxu0 0.0
  %808 = vmatpush1.msra.mxu0 0.0
  %809 = vmatprep.subr.mxu0 0.0
  %810 = vmatpush1.msra.mxu0 0.0
  %811 = vmatprep.subr.mxu0 0.0
  %812 = vmatpush1.msra.mxu0 0.0
  %813 = vmatprep.subr.mxu0 0.0
  %814 = vmatpush1.msra.mxu0 0.0
  %815 = vmatprep.subr.mxu0 0.0
  %816 = vmatpush1.msra.mxu0 0.0
  %817 = vmatprep.subr.mxu0 0.0
  %818 = vmatpush1.msra.mxu0 0.0
  %819 = vmatprep.subr.mxu0 0.0
  %820 = vmatpush1.msra.mxu0 0.0
  %821 = vmatprep.subr.mxu0 0.0
  %822 = vmatpush1.msra.mxu0 0.0
  %823 = vmatprep.subr.mxu0 0.0
  %824 = vmatpush1.msra.mxu0 0.0
  %825 = vmatprep.subr.mxu0 0.0
  %826 = vmatpush1.msra.mxu0 0.0
  %827 = vmatprep.subr.mxu0 0.0
  %828 = vmatpush1.msra.mxu0 0.0
  %829 = vmatprep.mubr.f32.mxu0 0.0
  %830 = vmatmul.mubr.f32.gmra.mrb[0].mxu0 %v760
  %v831 = vpop.f32.mrb[0].mxu0
  %v832 = vadd.f32 0.0, %v831
  %v833 = vpop.f32.mrb[0].mxu0
  %834 = vmatprep.mubr.f32.mxu0 0.0
  %835 = vmatmul.mubr.f32.gmra.mrb[0].mxu0 %v763
  %v836 = vpop.f32.mrb[0].mxu0
  %v837 = vadd.f32 0.0, %v836
  %v838 = vpop.f32.mrb[0].mxu0
  %839 = vdwg.mxu0
  %840 = vrot.lane.b32.xlu0 %v436, 120
  %v841 = vpop.permute.xlu0 %840
  %842 = vrot.lane.b32.xlu0 %v437, 120
  %v843 = vpop.permute.xlu0 %842
  %844 = vrot.lane.b32.xlu0 %v632, 88
  %v845 = vpop.permute.xlu0 %844
  %846 = vrot.lane.b32.xlu0 %v633, 88
  %v847 = vpop.permute.xlu0 %846
  %v848 = vsel %vm644, %v841, 0
  %v850 = vsel %vm644, %v843, 0
  %v852 = vsel %vm644, %v845, 0
  %v854 = vsel %vm644, %v847, 0
  %856 = vmatprep.subr.mxu0 0.0
  %857 = vmatpush1.xpose.msra.mxu0 %v852
  %858 = vmatprep.subr.mxu0 0.0
  %859 = vmatpush1.xpose.msra.mxu0 %v854
  %860 = vmatprep.subr.mxu0 0.0
  %861 = vmatpush1.xpose.msra.mxu0 0.0
  %862 = vmatprep.subr.mxu0 0.0
  %863 = vmatpush1.xpose.msra.mxu0 0.0
  %864 = vmatprep.subr.mxu0 0.0
  %865 = vmatpush1.xpose.msra.mxu0 0.0
  %866 = vmatprep.subr.mxu0 0.0
  %867 = vmatpush1.xpose.msra.mxu0 0.0
  %868 = vmatprep.subr.mxu0 0.0
  %869 = vmatpush1.xpose.msra.mxu0 0.0
  %870 = vmatprep.subr.mxu0 0.0
  %871 = vmatpush1.xpose.msra.mxu0 0.0
  %872 = vmatprep.subr.mxu0 0.0
  %873 = vmatpush1.xpose.msra.mxu0 0.0
  %874 = vmatprep.subr.mxu0 0.0
  %875 = vmatpush1.xpose.msra.mxu0 0.0
  %876 = vmatprep.subr.mxu0 0.0
  %877 = vmatpush1.xpose.msra.mxu0 0.0
  %878 = vmatprep.subr.mxu0 0.0
  %879 = vmatpush1.xpose.msra.mxu0 0.0
  %880 = vmatprep.subr.mxu0 0.0
  %881 = vmatpush1.xpose.msra.mxu0 0.0
  %882 = vmatprep.subr.mxu0 0.0
  %883 = vmatpush1.xpose.msra.mxu0 0.0
  %884 = vmatprep.subr.mxu0 0.0
  %885 = vmatpush1.xpose.msra.mxu0 0.0
  %886 = vmatprep.subr.mxu0 0.0
  %887 = vmatpush1.xpose.msra.mxu0 0.0
  %888 = vmatprep.subr.mxu0 0.0
  %889 = vmatpush1.xpose.msra.mxu0 0.0
  %890 = vmatprep.subr.mxu0 0.0
  %891 = vmatpush1.xpose.msra.mxu0 0.0
  %892 = vmatprep.subr.mxu0 0.0
  %893 = vmatpush1.xpose.msra.mxu0 0.0
  %894 = vmatprep.subr.mxu0 0.0
  %895 = vmatpush1.xpose.msra.mxu0 0.0
  %896 = vmatprep.subr.mxu0 0.0
  %897 = vmatpush1.xpose.msra.mxu0 0.0
  %898 = vmatprep.subr.mxu0 0.0
  %899 = vmatpush1.xpose.msra.mxu0 0.0
  %900 = vmatprep.subr.mxu0 0.0
  %901 = vmatpush1.xpose.msra.mxu0 0.0
  %902 = vmatprep.subr.mxu0 0.0
  %903 = vmatpush1.xpose.msra.mxu0 0.0
  %904 = vmatprep.subr.mxu0 0.0
  %905 = vmatpush1.xpose.msra.mxu0 0.0
  %906 = vmatprep.subr.mxu0 0.0
  %907 = vmatpush1.xpose.msra.mxu0 0.0
  %908 = vmatprep.subr.mxu0 0.0
  %909 = vmatpush1.xpose.msra.mxu0 0.0
  %910 = vmatprep.subr.mxu0 0.0
  %911 = vmatpush1.xpose.msra.mxu0 0.0
  %912 = vmatprep.subr.mxu0 0.0
  %913 = vmatpush1.xpose.msra.mxu0 0.0
  %914 = vmatprep.subr.mxu0 0.0
  %915 = vmatpush1.xpose.msra.mxu0 0.0
  %916 = vmatprep.subr.mxu0 0.0
  %917 = vmatpush1.xpose.msra.mxu0 0.0
  %918 = vmatprep.subr.mxu0 0.0
  %919 = vmatpush1.xpose.msra.mxu0 0.0
  %920 = vmatprep.mubr.f32.mxu0 0.0
  %921 = vmatmul.mubr.f32.gmra.mrb[0].mxu0 %v848
  %v922 = vpop.f32.mrb[0].mxu0
  %v923 = vadd.f32 %v128, %v922
  %v924 = vpop.f32.mrb[0].mxu0
  %925 = vmatprep.mubr.f32.mxu0 0.0
  %926 = vmatmul.mubr.f32.gmra.mrb[0].mxu0 %v850
  %v927 = vpop.f32.mrb[0].mxu0
  %v928 = vadd.f32 %v129, %v927
  %v929 = vpop.f32.mrb[0].mxu0
  %930 = vdwg.mxu0
  %v931 = vsel %vm730, %v923, -inf
  %932 = vmax.xlane.f32.xlu0 %v931
  %v933 = vpop.xlane.xlu0 %932
  %v934 = vsel %vm730, %v928, -inf
  %935 = vmax.xlane.f32.xlu0 %v934
  %v936 = vpop.xlane.xlu0 %935
  %v937 = vsub.f32 %v923, %v933
  %v938 = vsub.f32 %v928, %v936
  %v939 = vmul.f32 %v937, 1.442695
  %v940 = vpow.pop %v939
  %v941 = vmul.f32 %v938, 1.442695
  %v942 = vpow.pop %v941
  %v943 = vsel %vm730, %v940, 0.0
  %944 = vadd.xlane.f32.xlu0 %v943
  %v945 = vpop.xlane.xlu0 %944
  %v946 = vsel %vm730, %v942, 0.0
  %947 = vadd.xlane.f32.xlu0 %v946
  %v948 = vpop.xlane.xlu0 %947
  %v949 = vrcp.pop %v945
  %v950 = vrcp.pop %v948
  %v951 = vmul.f32 %v940, %v949
  %v952 = vmul.f32 %v942, %v950
  %953 = vrot.lane.b32.xlu0 %v254, 56
  %v954 = vpop.permute.xlu0 %953
  %955 = vrot.lane.b32.xlu0 %v259, 56
  %v956 = vpop.permute.xlu0 %955
  %v960 = vsel %vm730, %v951, 0
  %v963 = vsel %vm730, %v952, 0
  %965 = vmatprep.subr.mxu0 0.0
  %966 = vmatpush1.msra.mxu0 %v954
  %967 = vmatprep.subr.mxu0 0.0
  %968 = vmatpush1.msra.mxu0 %v956
  %969 = vmatprep.subr.mxu0 0.0
  %970 = vmatpush1.msra.mxu0 0.0
  %971 = vmatprep.subr.mxu0 0.0
  %972 = vmatpush1.msra.mxu0 0.0
  %973 = vmatprep.subr.mxu0 0.0
  %974 = vmatpush1.msra.mxu0 0.0
  %975 = vmatprep.subr.mxu0 0.0
  %976 = vmatpush1.msra.mxu0 0.0
  %977 = vmatprep.subr.mxu0 0.0
  %978 = vmatpush1.msra.mxu0 0.0
  %979 = vmatprep.subr.mxu0 0.0
  %980 = vmatpush1.msra.mxu0 0.0
  %981 = vmatprep.subr.mxu0 0.0
  %982 = vmatpush1.msra.mxu0 0.0
  %983 = vmatprep.subr.mxu0 0.0
  %984 = vmatpush1.msra.mxu0 0.0
  %985 = vmatprep.subr.mxu0 0.0
  %986 = vmatpush1.msra.mxu0 0.0
  %987 = vmatprep.subr.mxu0 0.0
  %988 = vmatpush1.msra.mxu0 0.0
  %989 = vmatprep.subr.mxu0 0.0
  %990 = vmatpush1.msra.mxu0 0.0
  %991 = vmatprep.subr.mxu0 0.0
  %992 = vmatpush1.msra.mxu0 0.0
  %993 = vmatprep.subr.mxu0 0.0
  %994 = vmatpush1.msra.mxu0 0.0
  %995 = vmatprep.subr.mxu0 0.0
  %996 = vmatpush1.msra.mxu0 0.0
  %997 = vmatprep.subr.mxu0 0.0
  %998 = vmatpush1.msra.mxu0 0.0
  %999 = vmatprep.subr.mxu0 0.0
  %1000 = vmatpush1.msra.mxu0 0.0
  %1001 = vmatprep.subr.mxu0 0.0
  %1002 = vmatpush1.msra.mxu0 0.0
  %1003 = vmatprep.subr.mxu0 0.0
  %1004 = vmatpush1.msra.mxu0 0.0
  %1005 = vmatprep.subr.mxu0 0.0
  %1006 = vmatpush1.msra.mxu0 0.0
  %1007 = vmatprep.subr.mxu0 0.0
  %1008 = vmatpush1.msra.mxu0 0.0
  %1009 = vmatprep.subr.mxu0 0.0
  %1010 = vmatpush1.msra.mxu0 0.0
  %1011 = vmatprep.subr.mxu0 0.0
  %1012 = vmatpush1.msra.mxu0 0.0
  %1013 = vmatprep.subr.mxu0 0.0
  %1014 = vmatpush1.msra.mxu0 0.0
  %1015 = vmatprep.subr.mxu0 0.0
  %1016 = vmatpush1.msra.mxu0 0.0
  %1017 = vmatprep.subr.mxu0 0.0
  %1018 = vmatpush1.msra.mxu0 0.0
  %1019 = vmatprep.subr.mxu0 0.0
  %1020 = vmatpush1.msra.mxu0 0.0
  %1021 = vmatprep.subr.mxu0 0.0
  %1022 = vmatpush1.msra.mxu0 0.0
  %1023 = vmatprep.subr.mxu0 0.0
  %1024 = vmatpush1.msra.mxu0 0.0
  %1025 = vmatprep.subr.mxu0 0.0
  %1026 = vmatpush1.msra.mxu0 0.0
  %1027 = vmatprep.subr.mxu0 0.0
  %1028 = vmatpush1.msra.mxu0 0.0
  %1029 = vmatprep.mubr.f32.mxu0 0.0
  %1030 = vmatmul.mubr.f32.gmra.mrb[0].mxu0 %v960
  %v1031 = vpop.f32.mrb[0].mxu0
  %v1032 = vadd.f32 0.0, %v1031
  %v1033 = vpop.f32.mrb[0].mxu0
  %1034 = vmatprep.mubr.f32.mxu0 0.0
  %1035 = vmatmul.mubr.f32.gmra.mrb[0].mxu0 %v963
  %v1036 = vpop.f32.mrb[0].mxu0
  %v1037 = vadd.f32 0.0, %v1036
  %v1038 = vpop.f32.mrb[0].mxu0
  %1039 = vdwg.mxu0
  %v1041 = vsel %vm644, %v1032, 0
  %v1044 = vsel %vm644, %v1037, 0
  %1046 = vmatprep.subr.mxu0 0.0
  %1047 = vmatpush1.msra.mxu0 %v635
  %1048 = vmatprep.subr.mxu0 0.0
  %1049 = vmatpush1.msra.mxu0 0.0
  %1050 = vmatprep.subr.mxu0 0.0
  %1051 = vmatpush1.msra.mxu0 0.0
  %1052 = vmatprep.subr.mxu0 0.0
  %1053 = vmatpush1.msra.mxu0 0.0
  %1054 = vmatprep.subr.mxu0 0.0
  %1055 = vmatpush1.msra.mxu0 0.0
  %1056 = vmatprep.subr.mxu0 0.0
  %1057 = vmatpush1.msra.mxu0 0.0
  %1058 = vmatprep.subr.mxu0 0.0
  %1059 = vmatpush1.msra.mxu0 0.0
  %1060 = vmatprep.subr.mxu0 0.0
  %1061 = vmatpush1.msra.mxu0 0.0
  %1062 = vmatprep.subr.mxu0 0.0
  %1063 = vmatpush1.msra.mxu0 0.0
  %1064 = vmatprep.subr.mxu0 0.0
  %1065 = vmatpush1.msra.mxu0 0.0
  %1066 = vmatprep.subr.mxu0 0.0
  %1067 = vmatpush1.msra.mxu0 0.0
  %1068 = vmatprep.subr.mxu0 0.0
  %1069 = vmatpush1.msra.mxu0 0.0
  %1070 = vmatprep.subr.mxu0 0.0
  %1071 = vmatpush1.msra.mxu0 0.0
  %1072 = vmatprep.subr.mxu0 0.0
  %1073 = vmatpush1.msra.mxu0 0.0
  %1074 = vmatprep.subr.mxu0 0.0
  %1075 = vmatpush1.msra.mxu0 0.0
  %1076 = vmatprep.subr.mxu0 0.0
  %1077 = vmatpush1.msra.mxu0 0.0
  %1078 = vmatprep.subr.mxu0 0.0
  %1079 = vmatpush1.msra.mxu0 0.0
  %1080 = vmatprep.subr.mxu0 0.0
  %1081 = vmatpush1.msra.mxu0 0.0
  %1082 = vmatprep.subr.mxu0 0.0
  %1083 = vmatpush1.msra.mxu0 0.0
  %1084 = vmatprep.subr.mxu0 0.0
  %1085 = vmatpush1.msra.mxu0 0.0
  %1086 = vmatprep.subr.mxu0 0.0
  %1087 = vmatpush1.msra.mxu0 0.0
  %1088 = vmatprep.subr.mxu0 0.0
  %1089 = vmatpush1.msra.mxu0 0.0
  %1090 = vmatprep.subr.mxu0 0.0
  %1091 = vmatpush1.msra.mxu0 0.0
  %1092 = vmatprep.subr.mxu0 0.0
  %1093 = vmatpush1.msra.mxu0 0.0
  %1094 = vmatprep.subr.mxu0 0.0
  %1095 = vmatpush1.msra.mxu0 0.0
  %1096 = vmatprep.subr.mxu0 0.0
  %1097 = vmatpush1.msra.mxu0 0.0
  %1098 = vmatprep.subr.mxu0 0.0
  %1099 = vmatpush1.msra.mxu0 0.0
  %1100 = vmatprep.subr.mxu0 0.0
  %1101 = vmatpush1.msra.mxu0 0.0
  %1102 = vmatprep.subr.mxu0 0.0
  %1103 = vmatpush1.msra.mxu0 0.0
  %1104 = vmatprep.subr.mxu0 0.0
  %1105 = vmatpush1.msra.mxu0 0.0
  %1106 = vmatprep.subr.mxu0 0.0
  %1107 = vmatpush1.msra.mxu0 0.0
  %1108 = vmatprep.subr.mxu0 0.0
  %1109 = vmatpush1.msra.mxu0 0.0
  %1110 = vmatprep.mubr.f32.mxu0 0.0
  %1111 = vmatmul.mubr.f32.gmra.mrb[0].mxu0 %v1041
  %v1112 = vpop.f32.mrb[0].mxu0
  %v1113 = vadd.f32 0.0, %v1112
  %v1114 = vpop.f32.mrb[0].mxu0
  %1115 = vmatprep.mubr.f32.mxu0 0.0
  %1116 = vmatmul.mubr.f32.gmra.mrb[0].mxu0 %v1044
  %v1117 = vpop.f32.mrb[0].mxu0
  %v1118 = vadd.f32 0.0, %v1117
  %v1119 = vpop.f32.mrb[0].mxu0
  %1120 = vdwg.mxu0
  %v1122 = vsel %vm644, %v832, 0
  %v1125 = vsel %vm644, %v837, 0
  %1127 = vmatprep.subr.mxu0 0.0
  %1128 = vmatpush1.msra.mxu0 %v634
  %1129 = vmatprep.subr.mxu0 0.0
  %1130 = vmatpush1.msra.mxu0 0.0
  %1131 = vmatprep.subr.mxu0 0.0
  %1132 = vmatpush1.msra.mxu0 0.0
  %1133 = vmatprep.subr.mxu0 0.0
  %1134 = vmatpush1.msra.mxu0 0.0
  %1135 = vmatprep.subr.mxu0 0.0
  %1136 = vmatpush1.msra.mxu0 0.0
  %1137 = vmatprep.subr.mxu0 0.0
  %1138 = vmatpush1.msra.mxu0 0.0
  %1139 = vmatprep.subr.mxu0 0.0
  %1140 = vmatpush1.msra.mxu0 0.0
  %1141 = vmatprep.subr.mxu0 0.0
  %1142 = vmatpush1.msra.mxu0 0.0
  %1143 = vmatprep.subr.mxu0 0.0
  %1144 = vmatpush1.msra.mxu0 0.0
  %1145 = vmatprep.subr.mxu0 0.0
  %1146 = vmatpush1.msra.mxu0 0.0
  %1147 = vmatprep.subr.mxu0 0.0
  %1148 = vmatpush1.msra.mxu0 0.0
  %1149 = vmatprep.subr.mxu0 0.0
  %1150 = vmatpush1.msra.mxu0 0.0
  %1151 = vmatprep.subr.mxu0 0.0
  %1152 = vmatpush1.msra.mxu0 0.0
  %1153 = vmatprep.subr.mxu0 0.0
  %1154 = vmatpush1.msra.mxu0 0.0
  %1155 = vmatprep.subr.mxu0 0.0
  %1156 = vmatpush1.msra.mxu0 0.0
  %1157 = vmatprep.subr.mxu0 0.0
  %1158 = vmatpush1.msra.mxu0 0.0
  %1159 = vmatprep.subr.mxu0 0.0
  %1160 = vmatpush1.msra.mxu0 0.0
  %1161 = vmatprep.subr.mxu0 0.0
  %1162 = vmatpush1.msra.mxu0 0.0
  %1163 = vmatprep.subr.mxu0 0.0
  %1164 = vmatpush1.msra.mxu0 0.0
  %1165 = vmatprep.subr.mxu0 0.0
  %1166 = vmatpush1.msra.mxu0 0.0
  %1167 = vmatprep.subr.mxu0 0.0
  %1168 = vmatpush1.msra.mxu0 0.0
  %1169 = vmatprep.subr.mxu0 0.0
  %1170 = vmatpush1.msra.mxu0 0.0
  %1171 = vmatprep.subr.mxu0 0.0
  %1172 = vmatpush1.msra.mxu0 0.0
  %1173 = vmatprep.subr.mxu0 0.0
  %1174 = vmatpush1.msra.mxu0 0.0
  %1175 = vmatprep.subr.mxu0 0.0
  %1176 = vmatpush1.msra.mxu0 0.0
  %1177 = vmatprep.subr.mxu0 0.0
  %1178 = vmatpush1.msra.mxu0 0.0
  %1179 = vmatprep.subr.mxu0 0.0
  %1180 = vmatpush1.msra.mxu0 0.0
  %1181 = vmatprep.subr.mxu0 0.0
  %1182 = vmatpush1.msra.mxu0 0.0
  %1183 = vmatprep.subr.mxu0 0.0
  %1184 = vmatpush1.msra.mxu0 0.0
  %1185 = vmatprep.subr.mxu0 0.0
  %1186 = vmatpush1.msra.mxu0 0.0
  %1187 = vmatprep.subr.mxu0 0.0
  %1188 = vmatpush1.msra.mxu0 0.0
  %1189 = vmatprep.subr.mxu0 0.0
  %1190 = vmatpush1.msra.mxu0 0.0
  %1191 = vmatprep.mubr.f32.mxu0 0.0
  %1192 = vmatmul.mubr.f32.gmra.mrb[0].mxu0 %v1122
  %v1193 = vpop.f32.mrb[0].mxu0
  %v1194 = vadd.f32 %v1113, %v1193
  %v1195 = vpop.f32.mrb[0].mxu0
  %1196 = vmatprep.mubr.f32.mxu0 0.0
  %1197 = vmatmul.mubr.f32.gmra.mrb[0].mxu0 %v1125
  %v1198 = vpop.f32.mrb[0].mxu0
  %v1199 = vadd.f32 %v1118, %v1198
  %v1200 = vpop.f32.mrb[0].mxu0
  %1201 = vdwg.mxu0
  %1202 = vrot.lane.b32.xlu0 %v436, 112
  %v1203 = vpop.permute.xlu0 %1202
  %1204 = vrot.lane.b32.xlu0 %v437, 112
  %v1205 = vpop.permute.xlu0 %1204
  %1206 = vrot.lane.b32.xlu0 %v632, 80
  %v1207 = vpop.permute.xlu0 %1206
  %1208 = vrot.lane.b32.xlu0 %v633, 80
  %v1209 = vpop.permute.xlu0 %1208
  %v1210 = vsel %vm644, %v1203, 0
  %v1212 = vsel %vm644, %v1205, 0
  %v1214 = vsel %vm644, %v1207, 0
  %v1216 = vsel %vm644, %v1209, 0
  %1218 = vmatprep.subr.mxu0 0.0
  %1219 = vmatpush1.xpose.msra.mxu0 %v1214
  %1220 = vmatprep.subr.mxu0 0.0
  %1221 = vmatpush1.xpose.msra.mxu0 %v1216
  %1222 = vmatprep.subr.mxu0 0.0
  %1223 = vmatpush1.xpose.msra.mxu0 0.0
  %1224 = vmatprep.subr.mxu0 0.0
  %1225 = vmatpush1.xpose.msra.mxu0 0.0
  %1226 = vmatprep.subr.mxu0 0.0
  %1227 = vmatpush1.xpose.msra.mxu0 0.0
  %1228 = vmatprep.subr.mxu0 0.0
  %1229 = vmatpush1.xpose.msra.mxu0 0.0
  %1230 = vmatprep.subr.mxu0 0.0
  %1231 = vmatpush1.xpose.msra.mxu0 0.0
  %1232 = vmatprep.subr.mxu0 0.0
  %1233 = vmatpush1.xpose.msra.mxu0 0.0
  %1234 = vmatprep.subr.mxu0 0.0
  %1235 = vmatpush1.xpose.msra.mxu0 0.0
  %1236 = vmatprep.subr.mxu0 0.0
  %1237 = vmatpush1.xpose.msra.mxu0 0.0
  %1238 = vmatprep.subr.mxu0 0.0
  %1239 = vmatpush1.xpose.msra.mxu0 0.0
  %1240 = vmatprep.subr.mxu0 0.0
  %1241 = vmatpush1.xpose.msra.mxu0 0.0
  %1242 = vmatprep.subr.mxu0 0.0
  %1243 = vmatpush1.xpose.msra.mxu0 0.0
  %1244 = vmatprep.subr.mxu0 0.0
  %1245 = vmatpush1.xpose.msra.mxu0 0.0
  %1246 = vmatprep.subr.mxu0 0.0
  %1247 = vmatpush1.xpose.msra.mxu0 0.0
  %1248 = vmatprep.subr.mxu0 0.0
  %1249 = vmatpush1.xpose.msra.mxu0 0.0
  %1250 = vmatprep.subr.mxu0 0.0
  %1251 = vmatpush1.xpose.msra.mxu0 0.0
  %1252 = vmatprep.subr.mxu0 0.0
  %1253 = vmatpush1.xpose.msra.mxu0 0.0
  %1254 = vmatprep.subr.mxu0 0.0
  %1255 = vmatpush1.xpose.msra.mxu0 0.0
  %1256 = vmatprep.subr.mxu0 0.0
  %1257 = vmatpush1.xpose.msra.mxu0 0.0
  %1258 = vmatprep.subr.mxu0 0.0
  %1259 = vmatpush1.xpose.msra.mxu0 0.0
  %1260 = vmatprep.subr.mxu0 0.0
  %1261 = vmatpush1.xpose.msra.mxu0 0.0
  %1262 = vmatprep.subr.mxu0 0.0
  %1263 = vmatpush1.xpose.msra.mxu0 0.0
  %1264 = vmatprep.subr.mxu0 0.0
  %1265 = vmatpush1.xpose.msra.mxu0 0.0
  %1266 = vmatprep.subr.mxu0 0.0
  %1267 = vmatpush1.xpose.msra.mxu0 0.0
  %1268 = vmatprep.subr.mxu0 0.0
  %1269 = vmatpush1.xpose.msra.mxu0 0.0
  %1270 = vmatprep.subr.mxu0 0.0
  %1271 = vmatpush1.xpose.msra.mxu0 0.0
  %1272 = vmatprep.subr.mxu0 0.0
  %1273 = vmatpush1.xpose.msra.mxu0 0.0
  %1274 = vmatprep.subr.mxu0 0.0
  %1275 = vmatpush1.xpose.msra.mxu0 0.0
  %1276 = vmatprep.subr.mxu0 0.0
  %1277 = vmatpush1.xpose.msra.mxu0 0.0
  %1278 = vmatprep.subr.mxu0 0.0
  %1279 = vmatpush1.xpose.msra.mxu0 0.0
  %1280 = vmatprep.subr.mxu0 0.0
  %1281 = vmatpush1.xpose.msra.mxu0 0.0
  %1282 = vmatprep.mubr.f32.mxu0 0.0
  %1283 = vmatmul.mubr.f32.gmra.mrb[0].mxu0 %v1210
  %v1284 = vpop.f32.mrb[0].mxu0
  %v1285 = vadd.f32 %v128, %v1284
  %v1286 = vpop.f32.mrb[0].mxu0
  %1287 = vmatprep.mubr.f32.mxu0 0.0
  %1288 = vmatmul.mubr.f32.gmra.mrb[0].mxu0 %v1212
  %v1289 = vpop.f32.mrb[0].mxu0
  %v1290 = vadd.f32 %v129, %v1289
  %v1291 = vpop.f32.mrb[0].mxu0
  %1292 = vdwg.mxu0
  %v1293 = vsel %vm730, %v1285, -inf
  %1294 = vmax.xlane.f32.xlu0 %v1293
  %v1295 = vpop.xlane.xlu0 %1294
  %v1296 = vsel %vm730, %v1290, -inf
  %1297 = vmax.xlane.f32.xlu0 %v1296
  %v1298 = vpop.xlane.xlu0 %1297
  %v1299 = vsub.f32 %v1285, %v1295
  %v1300 = vsub.f32 %v1290, %v1298
  %v1301 = vmul.f32 %v1299, 1.442695
  %v1302 = vpow.pop %v1301
  %v1303 = vmul.f32 %v1300, 1.442695
  %v1304 = vpow.pop %v1303
  %v1305 = vsel %vm730, %v1302, 0.0
  %1306 = vadd.xlane.f32.xlu0 %v1305
  %v1307 = vpop.xlane.xlu0 %1306
  %v1308 = vsel %vm730, %v1304, 0.0
  %1309 = vadd.xlane.f32.xlu0 %v1308
  %v1310 = vpop.xlane.xlu0 %1309
  %v1311 = vrcp.pop %v1307
  %v1312 = vrcp.pop %v1310
  %v1313 = vmul.f32 %v1302, %v1311
  %v1314 = vmul.f32 %v1304, %v1312
  %1315 = vrot.lane.b32.xlu0 %v254, 48
  %v1316 = vpop.permute.xlu0 %1315
  %1317 = vrot.lane.b32.xlu0 %v259, 48
  %v1318 = vpop.permute.xlu0 %1317
  %v1322 = vsel %vm730, %v1313, 0
  %v1325 = vsel %vm730, %v1314, 0
  %1327 = vmatprep.subr.mxu0 0.0
  %1328 = vmatpush1.msra.mxu0 %v1316
  %1329 = vmatprep.subr.mxu0 0.0
  %1330 = vmatpush1.msra.mxu0 %v1318
  %1331 = vmatprep.subr.mxu0 0.0
  %1332 = vmatpush1.msra.mxu0 0.0
  %1333 = vmatprep.subr.mxu0 0.0
  %1334 = vmatpush1.msra.mxu0 0.0
  %1335 = vmatprep.subr.mxu0 0.0
  %1336 = vmatpush1.msra.mxu0 0.0
  %1337 = vmatprep.subr.mxu0 0.0
  %1338 = vmatpush1.msra.mxu0 0.0
  %1339 = vmatprep.subr.mxu0 0.0
  %1340 = vmatpush1.msra.mxu0 0.0
  %1341 = vmatprep.subr.mxu0 0.0
  %1342 = vmatpush1.msra.mxu0 0.0
  %1343 = vmatprep.subr.mxu0 0.0
  %1344 = vmatpush1.msra.mxu0 0.0
  %1345 = vmatprep.subr.mxu0 0.0
  %1346 = vmatpush1.msra.mxu0 0.0
  %1347 = vmatprep.subr.mxu0 0.0
  %1348 = vmatpush1.msra.mxu0 0.0
  %1349 = vmatprep.subr.mxu0 0.0
  %1350 = vmatpush1.msra.mxu0 0.0
  %1351 = vmatprep.subr.mxu0 0.0
  %1352 = vmatpush1.msra.mxu0 0.0
  %1353 = vmatprep.subr.mxu0 0.0
  %1354 = vmatpush1.msra.mxu0 0.0
  %1355 = vmatprep.subr.mxu0 0.0
  %1356 = vmatpush1.msra.mxu0 0.0
  %1357 = vmatprep.subr.mxu0 0.0
  %1358 = vmatpush1.msra.mxu0 0.0
  %1359 = vmatprep.subr.mxu0 0.0
  %1360 = vmatpush1.msra.mxu0 0.0
  %1361 = vmatprep.subr.mxu0 0.0
  %1362 = vmatpush1.msra.mxu0 0.0
  %1363 = vmatprep.subr.mxu0 0.0
  %1364 = vmatpush1.msra.mxu0 0.0
  %1365 = vmatprep.subr.mxu0 0.0
  %1366 = vmatpush1.msra.mxu0 0.0
  %1367 = vmatprep.subr.mxu0 0.0
  %1368 = vmatpush1.msra.mxu0 0.0
  %1369 = vmatprep.subr.mxu0 0.0
  %1370 = vmatpush1.msra.mxu0 0.0
  %1371 = vmatprep.subr.mxu0 0.0
  %1372 = vmatpush1.msra.mxu0 0.0
  %1373 = vmatprep.subr.mxu0 0.0
  %1374 = vmatpush1.msra.mxu0 0.0
  %1375 = vmatprep.subr.mxu0 0.0
  %1376 = vmatpush1.msra.mxu0 0.0
  %1377 = vmatprep.subr.mxu0 0.0
  %1378 = vmatpush1.msra.mxu0 0.0
  %1379 = vmatprep.subr.mxu0 0.0
  %1380 = vmatpush1.msra.mxu0 0.0
  %1381 = vmatprep.subr.mxu0 0.0
  %1382 = vmatpush1.msra.mxu0 0.0
  %1383 = vmatprep.subr.mxu0 0.0
  %1384 = vmatpush1.msra.mxu0 0.0
  %1385 = vmatprep.subr.mxu0 0.0
  %1386 = vmatpush1.msra.mxu0 0.0
  %1387 = vmatprep.subr.mxu0 0.0
  %1388 = vmatpush1.msra.mxu0 0.0
  %1389 = vmatprep.subr.mxu0 0.0
  %1390 = vmatpush1.msra.mxu0 0.0
  %1391 = vmatprep.mubr.f32.mxu0 0.0
  %1392 = vmatmul.mubr.f32.gmra.mrb[0].mxu0 %v1322
  %v1393 = vpop.f32.mrb[0].mxu0
  %v1394 = vadd.f32 0.0, %v1393
  %v1395 = vpop.f32.mrb[0].mxu0
  %1396 = vmatprep.mubr.f32.mxu0 0.0
  %1397 = vmatmul.mubr.f32.gmra.mrb[0].mxu0 %v1325
  %v1398 = vpop.f32.mrb[0].mxu0
  %v1399 = vadd.f32 0.0, %v1398
  %v1400 = vpop.f32.mrb[0].mxu0
  %1401 = vdwg.mxu0
  %v1403 = vsel %vm644, %v1394, 0
  %v1406 = vsel %vm644, %v1399, 0
  %1408 = vmatprep.subr.mxu0 0.0
  %1409 = vmatpush1.msra.mxu0 %v636
  %1410 = vmatprep.subr.mxu0 0.0
  %1411 = vmatpush1.msra.mxu0 0.0
  %1412 = vmatprep.subr.mxu0 0.0
  %1413 = vmatpush1.msra.mxu0 0.0
  %1414 = vmatprep.subr.mxu0 0.0
  %1415 = vmatpush1.msra.mxu0 0.0
  %1416 = vmatprep.subr.mxu0 0.0
  %1417 = vmatpush1.msra.mxu0 0.0
  %1418 = vmatprep.subr.mxu0 0.0
  %1419 = vmatpush1.msra.mxu0 0.0
  %1420 = vmatprep.subr.mxu0 0.0
  %1421 = vmatpush1.msra.mxu0 0.0
  %1422 = vmatprep.subr.mxu0 0.0
  %1423 = vmatpush1.msra.mxu0 0.0
  %1424 = vmatprep.subr.mxu0 0.0
  %1425 = vmatpush1.msra.mxu0 0.0
  %1426 = vmatprep.subr.mxu0 0.0
  %1427 = vmatpush1.msra.mxu0 0.0
  %1428 = vmatprep.subr.mxu0 0.0
  %1429 = vmatpush1.msra.mxu0 0.0
  %1430 = vmatprep.subr.mxu0 0.0
  %1431 = vmatpush1.msra.mxu0 0.0
  %1432 = vmatprep.subr.mxu0 0.0
  %1433 = vmatpush1.msra.mxu0 0.0
  %1434 = vmatprep.subr.mxu0 0.0
  %1435 = vmatpush1.msra.mxu0 0.0
  %1436 = vmatprep.subr.mxu0 0.0
  %1437 = vmatpush1.msra.mxu0 0.0
  %1438 = vmatprep.subr.mxu0 0.0
  %1439 = vmatpush1.msra.mxu0 0.0
  %1440 = vmatprep.subr.mxu0 0.0
  %1441 = vmatpush1.msra.mxu0 0.0
  %1442 = vmatprep.subr.mxu0 0.0
  %1443 = vmatpush1.msra.mxu0 0.0
  %1444 = vmatprep.subr.mxu0 0.0
  %1445 = vmatpush1.msra.mxu0 0.0
  %1446 = vmatprep.subr.mxu0 0.0
  %1447 = vmatpush1.msra.mxu0 0.0
  %1448 = vmatprep.subr.mxu0 0.0
  %1449 = vmatpush1.msra.mxu0 0.0
  %1450 = vmatprep.subr.mxu0 0.0
  %1451 = vmatpush1.msra.mxu0 0.0
  %1452 = vmatprep.subr.mxu0 0.0
  %1453 = vmatpush1.msra.mxu0 0.0
  %1454 = vmatprep.subr.mxu0 0.0
  %1455 = vmatpush1.msra.mxu0 0.0
  %1456 = vmatprep.subr.mxu0 0.0
  %1457 = vmatpush1.msra.mxu0 0.0
  %1458 = vmatprep.subr.mxu0 0.0
  %1459 = vmatpush1.msra.mxu0 0.0
  %1460 = vmatprep.subr.mxu0 0.0
  %1461 = vmatpush1.msra.mxu0 0.0
  %1462 = vmatprep.subr.mxu0 0.0
  %1463 = vmatpush1.msra.mxu0 0.0
  %1464 = vmatprep.subr.mxu0 0.0
  %1465 = vmatpush1.msra.mxu0 0.0
  %1466 = vmatprep.subr.mxu0 0.0
  %1467 = vmatpush1.msra.mxu0 0.0
  %1468 = vmatprep.subr.mxu0 0.0
  %1469 = vmatpush1.msra.mxu0 0.0
  %1470 = vmatprep.subr.mxu0 0.0
  %1471 = vmatpush1.msra.mxu0 0.0
  %1472 = vmatprep.mubr.f32.mxu0 0.0
  %1473 = vmatmul.mubr.f32.gmra.mrb[0].mxu0 %v1403
  %v1474 = vpop.f32.mrb[0].mxu0
  %v1475 = vadd.f32 0.0, %v1474
  %v1476 = vpop.f32.mrb[0].mxu0
  %1477 = vmatprep.mubr.f32.mxu0 0.0
  %1478 = vmatmul.mubr.f32.gmra.mrb[0].mxu0 %v1406
  %v1479 = vpop.f32.mrb[0].mxu0
  %v1480 = vadd.f32 0.0, %v1479
  %v1481 = vpop.f32.mrb[0].mxu0
  %1482 = vdwg.mxu0
  %v1483 = vadd.f32 %v1194, %v1475
  %v1484 = vadd.f32 %v1199, %v1480
  %1485 = vrot.lane.b32.xlu0 %v436, 104
  %v1486 = vpop.permute.xlu0 %1485
  %1487 = vrot.lane.b32.xlu0 %v437, 104
  %v1488 = vpop.permute.xlu0 %1487
  %1489 = vrot.lane.b32.xlu0 %v632, 72
  %v1490 = vpop.permute.xlu0 %1489
  %1491 = vrot.lane.b32.xlu0 %v633, 72
  %v1492 = vpop.permute.xlu0 %1491
  %v1493 = vsel %vm644, %v1486, 0
  %v1495 = vsel %vm644, %v1488, 0
  %v1497 = vsel %vm644, %v1490, 0
  %v1499 = vsel %vm644, %v1492, 0
  %1501 = vmatprep.subr.mxu0 0.0
  %1502 = vmatpush1.xpose.msra.mxu0 %v1497
  %1503 = vmatprep.subr.mxu0 0.0
  %1504 = vmatpush1.xpose.msra.mxu0 %v1499
  %1505 = vmatprep.subr.mxu0 0.0
  %1506 = vmatpush1.xpose.msra.mxu0 0.0
  %1507 = vmatprep.subr.mxu0 0.0
  %1508 = vmatpush1.xpose.msra.mxu0 0.0
  %1509 = vmatprep.subr.mxu0 0.0
  %1510 = vmatpush1.xpose.msra.mxu0 0.0
  %1511 = vmatprep.subr.mxu0 0.0
  %1512 = vmatpush1.xpose.msra.mxu0 0.0
  %1513 = vmatprep.subr.mxu0 0.0
  %1514 = vmatpush1.xpose.msra.mxu0 0.0
  %1515 = vmatprep.subr.mxu0 0.0
  %1516 = vmatpush1.xpose.msra.mxu0 0.0
  %1517 = vmatprep.subr.mxu0 0.0
  %1518 = vmatpush1.xpose.msra.mxu0 0.0
  %1519 = vmatprep.subr.mxu0 0.0
  %1520 = vmatpush1.xpose.msra.mxu0 0.0
  %1521 = vmatprep.subr.mxu0 0.0
  %1522 = vmatpush1.xpose.msra.mxu0 0.0
  %1523 = vmatprep.subr.mxu0 0.0
  %1524 = vmatpush1.xpose.msra.mxu0 0.0
  %1525 = vmatprep.subr.mxu0 0.0
  %1526 = vmatpush1.xpose.msra.mxu0 0.0
  %1527 = vmatprep.subr.mxu0 0.0
  %1528 = vmatpush1.xpose.msra.mxu0 0.0
  %1529 = vmatprep.subr.mxu0 0.0
  %1530 = vmatpush1.xpose.msra.mxu0 0.0
  %1531 = vmatprep.subr.mxu0 0.0
  %1532 = vmatpush1.xpose.msra.mxu0 0.0
  %1533 = vmatprep.subr.mxu0 0.0
  %1534 = vmatpush1.xpose.msra.mxu0 0.0
  %1535 = vmatprep.subr.mxu0 0.0
  %1536 = vmatpush1.xpose.msra.mxu0 0.0
  %1537 = vmatprep.subr.mxu0 0.0
  %1538 = vmatpush1.xpose.msra.mxu0 0.0
  %1539 = vmatprep.subr.mxu0 0.0
  %1540 = vmatpush1.xpose.msra.mxu0 0.0
  %1541 = vmatprep.subr.mxu0 0.0
  %1542 = vmatpush1.xpose.msra.mxu0 0.0
  %1543 = vmatprep.subr.mxu0 0.0
  %1544 = vmatpush1.xpose.msra.mxu0 0.0
  %1545 = vmatprep.subr.mxu0 0.0
  %1546 = vmatpush1.xpose.msra.mxu0 0.0
  %1547 = vmatprep.subr.mxu0 0.0
  %1548 = vmatpush1.xpose.msra.mxu0 0.0
  %1549 = vmatprep.subr.mxu0 0.0
  %1550 = vmatpush1.xpose.msra.mxu0 0.0
  %1551 = vmatprep.subr.mxu0 0.0
  %1552 = vmatpush1.xpose.msra.mxu0 0.0
  %1553 = vmatprep.subr.mxu0 0.0
  %1554 = vmatpush1.xpose.msra.mxu0 0.0
  %1555 = vmatprep.subr.mxu0 0.0
  %1556 = vmatpush1.xpose.msra.mxu0 0.0
  %1557 = vmatprep.subr.mxu0 0.0
  %1558 = vmatpush1.xpose.msra.mxu0 0.0
  %1559 = vmatprep.subr.mxu0 0.0
  %1560 = vmatpush1.xpose.msra.mxu0 0.0
  %1561 = vmatprep.subr.mxu0 0.0
  %1562 = vmatpush1.xpose.msra.mxu0 0.0
  %1563 = vmatprep.subr.mxu0 0.0
  %1564 = vmatpush1.xpose.msra.mxu0 0.0
  %1565 = vmatprep.mubr.f32.mxu0 0.0
  %1566 = vmatmul.mubr.f32.gmra.mrb[0].mxu0 %v1493
  %v1567 = vpop.f32.mrb[0].mxu0
  %v1568 = vadd.f32 %v128, %v1567
  %v1569 = vpop.f32.mrb[0].mxu0
  %1570 = vmatprep.mubr.f32.mxu0 0.0
  %1571 = vmatmul.mubr.f32.gmra.mrb[0].mxu0 %v1495
  %v1572 = vpop.f32.mrb[0].mxu0
  %v1573 = vadd.f32 %v129, %v1572
  %v1574 = vpop.f32.mrb[0].mxu0
  %1575 = vdwg.mxu0
  %v1576 = vsel %vm730, %v1568, -inf
  %1577 = vmax.xlane.f32.xlu0 %v1576
  %v1578 = vpop.xlane.xlu0 %1577
  %v1579 = vsel %vm730, %v1573, -inf
  %1580 = vmax.xlane.f32.xlu0 %v1579
  %v1581 = vpop.xlane.xlu0 %1580
  %v1582 = vsub.f32 %v1568, %v1578
  %v1583 = vsub.f32 %v1573, %v1581
  %v1584 = vmul.f32 %v1582, 1.442695
  %v1585 = vpow.pop %v1584
  %v1586 = vmul.f32 %v1583, 1.442695
  %v1587 = vpow.pop %v1586
  %v1588 = vsel %vm730, %v1585, 0.0
  %1589 = vadd.xlane.f32.xlu0 %v1588
  %v1590 = vpop.xlane.xlu0 %1589
  %v1591 = vsel %vm730, %v1587, 0.0
  %1592 = vadd.xlane.f32.xlu0 %v1591
  %v1593 = vpop.xlane.xlu0 %1592
  %v1594 = vrcp.pop %v1590
  %v1595 = vrcp.pop %v1593
  %v1596 = vmul.f32 %v1585, %v1594
  %v1597 = vmul.f32 %v1587, %v1595
  %1598 = vrot.lane.b32.xlu0 %v254, 40
  %v1599 = vpop.permute.xlu0 %1598
  %1600 = vrot.lane.b32.xlu0 %v259, 40
  %v1601 = vpop.permute.xlu0 %1600
  %v1605 = vsel %vm730, %v1596, 0
  %v1608 = vsel %vm730, %v1597, 0
  %1610 = vmatprep.subr.mxu0 0.0
  %1611 = vmatpush1.msra.mxu0 %v1599
  %1612 = vmatprep.subr.mxu0 0.0
  %1613 = vmatpush1.msra.mxu0 %v1601
  %1614 = vmatprep.subr.mxu0 0.0
  %1615 = vmatpush1.msra.mxu0 0.0
  %1616 = vmatprep.subr.mxu0 0.0
  %1617 = vmatpush1.msra.mxu0 0.0
  %1618 = vmatprep.subr.mxu0 0.0
  %1619 = vmatpush1.msra.mxu0 0.0
  %1620 = vmatprep.subr.mxu0 0.0
  %1621 = vmatpush1.msra.mxu0 0.0
  %1622 = vmatprep.subr.mxu0 0.0
  %1623 = vmatpush1.msra.mxu0 0.0
  %1624 = vmatprep.subr.mxu0 0.0
  %1625 = vmatpush1.msra.mxu0 0.0
  %1626 = vmatprep.subr.mxu0 0.0
  %1627 = vmatpush1.msra.mxu0 0.0
  %1628 = vmatprep.subr.mxu0 0.0
  %1629 = vmatpush1.msra.mxu0 0.0
  %1630 = vmatprep.subr.mxu0 0.0
  %1631 = vmatpush1.msra.mxu0 0.0
  %1632 = vmatprep.subr.mxu0 0.0
  %1633 = vmatpush1.msra.mxu0 0.0
  %1634 = vmatprep.subr.mxu0 0.0
  %1635 = vmatpush1.msra.mxu0 0.0
  %1636 = vmatprep.subr.mxu0 0.0
  %1637 = vmatpush1.msra.mxu0 0.0
  %1638 = vmatprep.subr.mxu0 0.0
  %1639 = vmatpush1.msra.mxu0 0.0
  %1640 = vmatprep.subr.mxu0 0.0
  %1641 = vmatpush1.msra.mxu0 0.0
  %1642 = vmatprep.subr.mxu0 0.0
  %1643 = vmatpush1.msra.mxu0 0.0
  %1644 = vmatprep.subr.mxu0 0.0
  %1645 = vmatpush1.msra.mxu0 0.0
  %1646 = vmatprep.subr.mxu0 0.0
  %1647 = vmatpush1.msra.mxu0 0.0
  %1648 = vmatprep.subr.mxu0 0.0
  %1649 = vmatpush1.msra.mxu0 0.0
  %1650 = vmatprep.subr.mxu0 0.0
  %1651 = vmatpush1.msra.mxu0 0.0
  %1652 = vmatprep.subr.mxu0 0.0
  %1653 = vmatpush1.msra.mxu0 0.0
  %1654 = vmatprep.subr.mxu0 0.0
  %1655 = vmatpush1.msra.mxu0 0.0
  %1656 = vmatprep.subr.mxu0 0.0
  %1657 = vmatpush1.msra.mxu0 0.0
  %1658 = vmatprep.subr.mxu0 0.0
  %1659 = vmatpush1.msra.mxu0 0.0
  %1660 = vmatprep.subr.mxu0 0.0
  %1661 = vmatpush1.msra.mxu0 0.0
  %1662 = vmatprep.subr.mxu0 0.0
  %1663 = vmatpush1.msra.mxu0 0.0
  %1664 = vmatprep.subr.mxu0 0.0
  %1665 = vmatpush1.msra.mxu0 0.0
  %1666 = vmatprep.subr.mxu0 0.0
  %1667 = vmatpush1.msra.mxu0 0.0
  %1668 = vmatprep.subr.mxu0 0.0
  %1669 = vmatpush1.msra.mxu0 0.0
  %1670 = vmatprep.subr.mxu0 0.0
  %1671 = vmatpush1.msra.mxu0 0.0
  %1672 = vmatprep.subr.mxu0 0.0
  %1673 = vmatpush1.msra.mxu0 0.0
  %1674 = vmatprep.mubr.f32.mxu0 0.0
  %1675 = vmatmul.mubr.f32.gmra.mrb[0].mxu0 %v1605
  %v1676 = vpop.f32.mrb[0].mxu0
  %v1677 = vadd.f32 0.0, %v1676
  %v1678 = vpop.f32.mrb[0].mxu0
  %1679 = vmatprep.mubr.f32.mxu0 0.0
  %1680 = vmatmul.mubr.f32.gmra.mrb[0].mxu0 %v1608
  %v1681 = vpop.f32.mrb[0].mxu0
  %v1682 = vadd.f32 0.0, %v1681
  %v1683 = vpop.f32.mrb[0].mxu0
  %1684 = vdwg.mxu0
  %v1686 = vsel %vm644, %v1677, 0
  %v1689 = vsel %vm644, %v1682, 0
  %1691 = vmatprep.subr.mxu0 0.0
  %1692 = vmatpush1.msra.mxu0 %v637
  %1693 = vmatprep.subr.mxu0 0.0
  %1694 = vmatpush1.msra.mxu0 0.0
  %1695 = vmatprep.subr.mxu0 0.0
  %1696 = vmatpush1.msra.mxu0 0.0
  %1697 = vmatprep.subr.mxu0 0.0
  %1698 = vmatpush1.msra.mxu0 0.0
  %1699 = vmatprep.subr.mxu0 0.0
  %1700 = vmatpush1.msra.mxu0 0.0
  %1701 = vmatprep.subr.mxu0 0.0
  %1702 = vmatpush1.msra.mxu0 0.0
  %1703 = vmatprep.subr.mxu0 0.0
  %1704 = vmatpush1.msra.mxu0 0.0
  %1705 = vmatprep.subr.mxu0 0.0
  %1706 = vmatpush1.msra.mxu0 0.0
  %1707 = vmatprep.subr.mxu0 0.0
  %1708 = vmatpush1.msra.mxu0 0.0
  %1709 = vmatprep.subr.mxu0 0.0
  %1710 = vmatpush1.msra.mxu0 0.0
  %1711 = vmatprep.subr.mxu0 0.0
  %1712 = vmatpush1.msra.mxu0 0.0
  %1713 = vmatprep.subr.mxu0 0.0
  %1714 = vmatpush1.msra.mxu0 0.0
  %1715 = vmatprep.subr.mxu0 0.0
  %1716 = vmatpush1.msra.mxu0 0.0
  %1717 = vmatprep.subr.mxu0 0.0
  %1718 = vmatpush1.msra.mxu0 0.0
  %1719 = vmatprep.subr.mxu0 0.0
  %1720 = vmatpush1.msra.mxu0 0.0
  %1721 = vmatprep.subr.mxu0 0.0
  %1722 = vmatpush1.msra.mxu0 0.0
  %1723 = vmatprep.subr.mxu0 0.0
  %1724 = vmatpush1.msra.mxu0 0.0
  %1725 = vmatprep.subr.mxu0 0.0
  %1726 = vmatpush1.msra.mxu0 0.0
  %1727 = vmatprep.subr.mxu0 0.0
  %1728 = vmatpush1.msra.mxu0 0.0
  %1729 = vmatprep.subr.mxu0 0.0
  %1730 = vmatpush1.msra.mxu0 0.0
  %1731 = vmatprep.subr.mxu0 0.0
  %1732 = vmatpush1.msra.mxu0 0.0
  %1733 = vmatprep.subr.mxu0 0.0
  %1734 = vmatpush1.msra.mxu0 0.0
  %1735 = vmatprep.subr.mxu0 0.0
  %1736 = vmatpush1.msra.mxu0 0.0
  %1737 = vmatprep.subr.mxu0 0.0
  %1738 = vmatpush1.msra.mxu0 0.0
  %1739 = vmatprep.subr.mxu0 0.0
  %1740 = vmatpush1.msra.mxu0 0.0
  %1741 = vmatprep.subr.mxu0 0.0
  %1742 = vmatpush1.msra.mxu0 0.0
  %1743 = vmatprep.subr.mxu0 0.0
  %1744 = vmatpush1.msra.mxu0 0.0
  %1745 = vmatprep.subr.mxu0 0.0
  %1746 = vmatpush1.msra.mxu0 0.0
  %1747 = vmatprep.subr.mxu0 0.0
  %1748 = vmatpush1.msra.mxu0 0.0
  %1749 = vmatprep.subr.mxu0 0.0
  %1750 = vmatpush1.msra.mxu0 0.0
  %1751 = vmatprep.subr.mxu0 0.0
  %1752 = vmatpush1.msra.mxu0 0.0
  %1753 = vmatprep.subr.mxu0 0.0
  %1754 = vmatpush1.msra.mxu0 0.0
  %1755 = vmatprep.mubr.f32.mxu0 0.0
  %1756 = vmatmul.mubr.f32.gmra.mrb[0].mxu0 %v1686
  %v1757 = vpop.f32.mrb[0].mxu0
  %v1758 = vadd.f32 0.0, %v1757
  %v1759 = vpop.f32.mrb[0].mxu0
  %1760 = vmatprep.mubr.f32.mxu0 0.0
  %1761 = vmatmul.mubr.f32.gmra.mrb[0].mxu0 %v1689
  %v1762 = vpop.f32.mrb[0].mxu0
  %v1763 = vadd.f32 0.0, %v1762
  %v1764 = vpop.f32.mrb[0].mxu0
  %1765 = vdwg.mxu0
  %v1766 = vadd.f32 %v1483, %v1758
  %v1767 = vadd.f32 %v1484, %v1763
  %v1768 = vadd.f32 %v120, %v1766
  %v1769 = vadd.f32 %v125, %v1767
  %v1770 = vld [vmem:[%s1 + $0x198] sm:$0x1]
  %v1771 = vlaneseq
  %v1772 = vshrl.u32 %v1771, 7
  %v1773 = vsub.s32 0, %v1772
  %v1774 = vrot.slane %v1770, %v1773
  %v1775 = vadd.f32 %v1768, %v1774
  %v1776 = vadd.f32 %v1769, %v1774
  %v1777 = vld [vmem:[%s1 + $0x1a0] sm:$0x1]
  %v1778 = vld [vmem:[%s1 + $0x1a8] sm:$0x1]
  %v1779 = vsel %vm132, %v1775, 0.0
  %1780 = vadd.xlane.f32.xlu0 %v1779
  %v1781 = vpop.xlane.xlu0 %1780
  %v1782 = vsel %vm132, %v1776, 0.0
  %1783 = vadd.xlane.f32.xlu0 %v1782
  %v1784 = vpop.xlane.xlu0 %1783
  %v1785 = vmul.f32 %v1781, %v139
  %v1786 = vmul.f32 %v1784, %v139
  %v1787 = vsub.f32 %v1775, %v1785
  %v1788 = vsub.f32 %v1776, %v1786
  %v1789 = vmul.f32 %v1787, %v1787
  %v1790 = vmul.f32 %v1788, %v1788
  %v1791 = vsel %vm132, %v1789, 0.0
  %1792 = vadd.xlane.f32.xlu0 %v1791
  %v1793 = vpop.xlane.xlu0 %1792
  %v1794 = vsel %vm132, %v1790, 0.0
  %1795 = vadd.xlane.f32.xlu0 %v1794
  %v1796 = vpop.xlane.xlu0 %1795
  %v1797 = vmul.f32 %v1793, %v139
  %v1798 = vmul.f32 %v1796, %v139
  %v1799 = vadd.f32 %v1797, 1e-06
  %v1800 = vadd.f32 %v1798, 1e-06
  %v1801 = vrsqrt.pop %v1799
  %v1802 = vrsqrt.pop %v1800
  %v1803 = vmul.f32 %v1787, %v1801
  %v1804 = vmul.f32 %v1788, %v1802
  %v1805 = vlaneseq
  %v1806 = vshrl.u32 %v1805, 7
  %v1807 = vsub.s32 0, %v1806
  %v1808 = vrot.slane %v1777, %v1807
  %v1809 = vmul.f32 %v1803, %v1808
  %v1810 = vmul.f32 %v1804, %v1808
  %v1811 = vlaneseq
  %v1812 = vshrl.u32 %v1811, 7
  %v1813 = vsub.s32 0, %v1812
  %v1814 = vrot.slane %v1778, %v1813
  %v1815 = vadd.f32 %v1809, %v1814
  %v1816 = vadd.f32 %v1810, %v1814
  %v1817 = vld [vmem:[%s1 + $0x1b0] sm:$0xff]
  %v1818 = vld [vmem:[%s1 + $0x1b8] sm:$0xff]
  %v1819 = vld [vmem:[%s1 + $0x1c0] sm:$0xff]
  %v1820 = vld [vmem:[%s1 + $0x1c8] sm:$0xff]
  %v1821 = vld [vmem:[%s1 + $0x1d0] sm:$0x1]
  %v1822 = vlaneseq
  %v1823 = vshrl.u32 %v1822, 7
  %v1824 = vsub.s32 0, %v1823
  %v1825 = vrot.slane %v1821, %v1824
  %v1827 = vsel %vm132, %v1815, 0
  %v1830 = vsel %vm132, %v1816, 0
  %1832 = vmatprep.subr.mxu0 0.0
  %1833 = vmatpush1.msra.mxu0 %v1817
  %1834 = vmatprep.subr.mxu0 0.0
  %1835 = vmatpush1.msra.mxu0 %v1818
  %1836 = vmatprep.subr.mxu0 0.0
  %1837 = vmatpush1.msra.mxu0 %v1819
  %1838 = vmatprep.subr.mxu0 0.0
  %1839 = vmatpush1.msra.mxu0 %v1820
  %1840 = vmatprep.subr.mxu0 0.0
  %1841 = vmatpush1.msra.mxu0 0.0
  %1842 = vmatprep.subr.mxu0 0.0
  %1843 = vmatpush1.msra.mxu0 0.0
  %1844 = vmatprep.subr.mxu0 0.0
  %1845 = vmatpush1.msra.mxu0 0.0
  %1846 = vmatprep.subr.mxu0 0.0
  %1847 = vmatpush1.msra.mxu0 0.0
  %1848 = vmatprep.subr.mxu0 0.0
  %1849 = vmatpush1.msra.mxu0 0.0
  %1850 = vmatprep.subr.mxu0 0.0
  %1851 = vmatpush1.msra.mxu0 0.0
  %1852 = vmatprep.subr.mxu0 0.0
  %1853 = vmatpush1.msra.mxu0 0.0
  %1854 = vmatprep.subr.mxu0 0.0
  %1855 = vmatpush1.msra.mxu0 0.0
  %1856 = vmatprep.subr.mxu0 0.0
  %1857 = vmatpush1.msra.mxu0 0.0
  %1858 = vmatprep.subr.mxu0 0.0
  %1859 = vmatpush1.msra.mxu0 0.0
  %1860 = vmatprep.subr.mxu0 0.0
  %1861 = vmatpush1.msra.mxu0 0.0
  %1862 = vmatprep.subr.mxu0 0.0
  %1863 = vmatpush1.msra.mxu0 0.0
  %1864 = vmatprep.subr.mxu0 0.0
  %1865 = vmatpush1.msra.mxu0 0.0
  %1866 = vmatprep.subr.mxu0 0.0
  %1867 = vmatpush1.msra.mxu0 0.0
  %1868 = vmatprep.subr.mxu0 0.0
  %1869 = vmatpush1.msra.mxu0 0.0
  %1870 = vmatprep.subr.mxu0 0.0
  %1871 = vmatpush1.msra.mxu0 0.0
  %1872 = vmatprep.subr.mxu0 0.0
  %1873 = vmatpush1.msra.mxu0 0.0
  %1874 = vmatprep.subr.mxu0 0.0
  %1875 = vmatpush1.msra.mxu0 0.0
  %1876 = vmatprep.subr.mxu0 0.0
  %1877 = vmatpush1.msra.mxu0 0.0
  %1878 = vmatprep.subr.mxu0 0.0
  %1879 = vmatpush1.msra.mxu0 0.0
  %1880 = vmatprep.subr.mxu0 0.0
  %1881 = vmatpush1.msra.mxu0 0.0
  %1882 = vmatprep.subr.mxu0 0.0
  %1883 = vmatpush1.msra.mxu0 0.0
  %1884 = vmatprep.subr.mxu0 0.0
  %1885 = vmatpush1.msra.mxu0 0.0
  %1886 = vmatprep.subr.mxu0 0.0
  %1887 = vmatpush1.msra.mxu0 0.0
  %1888 = vmatprep.subr.mxu0 0.0
  %1889 = vmatpush1.msra.mxu0 0.0
  %1890 = vmatprep.subr.mxu0 0.0
  %1891 = vmatpush1.msra.mxu0 0.0
  %1892 = vmatprep.subr.mxu0 0.0
  %1893 = vmatpush1.msra.mxu0 0.0
  %1894 = vmatprep.subr.mxu0 0.0
  %1895 = vmatpush1.msra.mxu0 0.0
  %1896 = vmatprep.mubr.f32.mxu0 0.0
  %1897 = vmatmul.mubr.f32.gmra.mrb[0].mxu0 %v1827
  %v1898 = vpop.f32.mrb[0].mxu0
  %v1899 = vadd.f32 %v1825, %v1898
  %v1900 = vpop.f32.mrb[0].mxu0
  %1901 = vmatprep.mubr.f32.mxu0 0.0
  %1902 = vmatmul.mubr.f32.gmra.mrb[0].mxu0 %v1830
  %v1903 = vpop.f32.mrb[0].mxu0
  %v1904 = vadd.f32 %v1825, %v1903
  %v1905 = vpop.f32.mrb[0].mxu0
  %1906 = vdwg.mxu0
  %v1907 = vmul.f32 %v1899, 0.5
  %v1908 = vmul.f32 %v1904, 0.5
  %v1909 = vmul.f32 %v1899, 0.70710677
  %v1910 = vmul.f32 %v1904, 0.70710677
  %v1911 = verf.f32.pop %v1909
  %v1912 = verf.f32.pop %v1910
  %v1913 = vadd.f32 %v1911, 1.0
  %v1914 = vadd.f32 %v1912, 1.0
  %v1915 = vmul.f32 %v1907, %v1913
  %v1916 = vmul.f32 %v1908, %v1914
  %v1917 = vld [vmem:[%s1 + $0x1d8] sm:$0xff]
  %v1918 = vld [vmem:[%s1 + $0x1e0] sm:$0xff]
  %v1919 = vld [vmem:[%s1 + $0x1e8] sm:$0xff]
  %v1920 = vld [vmem:[%s1 + $0x1f0] sm:$0xff]
  %v1921 = vld [vmem:[%s1 + $0x1f8] sm:$0xff]
  %v1922 = vld [vmem:[%s1 + $0x200] sm:$0xff]
  %v1923 = vld [vmem:[%s1 + $0x208] sm:$0xff]
  %v1924 = vld [vmem:[%s1 + $0x210] sm:$0xff]
  %v1925 = vld [vmem:[%s1 + $0x218] sm:$0xff]
  %v1926 = vld [vmem:[%s1 + $0x220] sm:$0xff]
  %v1927 = vld [vmem:[%s1 + $0x228] sm:$0xff]
  %v1928 = vld [vmem:[%s1 + $0x230] sm:$0xff]
  %v1929 = vld [vmem:[%s1 + $0x238] sm:$0xff]
  %v1930 = vld [vmem:[%s1 + $0x240] sm:$0xff]
  %v1931 = vld [vmem:[%s1 + $0x248] sm:$0xff]
  %v1932 = vld [vmem:[%s1 + $0x250] sm:$0xff]
  %v1933 = vld [vmem:[%s1 + $0x258] sm:$0x1]
  %v1934 = vlaneseq
  %v1935 = vshrl.u32 %v1934, 7
  %v1936 = vsub.s32 0, %v1935
  %v1937 = vrot.slane %v1933, %v1936
  %1938 = vmatprep.subr.mxu0 0.0
  %1939 = vmatpush1.msra.mxu0 %v1917
  %1940 = vmatprep.subr.mxu0 0.0
  %1941 = vmatpush1.msra.mxu0 %v1918
  %1942 = vmatprep.subr.mxu0 0.0
  %1943 = vmatpush1.msra.mxu0 %v1919
  %1944 = vmatprep.subr.mxu0 0.0
  %1945 = vmatpush1.msra.mxu0 %v1920
  %1946 = vmatprep.subr.mxu0 0.0
  %1947 = vmatpush1.msra.mxu0 %v1921
  %1948 = vmatprep.subr.mxu0 0.0
  %1949 = vmatpush1.msra.mxu0 %v1922
  %1950 = vmatprep.subr.mxu0 0.0
  %1951 = vmatpush1.msra.mxu0 %v1923
  %1952 = vmatprep.subr.mxu0 0.0
  %1953 = vmatpush1.msra.mxu0 %v1924
  %1954 = vmatprep.subr.mxu0 0.0
  %1955 = vmatpush1.msra.mxu0 %v1925
  %1956 = vmatprep.subr.mxu0 0.0
  %1957 = vmatpush1.msra.mxu0 %v1926
  %1958 = vmatprep.subr.mxu0 0.0
  %1959 = vmatpush1.msra.mxu0 %v1927
  %1960 = vmatprep.subr.mxu0 0.0
  %1961 = vmatpush1.msra.mxu0 %v1928
  %1962 = vmatprep.subr.mxu0 0.0
  %1963 = vmatpush1.msra.mxu0 %v1929
  %1964 = vmatprep.subr.mxu0 0.0
  %1965 = vmatpush1.msra.mxu0 %v1930
  %1966 = vmatprep.subr.mxu0 0.0
  %1967 = vmatpush1.msra.mxu0 %v1931
  %1968 = vmatprep.subr.mxu0 0.0
  %1969 = vmatpush1.msra.mxu0 %v1932
  %1970 = vmatprep.subr.mxu0 0.0
  %1971 = vmatpush1.msra.mxu0 0.0
  %1972 = vmatprep.subr.mxu0 0.0
  %1973 = vmatpush1.msra.mxu0 0.0
  %1974 = vmatprep.subr.mxu0 0.0
  %1975 = vmatpush1.msra.mxu0 0.0
  %1976 = vmatprep.subr.mxu0 0.0
  %1977 = vmatpush1.msra.mxu0 0.0
  %1978 = vmatprep.subr.mxu0 0.0
  %1979 = vmatpush1.msra.mxu0 0.0
  %1980 = vmatprep.subr.mxu0 0.0
  %1981 = vmatpush1.msra.mxu0 0.0
  %1982 = vmatprep.subr.mxu0 0.0
  %1983 = vmatpush1.msra.mxu0 0.0
  %1984 = vmatprep.subr.mxu0 0.0
  %1985 = vmatpush1.msra.mxu0 0.0
  %1986 = vmatprep.subr.mxu0 0.0
  %1987 = vmatpush1.msra.mxu0 0.0
  %1988 = vmatprep.subr.mxu0 0.0
  %1989 = vmatpush1.msra.mxu0 0.0
  %1990 = vmatprep.subr.mxu0 0.0
  %1991 = vmatpush1.msra.mxu0 0.0
  %1992 = vmatprep.subr.mxu0 0.0
  %1993 = vmatpush1.msra.mxu0 0.0
  %1994 = vmatprep.subr.mxu0 0.0
  %1995 = vmatpush1.msra.mxu0 0.0
  %1996 = vmatprep.subr.mxu0 0.0
  %1997 = vmatpush1.msra.mxu0 0.0
  %1998 = vmatprep.subr.mxu0 0.0
  %1999 = vmatpush1.msra.mxu0 0.0
  %2000 = vmatprep.subr.mxu0 0.0
  %2001 = vmatpush1.msra.mxu0 0.0
  %2002 = vmatprep.mubr.f32.mxu0 0.0
  %2003 = vmatmul.mubr.f32.gmra.mrb[0].mxu0 %v1915
  %v2004 = vpop.f32.mrb[0].mxu0
  %v2005 = vadd.f32 %v1937, %v2004
  %v2006 = vpop.f32.mrb[0].mxu0
  %2007 = vmatprep.mubr.f32.mxu0 0.0
  %2008 = vmatmul.mubr.f32.gmra.mrb[0].mxu0 %v1916
  %v2009 = vpop.f32.mrb[0].mxu0
  %v2010 = vadd.f32 %v1937, %v2009
  %v2011 = vpop.f32.mrb[0].mxu0
  %2012 = vdwg.mxu0
  %v2013 = vadd.f32 %v1775, %v2005
  %v2014 = vadd.f32 %v1776, %v2010
  %v2015 = vld [vmem:[%s1 + $0x260] sm:$0x1]
  %v2016 = vld [vmem:[%s1 + $0x268] sm:$0x1]
  %v2017 = vsel %vm132, %v2013, 0.0
  %2018 = vadd.xlane.f32.xlu0 %v2017
  %v2019 = vpop.xlane.xlu0 %2018
  %v2020 = vsel %vm132, %v2014, 0.0
  %2021 = vadd.xlane.f32.xlu0 %v2020
  %v2022 = vpop.xlane.xlu0 %2021
  %v2023 = vmul.f32 %v2019, %v139
  %v2024 = vmul.f32 %v2022, %v139
  %v2025 = vsub.f32 %v2013, %v2023
  %v2026 = vsub.f32 %v2014, %v2024
  %v2027 = vmul.f32 %v2025, %v2025
  %v2028 = vmul.f32 %v2026, %v2026
  %v2029 = vsel %vm132, %v2027, 0.0
  %2030 = vadd.xlane.f32.xlu0 %v2029
  %v2031 = vpop.xlane.xlu0 %2030
  %v2032 = vsel %vm132, %v2028, 0.0
  %2033 = vadd.xlane.f32.xlu0 %v2032
  %v2034 = vpop.xlane.xlu0 %2033
  %v2035 = vmul.f32 %v2031, %v139
  %v2036 = vmul.f32 %v2034, %v139
  %v2037 = vadd.f32 %v2035, 1e-06
  %v2038 = vadd.f32 %v2036, 1e-06
  %v2039 = vrsqrt.pop %v2037
  %v2040 = vrsqrt.pop %v2038
  %v2041 = vmul.f32 %v2025, %v2039
  %v2042 = vmul.f32 %v2026, %v2040
  %v2043 = vlaneseq
  %v2044 = vshrl.u32 %v2043, 7
  %v2045 = vsub.s32 0, %v2044
  %v2046 = vrot.slane %v2015, %v2045
  %v2047 = vmul.f32 %v2041, %v2046
  %v2048 = vmul.f32 %v2042, %v2046
  %v2049 = vlaneseq
  %v2050 = vshrl.u32 %v2049, 7
  %v2051 = vsub.s32 0, %v2050
  %v2052 = vrot.slane %v2016, %v2051
  %v2053 = vadd.f32 %v2047, %v2052
  %v2054 = vadd.f32 %v2048, %v2052
  %v2055 = vld [vmem:[%s1 + $0x270] sm:$0xff]
  %v2056 = vld [vmem:[%s1 + $0x278] sm:$0xff]
  %v2057 = vld [vmem:[%s1 + $0x280] sm:$0xff]
  %v2058 = vld [vmem:[%s1 + $0x288] sm:$0xff]
  %v2059 = vld [vmem:[%s1 + $0x290] sm:$0x1]
  %v2060 = vlaneseq
  %v2061 = vshrl.u32 %v2060, 7
  %v2062 = vsub.s32 0, %v2061
  %v2063 = vrot.slane %v2059, %v2062
  %v2065 = vsel %vm132, %v2053, 0
  %v2068 = vsel %vm132, %v2054, 0
  %2070 = vmatprep.subr.mxu0 0.0
  %2071 = vmatpush1.msra.mxu0 %v2055
  %2072 = vmatprep.subr.mxu0 0.0
  %2073 = vmatpush1.msra.mxu0 %v2056
  %2074 = vmatprep.subr.mxu0 0.0
  %2075 = vmatpush1.msra.mxu0 %v2057
  %2076 = vmatprep.subr.mxu0 0.0
  %2077 = vmatpush1.msra.mxu0 %v2058
  %2078 = vmatprep.subr.mxu0 0.0
  %2079 = vmatpush1.msra.mxu0 0.0
  %2080 = vmatprep.subr.mxu0 0.0
  %2081 = vmatpush1.msra.mxu0 0.0
  %2082 = vmatprep.subr.mxu0 0.0
  %2083 = vmatpush1.msra.mxu0 0.0
  %2084 = vmatprep.subr.mxu0 0.0
  %2085 = vmatpush1.msra.mxu0 0.0
  %2086 = vmatprep.subr.mxu0 0.0
  %2087 = vmatpush1.msra.mxu0 0.0
  %2088 = vmatprep.subr.mxu0 0.0
  %2089 = vmatpush1.msra.mxu0 0.0
  %2090 = vmatprep.subr.mxu0 0.0
  %2091 = vmatpush1.msra.mxu0 0.0
  %2092 = vmatprep.subr.mxu0 0.0
  %2093 = vmatpush1.msra.mxu0 0.0
  %2094 = vmatprep.subr.mxu0 0.0
  %2095 = vmatpush1.msra.mxu0 0.0
  %2096 = vmatprep.subr.mxu0 0.0
  %2097 = vmatpush1.msra.mxu0 0.0
  %2098 = vmatprep.subr.mxu0 0.0
  %2099 = vmatpush1.msra.mxu0 0.0
  %2100 = vmatprep.subr.mxu0 0.0
  %2101 = vmatpush1.msra.mxu0 0.0
  %2102 = vmatprep.subr.mxu0 0.0
  %2103 = vmatpush1.msra.mxu0 0.0
  %2104 = vmatprep.subr.mxu0 0.0
  %2105 = vmatpush1.msra.mxu0 0.0
  %2106 = vmatprep.subr.mxu0 0.0
  %2107 = vmatpush1.msra.mxu0 0.0
  %2108 = vmatprep.subr.mxu0 0.0
  %2109 = vmatpush1.msra.mxu0 0.0
  %2110 = vmatprep.subr.mxu0 0.0
  %2111 = vmatpush1.msra.mxu0 0.0
  %2112 = vmatprep.subr.mxu0 0.0
  %2113 = vmatpush1.msra.mxu0 0.0
  %2114 = vmatprep.subr.mxu0 0.0
  %2115 = vmatpush1.msra.mxu0 0.0
  %2116 = vmatprep.subr.mxu0 0.0
  %2117 = vmatpush1.msra.mxu0 0.0
  %2118 = vmatprep.subr.mxu0 0.0
  %2119 = vmatpush1.msra.mxu0 0.0
  %2120 = vmatprep.subr.mxu0 0.0
  %2121 = vmatpush1.msra.mxu0 0.0
  %2122 = vmatprep.subr.mxu0 0.0
  %2123 = vmatpush1.msra.mxu0 0.0
  %2124 = vmatprep.subr.mxu0 0.0
  %2125 = vmatpush1.msra.mxu0 0.0
  %2126 = vmatprep.subr.mxu0 0.0
  %2127 = vmatpush1.msra.mxu0 0.0
  %2128 = vmatprep.subr.mxu0 0.0
  %2129 = vmatpush1.msra.mxu0 0.0
  %2130 = vmatprep.subr.mxu0 0.0
  %2131 = vmatpush1.msra.mxu0 0.0
  %2132 = vmatprep.subr.mxu0 0.0
  %2133 = vmatpush1.msra.mxu0 0.0
  %2134 = vmatprep.mubr.f32.mxu0 0.0
  %2135 = vmatmul.mubr.f32.gmra.mrb[0].mxu0 %v2065
  %v2136 = vpop.f32.mrb[0].mxu0
  %v2137 = vadd.f32 %v2063, %v2136
  %v2138 = vpop.f32.mrb[0].mxu0
  %2139 = vmatprep.mubr.f32.mxu0 0.0
  %2140 = vmatmul.mubr.f32.gmra.mrb[0].mxu0 %v2068
  %v2141 = vpop.f32.mrb[0].mxu0
  %v2142 = vadd.f32 %v2063, %v2141
  %v2143 = vpop.f32.mrb[0].mxu0
  %2144 = vdwg.mxu0
  %v2146 = vsel %vm132, %v2137, 0
  %v2149 = vsel %vm132, %v2142, 0
  %2151 = vmatprep.subr.mxu0 0.0
  %2152 = vmatpush1.msra.mxu0 %v11
  %2153 = vmatprep.subr.mxu0 0.0
  %2154 = vmatpush1.msra.mxu0 %v12
  %2155 = vmatprep.subr.mxu0 0.0
  %2156 = vmatpush1.msra.mxu0 %v13
  %2157 = vmatprep.subr.mxu0 0.0
  %2158 = vmatpush1.msra.mxu0 %v14
  %2159 = vmatprep.subr.mxu0 0.0
  %2160 = vmatpush1.msra.mxu0 0.0
  %2161 = vmatprep.subr.mxu0 0.0
  %2162 = vmatpush1.msra.mxu0 0.0
  %2163 = vmatprep.subr.mxu0 0.0
  %2164 = vmatpush1.msra.mxu0 0.0
  %2165 = vmatprep.subr.mxu0 0.0
  %2166 = vmatpush1.msra.mxu0 0.0
  %2167 = vmatprep.subr.mxu0 0.0
  %2168 = vmatpush1.msra.mxu0 0.0
  %2169 = vmatprep.subr.mxu0 0.0
  %2170 = vmatpush1.msra.mxu0 0.0
  %2171 = vmatprep.subr.mxu0 0.0
  %2172 = vmatpush1.msra.mxu0 0.0
  %2173 = vmatprep.subr.mxu0 0.0
  %2174 = vmatpush1.msra.mxu0 0.0
  %2175 = vmatprep.subr.mxu0 0.0
  %2176 = vmatpush1.msra.mxu0 0.0
  %2177 = vmatprep.subr.mxu0 0.0
  %2178 = vmatpush1.msra.mxu0 0.0
  %2179 = vmatprep.subr.mxu0 0.0
  %2180 = vmatpush1.msra.mxu0 0.0
  %2181 = vmatprep.subr.mxu0 0.0
  %2182 = vmatpush1.msra.mxu0 0.0
  %2183 = vmatprep.subr.mxu0 0.0
  %2184 = vmatpush1.msra.mxu0 0.0
  %2185 = vmatprep.subr.mxu0 0.0
  %2186 = vmatpush1.msra.mxu0 0.0
  %2187 = vmatprep.subr.mxu0 0.0
  %2188 = vmatpush1.msra.mxu0 0.0
  %2189 = vmatprep.subr.mxu0 0.0
  %2190 = vmatpush1.msra.mxu0 0.0
  %2191 = vmatprep.subr.mxu0 0.0
  %2192 = vmatpush1.msra.mxu0 0.0
  %2193 = vmatprep.subr.mxu0 0.0
  %2194 = vmatpush1.msra.mxu0 0.0
  %2195 = vmatprep.subr.mxu0 0.0
  %2196 = vmatpush1.msra.mxu0 0.0
  %2197 = vmatprep.subr.mxu0 0.0
  %2198 = vmatpush1.msra.mxu0 0.0
  %2199 = vmatprep.subr.mxu0 0.0
  %2200 = vmatpush1.msra.mxu0 0.0
  %2201 = vmatprep.subr.mxu0 0.0
  %2202 = vmatpush1.msra.mxu0 0.0
  %2203 = vmatprep.subr.mxu0 0.0
  %2204 = vmatpush1.msra.mxu0 0.0
  %2205 = vmatprep.subr.mxu0 0.0
  %2206 = vmatpush1.msra.mxu0 0.0
  %2207 = vmatprep.subr.mxu0 0.0
  %2208 = vmatpush1.msra.mxu0 0.0
  %2209 = vmatprep.subr.mxu0 0.0
  %2210 = vmatpush1.msra.mxu0 0.0
  %2211 = vmatprep.subr.mxu0 0.0
  %2212 = vmatpush1.msra.mxu0 0.0
  %2213 = vmatprep.subr.mxu0 0.0
  %2214 = vmatpush1.msra.mxu0 0.0
  %2215 = vmatprep.mubr.f32.mxu0 0.0
  %2216 = vmatmul.mubr.f32.gmra.mrb[0].mxu0 %v2146
  %v2217 = vpop.f32.mrb[0].mxu0
  %v2218 = vadd.f32 0.0, %v2217
  %v2219 = vpop.f32.mrb[0].mxu0
  %2220 = vmatprep.mubr.f32.mxu0 0.0
  %2221 = vmatmul.mubr.f32.gmra.mrb[0].mxu0 %v2149
  %v2222 = vpop.f32.mrb[0].mxu0
  %v2223 = vadd.f32 0.0, %v2222
  %v2224 = vpop.f32.mrb[0].mxu0
  %2225 = vdwg.mxu0
  %v2226 = vsub.f32 %v2137, %v2218
  %v2227 = vsub.f32 %v2142, %v2223
  %v2228 = vmul.f32 %v2226, %v2226
  %v2229 = vmul.f32 %v2227, %v2227
  %v2231 = vsel %vm132, %v2228, 0
  %v2234 = vsel %vm132, %v2229, 0
  %2236 = vmatprep.subr.mxu0 0.0
  %2237 = vmatpush1.msra.mxu0 %v11
  %2238 = vmatprep.subr.mxu0 0.0
  %2239 = vmatpush1.msra.mxu0 %v12
  %2240 = vmatprep.subr.mxu0 0.0
  %2241 = vmatpush1.msra.mxu0 %v13
  %2242 = vmatprep.subr.mxu0 0.0
  %2243 = vmatpush1.msra.mxu0 %v14
  %2244 = vmatprep.subr.mxu0 0.0
  %2245 = vmatpush1.msra.mxu0 0.0
  %2246 = vmatprep.subr.mxu0 0.0
  %2247 = vmatpush1.msra.mxu0 0.0
  %2248 = vmatprep.subr.mxu0 0.0
  %2249 = vmatpush1.msra.mxu0 0.0
  %2250 = vmatprep.subr.mxu0 0.0
  %2251 = vmatpush1.msra.mxu0 0.0
  %2252 = vmatprep.subr.mxu0 0.0
  %2253 = vmatpush1.msra.mxu0 0.0
  %2254 = vmatprep.subr.mxu0 0.0
  %2255 = vmatpush1.msra.mxu0 0.0
  %2256 = vmatprep.subr.mxu0 0.0
  %2257 = vmatpush1.msra.mxu0 0.0
  %2258 = vmatprep.subr.mxu0 0.0
  %2259 = vmatpush1.msra.mxu0 0.0
  %2260 = vmatprep.subr.mxu0 0.0
  %2261 = vmatpush1.msra.mxu0 0.0
  %2262 = vmatprep.subr.mxu0 0.0
  %2263 = vmatpush1.msra.mxu0 0.0
  %2264 = vmatprep.subr.mxu0 0.0
  %2265 = vmatpush1.msra.mxu0 0.0
  %2266 = vmatprep.subr.mxu0 0.0
  %2267 = vmatpush1.msra.mxu0 0.0
  %2268 = vmatprep.subr.mxu0 0.0
  %2269 = vmatpush1.msra.mxu0 0.0
  %2270 = vmatprep.subr.mxu0 0.0
  %2271 = vmatpush1.msra.mxu0 0.0
  %2272 = vmatprep.subr.mxu0 0.0
  %2273 = vmatpush1.msra.mxu0 0.0
  %2274 = vmatprep.subr.mxu0 0.0
  %2275 = vmatpush1.msra.mxu0 0.0
  %2276 = vmatprep.subr.mxu0 0.0
  %2277 = vmatpush1.msra.mxu0 0.0
  %2278 = vmatprep.subr.mxu0 0.0
  %2279 = vmatpush1.msra.mxu0 0.0
  %2280 = vmatprep.subr.mxu0 0.0
  %2281 = vmatpush1.msra.mxu0 0.0
  %2282 = vmatprep.subr.mxu0 0.0
  %2283 = vmatpush1.msra.mxu0 0.0
  %2284 = vmatprep.subr.mxu0 0.0
  %2285 = vmatpush1.msra.mxu0 0.0
  %2286 = vmatprep.subr.mxu0 0.0
  %2287 = vmatpush1.msra.mxu0 0.0
  %2288 = vmatprep.subr.mxu0 0.0
  %2289 = vmatpush1.msra.mxu0 0.0
  %2290 = vmatprep.subr.mxu0 0.0
  %2291 = vmatpush1.msra.mxu0 0.0
  %2292 = vmatprep.subr.mxu0 0.0
  %2293 = vmatpush1.msra.mxu0 0.0
  %2294 = vmatprep.subr.mxu0 0.0
  %2295 = vmatpush1.msra.mxu0 0.0
  %2296 = vmatprep.subr.mxu0 0.0
  %2297 = vmatpush1.msra.mxu0 0.0
  %2298 = vmatprep.subr.mxu0 0.0
  %2299 = vmatpush1.msra.mxu0 0.0
  %2300 = vmatprep.mubr.f32.mxu0 0.0
  %2301 = vmatmul.mubr.f32.gmra.mrb[0].mxu0 %v2231
  %v2302 = vpop.f32.mrb[0].mxu0
  %v2303 = vadd.f32 0.0, %v2302
  %v2304 = vpop.f32.mrb[0].mxu0
  %2305 = vmatprep.mubr.f32.mxu0 0.0
  %2306 = vmatmul.mubr.f32.gmra.mrb[0].mxu0 %v2234
  %v2307 = vpop.f32.mrb[0].mxu0
  %v2308 = vadd.f32 0.0, %v2307
  %v2309 = vpop.f32.mrb[0].mxu0
  %2310 = vdwg.mxu0
  %v2311 = vmul.f32 %v2303, 1.1428572
  %v2312 = vmul.f32 %v2308, 1.1428572
  %v2313 = vmax.f32 %v2311, 1e-12
  %v2314 = vmax.f32 %v2312, 1e-12
  %v2315 = vrsqrt.pop %v2313
  %v2316 = vrsqrt.pop %v2314
  %v2317 = vmul.f32 %v2226, %v2315
  %v2318 = vmul.f32 %v2227, %v2316
  %v2319 = vmul.f32 %v2317, 0.35355338
  %v2320 = vmul.f32 %v2318, 0.35355338
  %2321 = vrot.lane.b32.xlu0 %v2137, 96
  %v2322 = vpop.permute.xlu0 %2321
  %2323 = vrot.lane.b32.xlu0 %v2142, 96
  %v2324 = vpop.permute.xlu0 %2323
  %v2325 = vsel %vm132, %v2322, 0
  %v2327 = vsel %vm132, %v2324, 0
  %2329 = vmatprep.subr.mxu0 0.0
  %2330 = vmatpush1.msra.mxu0 %v11
  %2331 = vmatprep.subr.mxu0 0.0
  %2332 = vmatpush1.msra.mxu0 %v12
  %2333 = vmatprep.subr.mxu0 0.0
  %2334 = vmatpush1.msra.mxu0 %v13
  %2335 = vmatprep.subr.mxu0 0.0
  %2336 = vmatpush1.msra.mxu0 %v14
  %2337 = vmatprep.subr.mxu0 0.0
  %2338 = vmatpush1.msra.mxu0 0.0
  %2339 = vmatprep.subr.mxu0 0.0
  %2340 = vmatpush1.msra.mxu0 0.0
  %2341 = vmatprep.subr.mxu0 0.0
  %2342 = vmatpush1.msra.mxu0 0.0
  %2343 = vmatprep.subr.mxu0 0.0
  %2344 = vmatpush1.msra.mxu0 0.0
  %2345 = vmatprep.subr.mxu0 0.0
  %2346 = vmatpush1.msra.mxu0 0.0
  %2347 = vmatprep.subr.mxu0 0.0
  %2348 = vmatpush1.msra.mxu0 0.0
  %2349 = vmatprep.subr.mxu0 0.0
  %2350 = vmatpush1.msra.mxu0 0.0
  %2351 = vmatprep.subr.mxu0 0.0
  %2352 = vmatpush1.msra.mxu0 0.0
  %2353 = vmatprep.subr.mxu0 0.0
  %2354 = vmatpush1.msra.mxu0 0.0
  %2355 = vmatprep.subr.mxu0 0.0
  %2356 = vmatpush1.msra.mxu0 0.0
  %2357 = vmatprep.subr.mxu0 0.0
  %2358 = vmatpush1.msra.mxu0 0.0
  %2359 = vmatprep.subr.mxu0 0.0
  %2360 = vmatpush1.msra.mxu0 0.0
  %2361 = vmatprep.subr.mxu0 0.0
  %2362 = vmatpush1.msra.mxu0 0.0
  %2363 = vmatprep.subr.mxu0 0.0
  %2364 = vmatpush1.msra.mxu0 0.0
  %2365 = vmatprep.subr.mxu0 0.0
  %2366 = vmatpush1.msra.mxu0 0.0
  %2367 = vmatprep.subr.mxu0 0.0
  %2368 = vmatpush1.msra.mxu0 0.0
  %2369 = vmatprep.subr.mxu0 0.0
  %2370 = vmatpush1.msra.mxu0 0.0
  %2371 = vmatprep.subr.mxu0 0.0
  %2372 = vmatpush1.msra.mxu0 0.0
  %2373 = vmatprep.subr.mxu0 0.0
  %2374 = vmatpush1.msra.mxu0 0.0
  %2375 = vmatprep.subr.mxu0 0.0
  %2376 = vmatpush1.msra.mxu0 0.0
  %2377 = vmatprep.subr.mxu0 0.0
  %2378 = vmatpush1.msra.mxu0 0.0
  %2379 = vmatprep.subr.mxu0 0.0
  %2380 = vmatpush1.msra.mxu0 0.0
  %2381 = vmatprep.subr.mxu0 0.0
  %2382 = vmatpush1.msra.mxu0 0.0
  %2383 = vmatprep.subr.mxu0 0.0
  %2384 = vmatpush1.msra.mxu0 0.0
  %2385 = vmatprep.subr.mxu0 0.0
  %2386 = vmatpush1.msra.mxu0 0.0
  %2387 = vmatprep.subr.mxu0 0.0
  %2388 = vmatpush1.msra.mxu0 0.0
  %2389 = vmatprep.subr.mxu0 0.0
  %2390 = vmatpush1.msra.mxu0 0.0
  %2391 = vmatprep.subr.mxu0 0.0
  %2392 = vmatpush1.msra.mxu0 0.0
  %2393 = vmatprep.mubr.f32.mxu0 0.0
  %2394 = vmatmul.mubr.f32.gmra.mrb[0].mxu0 %v2325
  %v2395 = vpop.f32.mrb[0].mxu0
  %v2396 = vadd.f32 0.0, %v2395
  %v2397 = vpop.f32.mrb[0].mxu0
  %2398 = vmatprep.mubr.f32.mxu0 0.0
  %2399 = vmatmul.mubr.f32.gmra.mrb[0].mxu0 %v2327
  %v2400 = vpop.f32.mrb[0].mxu0
  %v2401 = vadd.f32 0.0, %v2400
  %v2402 = vpop.f32.mrb[0].mxu0
  %2403 = vdwg.mxu0
  %2406 = vrot.lane.b32.xlu0 %v2396, 32
  %v2407 = vpop.permute.xlu0 %2406
  %2408 = vrot.lane.b32.xlu0 %v2401, 32
  %v2409 = vpop.permute.xlu0 %2408
  %v2412 = vsub.f32 %v2137, %v2407
  %v2413 = vsub.f32 %v2142, %v2409
  %v2414 = vmul.f32 %v2412, %v2412
  %v2415 = vmul.f32 %v2413, %v2413
  %2418 = vrot.lane.b32.xlu0 %v2414, 96
  %v2419 = vpop.permute.xlu0 %2418
  %2420 = vrot.lane.b32.xlu0 %v2415, 96
  %v2421 = vpop.permute.xlu0 %2420
  %v2422 = vsel %vm132, %v2419, 0
  %v2424 = vsel %vm132, %v2421, 0
  %2426 = vmatprep.subr.mxu0 0.0
  %2427 = vmatpush1.msra.mxu0 %v11
  %2428 = vmatprep.subr.mxu0 0.0
  %2429 = vmatpush1.msra.mxu0 %v12
  %2430 = vmatprep.subr.mxu0 0.0
  %2431 = vmatpush1.msra.mxu0 %v13
  %2432 = vmatprep.subr.mxu0 0.0
  %2433 = vmatpush1.msra.mxu0 %v14
  %2434 = vmatprep.subr.mxu0 0.0
  %2435 = vmatpush1.msra.mxu0 0.0
  %2436 = vmatprep.subr.mxu0 0.0
  %2437 = vmatpush1.msra.mxu0 0.0
  %2438 = vmatprep.subr.mxu0 0.0
  %2439 = vmatpush1.msra.mxu0 0.0
  %2440 = vmatprep.subr.mxu0 0.0
  %2441 = vmatpush1.msra.mxu0 0.0
  %2442 = vmatprep.subr.mxu0 0.0
  %2443 = vmatpush1.msra.mxu0 0.0
  %2444 = vmatprep.subr.mxu0 0.0
  %2445 = vmatpush1.msra.mxu0 0.0
  %2446 = vmatprep.subr.mxu0 0.0
  %2447 = vmatpush1.msra.mxu0 0.0
  %2448 = vmatprep.subr.mxu0 0.0
  %2449 = vmatpush1.msra.mxu0 0.0
  %2450 = vmatprep.subr.mxu0 0.0
  %2451 = vmatpush1.msra.mxu0 0.0
  %2452 = vmatprep.subr.mxu0 0.0
  %2453 = vmatpush1.msra.mxu0 0.0
  %2454 = vmatprep.subr.mxu0 0.0
  %2455 = vmatpush1.msra.mxu0 0.0
  %2456 = vmatprep.subr.mxu0 0.0
  %2457 = vmatpush1.msra.mxu0 0.0
  %2458 = vmatprep.subr.mxu0 0.0
  %2459 = vmatpush1.msra.mxu0 0.0
  %2460 = vmatprep.subr.mxu0 0.0
  %2461 = vmatpush1.msra.mxu0 0.0
  %2462 = vmatprep.subr.mxu0 0.0
  %2463 = vmatpush1.msra.mxu0 0.0
  %2464 = vmatprep.subr.mxu0 0.0
  %2465 = vmatpush1.msra.mxu0 0.0
  %2466 = vmatprep.subr.mxu0 0.0
  %2467 = vmatpush1.msra.mxu0 0.0
  %2468 = vmatprep.subr.mxu0 0.0
  %2469 = vmatpush1.msra.mxu0 0.0
  %2470 = vmatprep.subr.mxu0 0.0
  %2471 = vmatpush1.msra.mxu0 0.0
  %2472 = vmatprep.subr.mxu0 0.0
  %2473 = vmatpush1.msra.mxu0 0.0
  %2474 = vmatprep.subr.mxu0 0.0
  %2475 = vmatpush1.msra.mxu0 0.0
  %2476 = vmatprep.subr.mxu0 0.0
  %2477 = vmatpush1.msra.mxu0 0.0
  %2478 = vmatprep.subr.mxu0 0.0
  %2479 = vmatpush1.msra.mxu0 0.0
  %2480 = vmatprep.subr.mxu0 0.0
  %2481 = vmatpush1.msra.mxu0 0.0
  %2482 = vmatprep.subr.mxu0 0.0
  %2483 = vmatpush1.msra.mxu0 0.0
  %2484 = vmatprep.subr.mxu0 0.0
  %2485 = vmatpush1.msra.mxu0 0.0
  %2486 = vmatprep.subr.mxu0 0.0
  %2487 = vmatpush1.msra.mxu0 0.0
  %2488 = vmatprep.subr.mxu0 0.0
  %2489 = vmatpush1.msra.mxu0 0.0
  %2490 = vmatprep.mubr.f32.mxu0 0.0
  %2491 = vmatmul.mubr.f32.gmra.mrb[0].mxu0 %v2422
  %v2492 = vpop.f32.mrb[0].mxu0
  %v2493 = vadd.f32 0.0, %v2492
  %v2494 = vpop.f32.mrb[0].mxu0
  %2495 = vmatprep.mubr.f32.mxu0 0.0
  %2496 = vmatmul.mubr.f32.gmra.mrb[0].mxu0 %v2424
  %v2497 = vpop.f32.mrb[0].mxu0
  %v2498 = vadd.f32 0.0, %v2497
  %v2499 = vpop.f32.mrb[0].mxu0
  %2500 = vdwg.mxu0
  %v2501 = vmul.f32 %v2493, 1.1428572
  %v2502 = vmul.f32 %v2498, 1.1428572
  %v2503 = vmax.f32 %v2501, 1e-12
  %v2504 = vmax.f32 %v2502, 1e-12
  %v2505 = vrsqrt.pop %v2503
  %v2506 = vrsqrt.pop %v2504
  %2509 = vrot.lane.b32.xlu0 %v2505, 32
  %v2510 = vpop.permute.xlu0 %2509
  %2511 = vrot.lane.b32.xlu0 %v2506, 32
  %v2512 = vpop.permute.xlu0 %2511
  %v2515 = vmul.f32 %v2412, %v2510
  %v2516 = vmul.f32 %v2413, %v2512
  %v2517 = vld [vmem:[%s1 + $0x298] sm:$0xff]
  %v2518 = vld [vmem:[%s1 + $0x2a0] sm:$0xff]
  %v2519 = vld [vmem:[%s1 + $0x2a8] sm:$0xff]
  %v2520 = vld [vmem:[%s1 + $0x2b0] sm:$0xff]
  %2523 = vrot.lane.b32.xlu0 %v2515, 96
  %v2524 = vpop.permute.xlu0 %2523
  %2525 = vrot.lane.b32.xlu0 %v2516, 96
  %v2526 = vpop.permute.xlu0 %2525
  %v2528 = vsel %vm644, %v2319, 0
  %v2531 = vsel %vm644, %v2320, 0
  %v2533 = vsel %vm644, %v2524, 0
  %v2535 = vsel %vm644, %v2526, 0
  %2537 = vmatprep.subr.mxu0 0.0
  %2538 = vmatpush1.xpose.msra.mxu0 %v2533
  %2539 = vmatprep.subr.mxu0 0.0
  %2540 = vmatpush1.xpose.msra.mxu0 %v2535
  %2541 = vmatprep.subr.mxu0 0.0
  %2542 = vmatpush1.xpose.msra.mxu0 0.0
  %2543 = vmatprep.subr.mxu0 0.0
  %2544 = vmatpush1.xpose.msra.mxu0 0.0
  %2545 = vmatprep.subr.mxu0 0.0
  %2546 = vmatpush1.xpose.msra.mxu0 0.0
  %2547 = vmatprep.subr.mxu0 0.0
  %2548 = vmatpush1.xpose.msra.mxu0 0.0
  %2549 = vmatprep.subr.mxu0 0.0
  %2550 = vmatpush1.xpose.msra.mxu0 0.0
  %2551 = vmatprep.subr.mxu0 0.0
  %2552 = vmatpush1.xpose.msra.mxu0 0.0
  %2553 = vmatprep.subr.mxu0 0.0
  %2554 = vmatpush1.xpose.msra.mxu0 0.0
  %2555 = vmatprep.subr.mxu0 0.0
  %2556 = vmatpush1.xpose.msra.mxu0 0.0
  %2557 = vmatprep.subr.mxu0 0.0
  %2558 = vmatpush1.xpose.msra.mxu0 0.0
  %2559 = vmatprep.subr.mxu0 0.0
  %2560 = vmatpush1.xpose.msra.mxu0 0.0
  %2561 = vmatprep.subr.mxu0 0.0
  %2562 = vmatpush1.xpose.msra.mxu0 0.0
  %2563 = vmatprep.subr.mxu0 0.0
  %2564 = vmatpush1.xpose.msra.mxu0 0.0
  %2565 = vmatprep.subr.mxu0 0.0
  %2566 = vmatpush1.xpose.msra.mxu0 0.0
  %2567 = vmatprep.subr.mxu0 0.0
  %2568 = vmatpush1.xpose.msra.mxu0 0.0
  %2569 = vmatprep.subr.mxu0 0.0
  %2570 = vmatpush1.xpose.msra.mxu0 0.0
  %2571 = vmatprep.subr.mxu0 0.0
  %2572 = vmatpush1.xpose.msra.mxu0 0.0
  %2573 = vmatprep.subr.mxu0 0.0
  %2574 = vmatpush1.xpose.msra.mxu0 0.0
  %2575 = vmatprep.subr.mxu0 0.0
  %2576 = vmatpush1.xpose.msra.mxu0 0.0
  %2577 = vmatprep.subr.mxu0 0.0
  %2578 = vmatpush1.xpose.msra.mxu0 0.0
  %2579 = vmatprep.subr.mxu0 0.0
  %2580 = vmatpush1.xpose.msra.mxu0 0.0
  %2581 = vmatprep.subr.mxu0 0.0
  %2582 = vmatpush1.xpose.msra.mxu0 0.0
  %2583 = vmatprep.subr.mxu0 0.0
  %2584 = vmatpush1.xpose.msra.mxu0 0.0
  %2585 = vmatprep.subr.mxu0 0.0
  %2586 = vmatpush1.xpose.msra.mxu0 0.0
  %2587 = vmatprep.subr.mxu0 0.0
  %2588 = vmatpush1.xpose.msra.mxu0 0.0
  %2589 = vmatprep.subr.mxu0 0.0
  %2590 = vmatpush1.xpose.msra.mxu0 0.0
  %2591 = vmatprep.subr.mxu0 0.0
  %2592 = vmatpush1.xpose.msra.mxu0 0.0
  %2593 = vmatprep.subr.mxu0 0.0
  %2594 = vmatpush1.xpose.msra.mxu0 0.0
  %2595 = vmatprep.subr.mxu0 0.0
  %2596 = vmatpush1.xpose.msra.mxu0 0.0
  %2597 = vmatprep.subr.mxu0 0.0
  %2598 = vmatpush1.xpose.msra.mxu0 0.0
  %2599 = vmatprep.subr.mxu0 0.0
  %2600 = vmatpush1.xpose.msra.mxu0 0.0
  %2601 = vmatprep.mubr.f32.mxu0 0.0
  %2602 = vmatmul.mubr.f32.gmra.mrb[0].mxu0 %v2528
  %v2603 = vpop.f32.mrb[0].mxu0
  %v2604 = vadd.f32 %v128, %v2603
  %v2605 = vpop.f32.mrb[0].mxu0
  %2606 = vmatprep.mubr.f32.mxu0 0.0
  %2607 = vmatmul.mubr.f32.gmra.mrb[0].mxu0 %v2531
  %v2608 = vpop.f32.mrb[0].mxu0
  %v2609 = vadd.f32 %v129, %v2608
  %v2610 = vpop.f32.mrb[0].mxu0
  %2611 = vdwg.mxu0
  %v2612 = vsel %vm730, %v2604, -inf
  %2613 = vmax.xlane.f32.xlu0 %v2612
  %v2614 = vpop.xlane.xlu0 %2613
  %v2615 = vsel %vm730, %v2609, -inf
  %2616 = vmax.xlane.f32.xlu0 %v2615
  %v2617 = vpop.xlane.xlu0 %2616
  %v2618 = vsub.f32 %v2604, %v2614
  %v2619 = vsub.f32 %v2609, %v2617
  %v2620 = vmul.f32 %v2618, 1.442695
  %v2621 = vpow.pop %v2620
  %v2622 = vmul.f32 %v2619, 1.442695
  %v2623 = vpow.pop %v2622
  %v2624 = vsel %vm730, %v2621, 0.0
  %2625 = vadd.xlane.f32.xlu0 %v2624
  %v2626 = vpop.xlane.xlu0 %2625
  %v2627 = vsel %vm730, %v2623, 0.0
  %2628 = vadd.xlane.f32.xlu0 %v2627
  %v2629 = vpop.xlane.xlu0 %2628
  %v2630 = vrcp.pop %v2626
  %v2631 = vrcp.pop %v2629
  %v2632 = vmul.f32 %v2621, %v2630
  %v2633 = vmul.f32 %v2623, %v2631
  %2634 = vrot.lane.b32.xlu0 %v2137, 64
  %v2635 = vpop.permute.xlu0 %2634
  %2636 = vrot.lane.b32.xlu0 %v2142, 64
  %v2637 = vpop.permute.xlu0 %2636
  %v2641 = vsel %vm730, %v2632, 0
  %v2644 = vsel %vm730, %v2633, 0
  %2646 = vmatprep.subr.mxu0 0.0
  %2647 = vmatpush1.msra.mxu0 %v2635
  %2648 = vmatprep.subr.mxu0 0.0
  %2649 = vmatpush1.msra.mxu0 %v2637
  %2650 = vmatprep.subr.mxu0 0.0
  %2651 = vmatpush1.msra.mxu0 0.0
  %2652 = vmatprep.subr.mxu0 0.0
  %2653 = vmatpush1.msra.mxu0 0.0
  %2654 = vmatprep.subr.mxu0 0.0
  %2655 = vmatpush1.msra.mxu0 0.0
  %2656 = vmatprep.subr.mxu0 0.0
  %2657 = vmatpush1.msra.mxu0 0.0
  %2658 = vmatprep.subr.mxu0 0.0
  %2659 = vmatpush1.msra.mxu0 0.0
  %2660 = vmatprep.subr.mxu0 0.0
  %2661 = vmatpush1.msra.mxu0 0.0
  %2662 = vmatprep.subr.mxu0 0.0
  %2663 = vmatpush1.msra.mxu0 0.0
  %2664 = vmatprep.subr.mxu0 0.0
  %2665 = vmatpush1.msra.mxu0 0.0
  %2666 = vmatprep.subr.mxu0 0.0
  %2667 = vmatpush1.msra.mxu0 0.0
  %2668 = vmatprep.subr.mxu0 0.0
  %2669 = vmatpush1.msra.mxu0 0.0
  %2670 = vmatprep.subr.mxu0 0.0
  %2671 = vmatpush1.msra.mxu0 0.0
  %2672 = vmatprep.subr.mxu0 0.0
  %2673 = vmatpush1.msra.mxu0 0.0
  %2674 = vmatprep.subr.mxu0 0.0
  %2675 = vmatpush1.msra.mxu0 0.0
  %2676 = vmatprep.subr.mxu0 0.0
  %2677 = vmatpush1.msra.mxu0 0.0
  %2678 = vmatprep.subr.mxu0 0.0
  %2679 = vmatpush1.msra.mxu0 0.0
  %2680 = vmatprep.subr.mxu0 0.0
  %2681 = vmatpush1.msra.mxu0 0.0
  %2682 = vmatprep.subr.mxu0 0.0
  %2683 = vmatpush1.msra.mxu0 0.0
  %2684 = vmatprep.subr.mxu0 0.0
  %2685 = vmatpush1.msra.mxu0 0.0
  %2686 = vmatprep.subr.mxu0 0.0
  %2687 = vmatpush1.msra.mxu0 0.0
  %2688 = vmatprep.subr.mxu0 0.0
  %2689 = vmatpush1.msra.mxu0 0.0
  %2690 = vmatprep.subr.mxu0 0.0
  %2691 = vmatpush1.msra.mxu0 0.0
  %2692 = vmatprep.subr.mxu0 0.0
  %2693 = vmatpush1.msra.mxu0 0.0
  %2694 = vmatprep.subr.mxu0 0.0
  %2695 = vmatpush1.msra.mxu0 0.0
  %2696 = vmatprep.subr.mxu0 0.0
  %2697 = vmatpush1.msra.mxu0 0.0
  %2698 = vmatprep.subr.mxu0 0.0
  %2699 = vmatpush1.msra.mxu0 0.0
  %2700 = vmatprep.subr.mxu0 0.0
  %2701 = vmatpush1.msra.mxu0 0.0
  %2702 = vmatprep.subr.mxu0 0.0
  %2703 = vmatpush1.msra.mxu0 0.0
  %2704 = vmatprep.subr.mxu0 0.0
  %2705 = vmatpush1.msra.mxu0 0.0
  %2706 = vmatprep.subr.mxu0 0.0
  %2707 = vmatpush1.msra.mxu0 0.0
  %2708 = vmatprep.subr.mxu0 0.0
  %2709 = vmatpush1.msra.mxu0 0.0
  %2710 = vmatprep.mubr.f32.mxu0 0.0
  %2711 = vmatmul.mubr.f32.gmra.mrb[0].mxu0 %v2641
  %v2712 = vpop.f32.mrb[0].mxu0
  %v2713 = vadd.f32 0.0, %v2712
  %v2714 = vpop.f32.mrb[0].mxu0
  %2715 = vmatprep.mubr.f32.mxu0 0.0
  %2716 = vmatmul.mubr.f32.gmra.mrb[0].mxu0 %v2644
  %v2717 = vpop.f32.mrb[0].mxu0
  %v2718 = vadd.f32 0.0, %v2717
  %v2719 = vpop.f32.mrb[0].mxu0
  %2720 = vdwg.mxu0
  %2721 = vrot.lane.b32.xlu0 %v2319, 120
  %v2722 = vpop.permute.xlu0 %2721
  %2723 = vrot.lane.b32.xlu0 %v2320, 120
  %v2724 = vpop.permute.xlu0 %2723
  %2725 = vrot.lane.b32.xlu0 %v2515, 88
  %v2726 = vpop.permute.xlu0 %2725
  %2727 = vrot.lane.b32.xlu0 %v2516, 88
  %v2728 = vpop.permute.xlu0 %2727
  %v2729 = vsel %vm644, %v2722, 0
  %v2731 = vsel %vm644, %v2724, 0
  %v2733 = vsel %vm644, %v2726, 0
  %v2735 = vsel %vm644, %v2728, 0
  %2737 = vmatprep.subr.mxu0 0.0
  %2738 = vmatpush1.xpose.msra.mxu0 %v2733
  %2739 = vmatprep.subr.mxu0 0.0
  %2740 = vmatpush1.xpose.msra.mxu0 %v2735
  %2741 = vmatprep.subr.mxu0 0.0
  %2742 = vmatpush1.xpose.msra.mxu0 0.0
  %2743 = vmatprep.subr.mxu0 0.0
  %2744 = vmatpush1.xpose.msra.mxu0 0.0
  %2745 = vmatprep.subr.mxu0 0.0
  %2746 = vmatpush1.xpose.msra.mxu0 0.0
  %2747 = vmatprep.subr.mxu0 0.0
  %2748 = vmatpush1.xpose.msra.mxu0 0.0
  %2749 = vmatprep.subr.mxu0 0.0
  %2750 = vmatpush1.xpose.msra.mxu0 0.0
  %2751 = vmatprep.subr.mxu0 0.0
  %2752 = vmatpush1.xpose.msra.mxu0 0.0
  %2753 = vmatprep.subr.mxu0 0.0
  %2754 = vmatpush1.xpose.msra.mxu0 0.0
  %2755 = vmatprep.subr.mxu0 0.0
  %2756 = vmatpush1.xpose.msra.mxu0 0.0
  %2757 = vmatprep.subr.mxu0 0.0
  %2758 = vmatpush1.xpose.msra.mxu0 0.0
  %2759 = vmatprep.subr.mxu0 0.0
  %2760 = vmatpush1.xpose.msra.mxu0 0.0
  %2761 = vmatprep.subr.mxu0 0.0
  %2762 = vmatpush1.xpose.msra.mxu0 0.0
  %2763 = vmatprep.subr.mxu0 0.0
  %2764 = vmatpush1.xpose.msra.mxu0 0.0
  %2765 = vmatprep.subr.mxu0 0.0
  %2766 = vmatpush1.xpose.msra.mxu0 0.0
  %2767 = vmatprep.subr.mxu0 0.0
  %2768 = vmatpush1.xpose.msra.mxu0 0.0
  %2769 = vmatprep.subr.mxu0 0.0
  %2770 = vmatpush1.xpose.msra.mxu0 0.0
  %2771 = vmatprep.subr.mxu0 0.0
  %2772 = vmatpush1.xpose.msra.mxu0 0.0
  %2773 = vmatprep.subr.mxu0 0.0
  %2774 = vmatpush1.xpose.msra.mxu0 0.0
  %2775 = vmatprep.subr.mxu0 0.0
  %2776 = vmatpush1.xpose.msra.mxu0 0.0
  %2777 = vmatprep.subr.mxu0 0.0
  %2778 = vmatpush1.xpose.msra.mxu0 0.0
  %2779 = vmatprep.subr.mxu0 0.0
  %2780 = vmatpush1.xpose.msra.mxu0 0.0
  %2781 = vmatprep.subr.mxu0 0.0
  %2782 = vmatpush1.xpose.msra.mxu0 0.0
  %2783 = vmatprep.subr.mxu0 0.0
  %2784 = vmatpush1.xpose.msra.mxu0 0.0
  %2785 = vmatprep.subr.mxu0 0.0
  %2786 = vmatpush1.xpose.msra.mxu0 0.0
  %2787 = vmatprep.subr.mxu0 0.0
  %2788 = vmatpush1.xpose.msra.mxu0 0.0
  %2789 = vmatprep.subr.mxu0 0.0
  %2790 = vmatpush1.xpose.msra.mxu0 0.0
  %2791 = vmatprep.subr.mxu0 0.0
  %2792 = vmatpush1.xpose.msra.mxu0 0.0
  %2793 = vmatprep.subr.mxu0 0.0
  %2794 = vmatpush1.xpose.msra.mxu0 0.0
  %2795 = vmatprep.subr.mxu0 0.0
  %2796 = vmatpush1.xpose.msra.mxu0 0.0
  %2797 = vmatprep.subr.mxu0 0.0
  %2798 = vmatpush1.xpose.msra.mxu0 0.0
  %2799 = vmatprep.subr.mxu0 0.0
  %2800 = vmatpush1.xpose.msra.mxu0 0.0
  %2801 = vmatprep.mubr.f32.mxu0 0.0
  %2802 = vmatmul.mubr.f32.gmra.mrb[0].mxu0 %v2729
  %v2803 = vpop.f32.mrb[0].mxu0
  %v2804 = vadd.f32 %v128, %v2803
  %v2805 = vpop.f32.mrb[0].mxu0
  %2806 = vmatprep.mubr.f32.mxu0 0.0
  %2807 = vmatmul.mubr.f32.gmra.mrb[0].mxu0 %v2731
  %v2808 = vpop.f32.mrb[0].mxu0
  %v2809 = vadd.f32 %v129, %v2808
  %v2810 = vpop.f32.mrb[0].mxu0
  %2811 = vdwg.mxu0
  %v2812 = vsel %vm730, %v2804, -inf
  %2813 = vmax.xlane.f32.xlu0 %v2812
  %v2814 = vpop.xlane.xlu0 %2813
  %v2815 = vsel %vm730, %v2809, -inf
  %2816 = vmax.xlane.f32.xlu0 %v2815
  %v2817 = vpop.xlane.xlu0 %2816
  %v2818 = vsub.f32 %v2804, %v2814
  %v2819 = vsub.f32 %v2809, %v2817
  %v2820 = vmul.f32 %v2818, 1.442695
  %v2821 = vpow.pop %v2820
  %v2822 = vmul.f32 %v2819, 1.442695
  %v2823 = vpow.pop %v2822
  %v2824 = vsel %vm730, %v2821, 0.0
  %2825 = vadd.xlane.f32.xlu0 %v2824
  %v2826 = vpop.xlane.xlu0 %2825
  %v2827 = vsel %vm730, %v2823, 0.0
  %2828 = vadd.xlane.f32.xlu0 %v2827
  %v2829 = vpop.xlane.xlu0 %2828
  %v2830 = vrcp.pop %v2826
  %v2831 = vrcp.pop %v2829
  %v2832 = vmul.f32 %v2821, %v2830
  %v2833 = vmul.f32 %v2823, %v2831
  %2834 = vrot.lane.b32.xlu0 %v2137, 56
  %v2835 = vpop.permute.xlu0 %2834
  %2836 = vrot.lane.b32.xlu0 %v2142, 56
  %v2837 = vpop.permute.xlu0 %2836
  %v2841 = vsel %vm730, %v2832, 0
  %v2844 = vsel %vm730, %v2833, 0
  %2846 = vmatprep.subr.mxu0 0.0
  %2847 = vmatpush1.msra.mxu0 %v2835
  %2848 = vmatprep.subr.mxu0 0.0
  %2849 = vmatpush1.msra.mxu0 %v2837
  %2850 = vmatprep.subr.mxu0 0.0
  %2851 = vmatpush1.msra.mxu0 0.0
  %2852 = vmatprep.subr.mxu0 0.0
  %2853 = vmatpush1.msra.mxu0 0.0
  %2854 = vmatprep.subr.mxu0 0.0
  %2855 = vmatpush1.msra.mxu0 0.0
  %2856 = vmatprep.subr.mxu0 0.0
  %2857 = vmatpush1.msra.mxu0 0.0
  %2858 = vmatprep.subr.mxu0 0.0
  %2859 = vmatpush1.msra.mxu0 0.0
  %2860 = vmatprep.subr.mxu0 0.0
  %2861 = vmatpush1.msra.mxu0 0.0
  %2862 = vmatprep.subr.mxu0 0.0
  %2863 = vmatpush1.msra.mxu0 0.0
  %2864 = vmatprep.subr.mxu0 0.0
  %2865 = vmatpush1.msra.mxu0 0.0
  %2866 = vmatprep.subr.mxu0 0.0
  %2867 = vmatpush1.msra.mxu0 0.0
  %2868 = vmatprep.subr.mxu0 0.0
  %2869 = vmatpush1.msra.mxu0 0.0
  %2870 = vmatprep.subr.mxu0 0.0
  %2871 = vmatpush1.msra.mxu0 0.0
  %2872 = vmatprep.subr.mxu0 0.0
  %2873 = vmatpush1.msra.mxu0 0.0
  %2874 = vmatprep.subr.mxu0 0.0
  %2875 = vmatpush1.msra.mxu0 0.0
  %2876 = vmatprep.subr.mxu0 0.0
  %2877 = vmatpush1.msra.mxu0 0.0
  %2878 = vmatprep.subr.mxu0 0.0
  %2879 = vmatpush1.msra.mxu0 0.0
  %2880 = vmatprep.subr.mxu0 0.0
  %2881 = vmatpush1.msra.mxu0 0.0
  %2882 = vmatprep.subr.mxu0 0.0
  %2883 = vmatpush1.msra.mxu0 0.0
  %2884 = vmatprep.subr.mxu0 0.0
  %2885 = vmatpush1.msra.mxu0 0.0
  %2886 = vmatprep.subr.mxu0 0.0
  %2887 = vmatpush1.msra.mxu0 0.0
  %2888 = vmatprep.subr.mxu0 0.0
  %2889 = vmatpush1.msra.mxu0 0.0
  %2890 = vmatprep.subr.mxu0 0.0
  %2891 = vmatpush1.msra.mxu0 0.0
  %2892 = vmatprep.subr.mxu0 0.0
  %2893 = vmatpush1.msra.mxu0 0.0
  %2894 = vmatprep.subr.mxu0 0.0
  %2895 = vmatpush1.msra.mxu0 0.0
  %2896 = vmatprep.subr.mxu0 0.0
  %2897 = vmatpush1.msra.mxu0 0.0
  %2898 = vmatprep.subr.mxu0 0.0
  %2899 = vmatpush1.msra.mxu0 0.0
  %2900 = vmatprep.subr.mxu0 0.0
  %2901 = vmatpush1.msra.mxu0 0.0
  %2902 = vmatprep.subr.mxu0 0.0
  %2903 = vmatpush1.msra.mxu0 0.0
  %2904 = vmatprep.subr.mxu0 0.0
  %2905 = vmatpush1.msra.mxu0 0.0
  %2906 = vmatprep.subr.mxu0 0.0
  %2907 = vmatpush1.msra.mxu0 0.0
  %2908 = vmatprep.subr.mxu0 0.0
  %2909 = vmatpush1.msra.mxu0 0.0
  %2910 = vmatprep.mubr.f32.mxu0 0.0
  %2911 = vmatmul.mubr.f32.gmra.mrb[0].mxu0 %v2841
  %v2912 = vpop.f32.mrb[0].mxu0
  %v2913 = vadd.f32 0.0, %v2912
  %v2914 = vpop.f32.mrb[0].mxu0
  %2915 = vmatprep.mubr.f32.mxu0 0.0
  %2916 = vmatmul.mubr.f32.gmra.mrb[0].mxu0 %v2844
  %v2917 = vpop.f32.mrb[0].mxu0
  %v2918 = vadd.f32 0.0, %v2917
  %v2919 = vpop.f32.mrb[0].mxu0
  %2920 = vdwg.mxu0
  %v2922 = vsel %vm644, %v2913, 0
  %v2925 = vsel %vm644, %v2918, 0
  %2927 = vmatprep.subr.mxu0 0.0
  %2928 = vmatpush1.msra.mxu0 %v2518
  %2929 = vmatprep.subr.mxu0 0.0
  %2930 = vmatpush1.msra.mxu0 0.0
  %2931 = vmatprep.subr.mxu0 0.0
  %2932 = vmatpush1.msra.mxu0 0.0
  %2933 = vmatprep.subr.mxu0 0.0
  %2934 = vmatpush1.msra.mxu0 0.0
  %2935 = vmatprep.subr.mxu0 0.0
  %2936 = vmatpush1.msra.mxu0 0.0
  %2937 = vmatprep.subr.mxu0 0.0
  %2938 = vmatpush1.msra.mxu0 0.0
  %2939 = vmatprep.subr.mxu0 0.0
  %2940 = vmatpush1.msra.mxu0 0.0
  %2941 = vmatprep.subr.mxu0 0.0
  %2942 = vmatpush1.msra.mxu0 0.0
  %2943 = vmatprep.subr.mxu0 0.0
  %2944 = vmatpush1.msra.mxu0 0.0
  %2945 = vmatprep.subr.mxu0 0.0
  %2946 = vmatpush1.msra.mxu0 0.0
  %2947 = vmatprep.subr.mxu0 0.0
  %2948 = vmatpush1.msra.mxu0 0.0
  %2949 = vmatprep.subr.mxu0 0.0
  %2950 = vmatpush1.msra.mxu0 0.0
  %2951 = vmatprep.subr.mxu0 0.0
  %2952 = vmatpush1.msra.mxu0 0.0
  %2953 = vmatprep.subr.mxu0 0.0
  %2954 = vmatpush1.msra.mxu0 0.0
  %2955 = vmatprep.subr.mxu0 0.0
  %2956 = vmatpush1.msra.mxu0 0.0
  %2957 = vmatprep.subr.mxu0 0.0
  %2958 = vmatpush1.msra.mxu0 0.0
  %2959 = vmatprep.subr.mxu0 0.0
  %2960 = vmatpush1.msra.mxu0 0.0
  %2961 = vmatprep.subr.mxu0 0.0
  %2962 = vmatpush1.msra.mxu0 0.0
  %2963 = vmatprep.subr.mxu0 0.0
  %2964 = vmatpush1.msra.mxu0 0.0
  %2965 = vmatprep.subr.mxu0 0.0
  %2966 = vmatpush1.msra.mxu0 0.0
  %2967 = vmatprep.subr.mxu0 0.0
  %2968 = vmatpush1.msra.mxu0 0.0
  %2969 = vmatprep.subr.mxu0 0.0
  %2970 = vmatpush1.msra.mxu0 0.0
  %2971 = vmatprep.subr.mxu0 0.0
  %2972 = vmatpush1.msra.mxu0 0.0
  %2973 = vmatprep.subr.mxu0 0.0
  %2974 = vmatpush1.msra.mxu0 0.0
  %2975 = vmatprep.subr.mxu0 0.0
  %2976 = vmatpush1.msra.mxu0 0.0
  %2977 = vmatprep.subr.mxu0 0.0
  %2978 = vmatpush1.msra.mxu0 0.0
  %2979 = vmatprep.subr.mxu0 0.0
  %2980 = vmatpush1.msra.mxu0 0.0
  %2981 = vmatprep.subr.mxu0 0.0
  %2982 = vmatpush1.msra.mxu0 0.0
  %2983 = vmatprep.subr.mxu0 0.0
  %2984 = vmatpush1.msra.mxu0 0.0
  %2985 = vmatprep.subr.mxu0 0.0
  %2986 = vmatpush1.msra.mxu0 0.0
  %2987 = vmatprep.subr.mxu0 0.0
  %2988 = vmatpush1.msra.mxu0 0.0
  %2989 = vmatprep.subr.mxu0 0.0
  %2990 = vmatpush1.msra.mxu0 0.0
  %2991 = vmatprep.mubr.f32.mxu0 0.0
  %2992 = vmatmul.mubr.f32.gmra.mrb[0].mxu0 %v2922
  %v2993 = vpop.f32.mrb[0].mxu0
  %v2994 = vadd.f32 0.0, %v2993
  %v2995 = vpop.f32.mrb[0].mxu0
  %2996 = vmatprep.mubr.f32.mxu0 0.0
  %2997 = vmatmul.mubr.f32.gmra.mrb[0].mxu0 %v2925
  %v2998 = vpop.f32.mrb[0].mxu0
  %v2999 = vadd.f32 0.0, %v2998
  %v3000 = vpop.f32.mrb[0].mxu0
  %3001 = vdwg.mxu0
  %v3003 = vsel %vm644, %v2713, 0
  %v3006 = vsel %vm644, %v2718, 0
  %3008 = vmatprep.subr.mxu0 0.0
  %3009 = vmatpush1.msra.mxu0 %v2517
  %3010 = vmatprep.subr.mxu0 0.0
  %3011 = vmatpush1.msra.mxu0 0.0
  %3012 = vmatprep.subr.mxu0 0.0
  %3013 = vmatpush1.msra.mxu0 0.0
  %3014 = vmatprep.subr.mxu0 0.0
  %3015 = vmatpush1.msra.mxu0 0.0
  %3016 = vmatprep.subr.mxu0 0.0
  %3017 = vmatpush1.msra.mxu0 0.0
  %3018 = vmatprep.subr.mxu0 0.0
  %3019 = vmatpush1.msra.mxu0 0.0
  %3020 = vmatprep.subr.mxu0 0.0
  %3021 = vmatpush1.msra.mxu0 0.0
  %3022 = vmatprep.subr.mxu0 0.0
  %3023 = vmatpush1.msra.mxu0 0.0
  %3024 = vmatprep.subr.mxu0 0.0
  %3025 = vmatpush1.msra.mxu0 0.0
  %3026 = vmatprep.subr.mxu0 0.0
  %3027 = vmatpush1.msra.mxu0 0.0
  %3028 = vmatprep.subr.mxu0 0.0
  %3029 = vmatpush1.msra.mxu0 0.0
  %3030 = vmatprep.subr.mxu0 0.0
  %3031 = vmatpush1.msra.mxu0 0.0
  %3032 = vmatprep.subr.mxu0 0.0
  %3033 = vmatpush1.msra.mxu0 0.0
  %3034 = vmatprep.subr.mxu0 0.0
  %3035 = vmatpush1.msra.mxu0 0.0
  %3036 = vmatprep.subr.mxu0 0.0
  %3037 = vmatpush1.msra.mxu0 0.0
  %3038 = vmatprep.subr.mxu0 0.0
  %3039 = vmatpush1.msra.mxu0 0.0
  %3040 = vmatprep.subr.mxu0 0.0
  %3041 = vmatpush1.msra.mxu0 0.0
  %3042 = vmatprep.subr.mxu0 0.0
  %3043 = vmatpush1.msra.mxu0 0.0
  %3044 = vmatprep.subr.mxu0 0.0
  %3045 = vmatpush1.msra.mxu0 0.0
  %3046 = vmatprep.subr.mxu0 0.0
  %3047 = vmatpush1.msra.mxu0 0.0
  %3048 = vmatprep.subr.mxu0 0.0
  %3049 = vmatpush1.msra.mxu0 0.0
  %3050 = vmatprep.subr.mxu0 0.0
  %3051 = vmatpush1.msra.mxu0 0.0
  %3052 = vmatprep.subr.mxu0 0.0
  %3053 = vmatpush1.msra.mxu0 0.0
  %3054 = vmatprep.subr.mxu0 0.0
  %3055 = vmatpush1.msra.mxu0 0.0
  %3056 = vmatprep.subr.mxu0 0.0
  %3057 = vmatpush1.msra.mxu0 0.0
  %3058 = vmatprep.subr.mxu0 0.0
  %3059 = vmatpush1.msra.mxu0 0.0
  %3060 = vmatprep.subr.mxu0 0.0
  %3061 = vmatpush1.msra.mxu0 0.0
  %3062 = vmatprep.subr.mxu0 0.0
  %3063 = vmatpush1.msra.mxu0 0.0
  %3064 = vmatprep.subr.mxu0 0.0
  %3065 = vmatpush1.msra.mxu0 0.0
  %3066 = vmatprep.subr.mxu0 0.0
  %3067 = vmatpush1.msra.mxu0 0.0
  %3068 = vmatprep.subr.mxu0 0.0
  %3069 = vmatpush1.msra.mxu0 0.0
  %3070 = vmatprep.subr.mxu0 0.0
  %3071 = vmatpush1.msra.mxu0 0.0
  %3072 = vmatprep.mubr.f32.mxu0 0.0
  %3073 = vmatmul.mubr.f32.gmra.mrb[0].mxu0 %v3003
  %v3074 = vpop.f32.mrb[0].mxu0
  %v3075 = vadd.f32 %v2994, %v3074
  %v3076 = vpop.f32.mrb[0].mxu0
  %3077 = vmatprep.mubr.f32.mxu0 0.0
  %3078 = vmatmul.mubr.f32.gmra.mrb[0].mxu0 %v3006
  %v3079 = vpop.f32.mrb[0].mxu0
  %v3080 = vadd.f32 %v2999, %v3079
  %v3081 = vpop.f32.mrb[0].mxu0
  %3082 = vdwg.mxu0
  %3083 = vrot.lane.b32.xlu0 %v2319, 112
  %v3084 = vpop.permute.xlu0 %3083
  %3085 = vrot.lane.b32.xlu0 %v2320, 112
  %v3086 = vpop.permute.xlu0 %3085
  %3087 = vrot.lane.b32.xlu0 %v2515, 80
  %v3088 = vpop.permute.xlu0 %3087
  %3089 = vrot.lane.b32.xlu0 %v2516, 80
  %v3090 = vpop.permute.xlu0 %3089
  %v3091 = vsel %vm644, %v3084, 0
  %v3093 = vsel %vm644, %v3086, 0
  %v3095 = vsel %vm644, %v3088, 0
  %v3097 = vsel %vm644, %v3090, 0
  %3099 = vmatprep.subr.mxu0 0.0
  %3100 = vmatpush1.xpose.msra.mxu0 %v3095
  %3101 = vmatprep.subr.mxu0 0.0
  %3102 = vmatpush1.xpose.msra.mxu0 %v3097
  %3103 = vmatprep.subr.mxu0 0.0
  %3104 = vmatpush1.xpose.msra.mxu0 0.0
  %3105 = vmatprep.subr.mxu0 0.0
  %3106 = vmatpush1.xpose.msra.mxu0 0.0
  %3107 = vmatprep.subr.mxu0 0.0
  %3108 = vmatpush1.xpose.msra.mxu0 0.0
  %3109 = vmatprep.subr.mxu0 0.0
  %3110 = vmatpush1.xpose.msra.mxu0 0.0
  %3111 = vmatprep.subr.mxu0 0.0
  %3112 = vmatpush1.xpose.msra.mxu0 0.0
  %3113 = vmatprep.subr.mxu0 0.0
  %3114 = vmatpush1.xpose.msra.mxu0 0.0
  %3115 = vmatprep.subr.mxu0 0.0
  %3116 = vmatpush1.xpose.msra.mxu0 0.0
  %3117 = vmatprep.subr.mxu0 0.0
  %3118 = vmatpush1.xpose.msra.mxu0 0.0
  %3119 = vmatprep.subr.mxu0 0.0
  %3120 = vmatpush1.xpose.msra.mxu0 0.0
  %3121 = vmatprep.subr.mxu0 0.0
  %3122 = vmatpush1.xpose.msra.mxu0 0.0
  %3123 = vmatprep.subr.mxu0 0.0
  %3124 = vmatpush1.xpose.msra.mxu0 0.0
  %3125 = vmatprep.subr.mxu0 0.0
  %3126 = vmatpush1.xpose.msra.mxu0 0.0
  %3127 = vmatprep.subr.mxu0 0.0
  %3128 = vmatpush1.xpose.msra.mxu0 0.0
  %3129 = vmatprep.subr.mxu0 0.0
  %3130 = vmatpush1.xpose.msra.mxu0 0.0
  %3131 = vmatprep.subr.mxu0 0.0
  %3132 = vmatpush1.xpose.msra.mxu0 0.0
  %3133 = vmatprep.subr.mxu0 0.0
  %3134 = vmatpush1.xpose.msra.mxu0 0.0
  %3135 = vmatprep.subr.mxu0 0.0
  %3136 = vmatpush1.xpose.msra.mxu0 0.0
  %3137 = vmatprep.subr.mxu0 0.0
  %3138 = vmatpush1.xpose.msra.mxu0 0.0
  %3139 = vmatprep.subr.mxu0 0.0
  %3140 = vmatpush1.xpose.msra.mxu0 0.0
  %3141 = vmatprep.subr.mxu0 0.0
  %3142 = vmatpush1.xpose.msra.mxu0 0.0
  %3143 = vmatprep.subr.mxu0 0.0
  %3144 = vmatpush1.xpose.msra.mxu0 0.0
  %3145 = vmatprep.subr.mxu0 0.0
  %3146 = vmatpush1.xpose.msra.mxu0 0.0
  %3147 = vmatprep.subr.mxu0 0.0
  %3148 = vmatpush1.xpose.msra.mxu0 0.0
  %3149 = vmatprep.subr.mxu0 0.0
  %3150 = vmatpush1.xpose.msra.mxu0 0.0
  %3151 = vmatprep.subr.mxu0 0.0
  %3152 = vmatpush1.xpose.msra.mxu0 0.0
  %3153 = vmatprep.subr.mxu0 0.0
  %3154 = vmatpush1.xpose.msra.mxu0 0.0
  %3155 = vmatprep.subr.mxu0 0.0
  %3156 = vmatpush1.xpose.msra.mxu0 0.0
  %3157 = vmatprep.subr.mxu0 0.0
  %3158 = vmatpush1.xpose.msra.mxu0 0.0
  %3159 = vmatprep.subr.mxu0 0.0
  %3160 = vmatpush1.xpose.msra.mxu0 0.0
  %3161 = vmatprep.subr.mxu0 0.0
  %3162 = vmatpush1.xpose.msra.mxu0 0.0
  %3163 = vmatprep.mubr.f32.mxu0 0.0
  %3164 = vmatmul.mubr.f32.gmra.mrb[0].mxu0 %v3091
  %v3165 = vpop.f32.mrb[0].mxu0
  %v3166 = vadd.f32 %v128, %v3165
  %v3167 = vpop.f32.mrb[0].mxu0
  %3168 = vmatprep.mubr.f32.mxu0 0.0
  %3169 = vmatmul.mubr.f32.gmra.mrb[0].mxu0 %v3093
  %v3170 = vpop.f32.mrb[0].mxu0
  %v3171 = vadd.f32 %v129, %v3170
  %v3172 = vpop.f32.mrb[0].mxu0
  %3173 = vdwg.mxu0
  %v3174 = vsel %vm730, %v3166, -inf
  %3175 = vmax.xlane.f32.xlu0 %v3174
  %v3176 = vpop.xlane.xlu0 %3175
  %v3177 = vsel %vm730, %v3171, -inf
  %3178 = vmax.xlane.f32.xlu0 %v3177
  %v3179 = vpop.xlane.xlu0 %3178
  %v3180 = vsub.f32 %v3166, %v3176
  %v3181 = vsub.f32 %v3171, %v3179
  %v3182 = vmul.f32 %v3180, 1.442695
  %v3183 = vpow.pop %v3182
  %v3184 = vmul.f32 %v3181, 1.442695
  %v3185 = vpow.pop %v3184
  %v3186 = vsel %vm730, %v3183, 0.0
  %3187 = vadd.xlane.f32.xlu0 %v3186
  %v3188 = vpop.xlane.xlu0 %3187
  %v3189 = vsel %vm730, %v3185, 0.0
  %3190 = vadd.xlane.f32.xlu0 %v3189
  %v3191 = vpop.xlane.xlu0 %3190
  %v3192 = vrcp.pop %v3188
  %v3193 = vrcp.pop %v3191
  %v3194 = vmul.f32 %v3183, %v3192
  %v3195 = vmul.f32 %v3185, %v3193
  %3196 = vrot.lane.b32.xlu0 %v2137, 48
  %v3197 = vpop.permute.xlu0 %3196
  %3198 = vrot.lane.b32.xlu0 %v2142, 48
  %v3199 = vpop.permute.xlu0 %3198
  %v3203 = vsel %vm730, %v3194, 0
  %v3206 = vsel %vm730, %v3195, 0
  %3208 = vmatprep.subr.mxu0 0.0
  %3209 = vmatpush1.msra.mxu0 %v3197
  %3210 = vmatprep.subr.mxu0 0.0
  %3211 = vmatpush1.msra.mxu0 %v3199
  %3212 = vmatprep.subr.mxu0 0.0
  %3213 = vmatpush1.msra.mxu0 0.0
  %3214 = vmatprep.subr.mxu0 0.0
  %3215 = vmatpush1.msra.mxu0 0.0
  %3216 = vmatprep.subr.mxu0 0.0
  %3217 = vmatpush1.msra.mxu0 0.0
  %3218 = vmatprep.subr.mxu0 0.0
  %3219 = vmatpush1.msra.mxu0 0.0
  %3220 = vmatprep.subr.mxu0 0.0
  %3221 = vmatpush1.msra.mxu0 0.0
  %3222 = vmatprep.subr.mxu0 0.0
  %3223 = vmatpush1.msra.mxu0 0.0
  %3224 = vmatprep.subr.mxu0 0.0
  %3225 = vmatpush1.msra.mxu0 0.0
  %3226 = vmatprep.subr.mxu0 0.0
  %3227 = vmatpush1.msra.mxu0 0.0
  %3228 = vmatprep.subr.mxu0 0.0
  %3229 = vmatpush1.msra.mxu0 0.0
  %3230 = vmatprep.subr.mxu0 0.0
  %3231 = vmatpush1.msra.mxu0 0.0
  %3232 = vmatprep.subr.mxu0 0.0
  %3233 = vmatpush1.msra.mxu0 0.0
  %3234 = vmatprep.subr.mxu0 0.0
  %3235 = vmatpush1.msra.mxu0 0.0
  %3236 = vmatprep.subr.mxu0 0.0
  %3237 = vmatpush1.msra.mxu0 0.0
  %3238 = vmatprep.subr.mxu0 0.0
  %3239 = vmatpush1.msra.mxu0 0.0
  %3240 = vmatprep.subr.mxu0 0.0
  %3241 = vmatpush1.msra.mxu0 0.0
  %3242 = vmatprep.subr.mxu0 0.0
  %3243 = vmatpush1.msra.mxu0 0.0
  %3244 = vmatprep.subr.mxu0 0.0
  %3245 = vmatpush1.msra.mxu0 0.0
  %3246 = vmatprep.subr.mxu0 0.0
  %3247 = vmatpush1.msra.mxu0 0.0
  %3248 = vmatprep.subr.mxu0 0.0
  %3249 = vmatpush1.msra.mxu0 0.0
  %3250 = vmatprep.subr.mxu0 0.0
  %3251 = vmatpush1.msra.mxu0 0.0
  %3252 = vmatprep.subr.mxu0 0.0
  %3253 = vmatpush1.msra.mxu0 0.0
  %3254 = vmatprep.subr.mxu0 0.0
  %3255 = vmatpush1.msra.mxu0 0.0
  %3256 = vmatprep.subr.mxu0 0.0
  %3257 = vmatpush1.msra.mxu0 0.0
  %3258 = vmatprep.subr.mxu0 0.0
  %3259 = vmatpush1.msra.mxu0 0.0
  %3260 = vmatprep.subr.mxu0 0.0
  %3261 = vmatpush1.msra.mxu0 0.0
  %3262 = vmatprep.subr.mxu0 0.0
  %3263 = vmatpush1.msra.mxu0 0.0
  %3264 = vmatprep.subr.mxu0 0.0
  %3265 = vmatpush1.msra.mxu0 0.0
  %3266 = vmatprep.subr.mxu0 0.0
  %3267 = vmatpush1.msra.mxu0 0.0
  %3268 = vmatprep.subr.mxu0 0.0
  %3269 = vmatpush1.msra.mxu0 0.0
  %3270 = vmatprep.subr.mxu0 0.0
  %3271 = vmatpush1.msra.mxu0 0.0
  %3272 = vmatprep.mubr.f32.mxu0 0.0
  %3273 = vmatmul.mubr.f32.gmra.mrb[0].mxu0 %v3203
  %v3274 = vpop.f32.mrb[0].mxu0
  %v3275 = vadd.f32 0.0, %v3274
  %v3276 = vpop.f32.mrb[0].mxu0
  %3277 = vmatprep.mubr.f32.mxu0 0.0
  %3278 = vmatmul.mubr.f32.gmra.mrb[0].mxu0 %v3206
  %v3279 = vpop.f32.mrb[0].mxu0
  %v3280 = vadd.f32 0.0, %v3279
  %v3281 = vpop.f32.mrb[0].mxu0
  %3282 = vdwg.mxu0
  %v3284 = vsel %vm644, %v3275, 0
  %v3287 = vsel %vm644, %v3280, 0
  %3289 = vmatprep.subr.mxu0 0.0
  %3290 = vmatpush1.msra.mxu0 %v2519
  %3291 = vmatprep.subr.mxu0 0.0
  %3292 = vmatpush1.msra.mxu0 0.0
  %3293 = vmatprep.subr.mxu0 0.0
  %3294 = vmatpush1.msra.mxu0 0.0
  %3295 = vmatprep.subr.mxu0 0.0
  %3296 = vmatpush1.msra.mxu0 0.0
  %3297 = vmatprep.subr.mxu0 0.0
  %3298 = vmatpush1.msra.mxu0 0.0
  %3299 = vmatprep.subr.mxu0 0.0
  %3300 = vmatpush1.msra.mxu0 0.0
  %3301 = vmatprep.subr.mxu0 0.0
  %3302 = vmatpush1.msra.mxu0 0.0
  %3303 = vmatprep.subr.mxu0 0.0
  %3304 = vmatpush1.msra.mxu0 0.0
  %3305 = vmatprep.subr.mxu0 0.0
  %3306 = vmatpush1.msra.mxu0 0.0
  %3307 = vmatprep.subr.mxu0 0.0
  %3308 = vmatpush1.msra.mxu0 0.0
  %3309 = vmatprep.subr.mxu0 0.0
  %3310 = vmatpush1.msra.mxu0 0.0
  %3311 = vmatprep.subr.mxu0 0.0
  %3312 = vmatpush1.msra.mxu0 0.0
  %3313 = vmatprep.subr.mxu0 0.0
  %3314 = vmatpush1.msra.mxu0 0.0
  %3315 = vmatprep.subr.mxu0 0.0
  %3316 = vmatpush1.msra.mxu0 0.0
  %3317 = vmatprep.subr.mxu0 0.0
  %3318 = vmatpush1.msra.mxu0 0.0
  %3319 = vmatprep.subr.mxu0 0.0
  %3320 = vmatpush1.msra.mxu0 0.0
  %3321 = vmatprep.subr.mxu0 0.0
  %3322 = vmatpush1.msra.mxu0 0.0
  %3323 = vmatprep.subr.mxu0 0.0
  %3324 = vmatpush1.msra.mxu0 0.0
  %3325 = vmatprep.subr.mxu0 0.0
  %3326 = vmatpush1.msra.mxu0 0.0
  %3327 = vmatprep.subr.mxu0 0.0
  %3328 = vmatpush1.msra.mxu0 0.0
  %3329 = vmatprep.subr.mxu0 0.0
  %3330 = vmatpush1.msra.mxu0 0.0
  %3331 = vmatprep.subr.mxu0 0.0
  %3332 = vmatpush1.msra.mxu0 0.0
  %3333 = vmatprep.subr.mxu0 0.0
  %3334 = vmatpush1.msra.mxu0 0.0
  %3335 = vmatprep.subr.mxu0 0.0
  %3336 = vmatpush1.msra.mxu0 0.0
  %3337 = vmatprep.subr.mxu0 0.0
  %3338 = vmatpush1.msra.mxu0 0.0
  %3339 = vmatprep.subr.mxu0 0.0
  %3340 = vmatpush1.msra.mxu0 0.0
  %3341 = vmatprep.subr.mxu0 0.0
  %3342 = vmatpush1.msra.mxu0 0.0
  %3343 = vmatprep.subr.mxu0 0.0
  %3344 = vmatpush1.msra.mxu0 0.0
  %3345 = vmatprep.subr.mxu0 0.0
  %3346 = vmatpush1.msra.mxu0 0.0
  %3347 = vmatprep.subr.mxu0 0.0
  %3348 = vmatpush1.msra.mxu0 0.0
  %3349 = vmatprep.subr.mxu0 0.0
  %3350 = vmatpush1.msra.mxu0 0.0
  %3351 = vmatprep.subr.mxu0 0.0
  %3352 = vmatpush1.msra.mxu0 0.0
  %3353 = vmatprep.mubr.f32.mxu0 0.0
  %3354 = vmatmul.mubr.f32.gmra.mrb[0].mxu0 %v3284
  %v3355 = vpop.f32.mrb[0].mxu0
  %v3356 = vadd.f32 0.0, %v3355
  %v3357 = vpop.f32.mrb[0].mxu0
  %3358 = vmatprep.mubr.f32.mxu0 0.0
  %3359 = vmatmul.mubr.f32.gmra.mrb[0].mxu0 %v3287
  %v3360 = vpop.f32.mrb[0].mxu0
  %v3361 = vadd.f32 0.0, %v3360
  %v3362 = vpop.f32.mrb[0].mxu0
  %3363 = vdwg.mxu0
  %v3364 = vadd.f32 %v3075, %v3356
  %v3365 = vadd.f32 %v3080, %v3361
  %3366 = vrot.lane.b32.xlu0 %v2319, 104
  %v3367 = vpop.permute.xlu0 %3366
  %3368 = vrot.lane.b32.xlu0 %v2320, 104
  %v3369 = vpop.permute.xlu0 %3368
  %3370 = vrot.lane.b32.xlu0 %v2515, 72
  %v3371 = vpop.permute.xlu0 %3370
  %3372 = vrot.lane.b32.xlu0 %v2516, 72
  %v3373 = vpop.permute.xlu0 %3372
  %v3374 = vsel %vm644, %v3367, 0
  %v3376 = vsel %vm644, %v3369, 0
  %v3378 = vsel %vm644, %v3371, 0
  %v3380 = vsel %vm644, %v3373, 0
  %3382 = vmatprep.subr.mxu0 0.0
  %3383 = vmatpush1.xpose.msra.mxu0 %v3378
  %3384 = vmatprep.subr.mxu0 0.0
  %3385 = vmatpush1.xpose.msra.mxu0 %v3380
  %3386 = vmatprep.subr.mxu0 0.0
  %3387 = vmatpush1.xpose.msra.mxu0 0.0
  %3388 = vmatprep.subr.mxu0 0.0
  %3389 = vmatpush1.xpose.msra.mxu0 0.0
  %3390 = vmatprep.subr.mxu0 0.0
  %3391 = vmatpush1.xpose.msra.mxu0 0.0
  %3392 = vmatprep.subr.mxu0 0.0
  %3393 = vmatpush1.xpose.msra.mxu0 0.0
  %3394 = vmatprep.subr.mxu0 0.0
  %3395 = vmatpush1.xpose.msra.mxu0 0.0
  %3396 = vmatprep.subr.mxu0 0.0
  %3397 = vmatpush1.xpose.msra.mxu0 0.0
  %3398 = vmatprep.subr.mxu0 0.0
  %3399 = vmatpush1.xpose.msra.mxu0 0.0
  %3400 = vmatprep.subr.mxu0 0.0
  %3401 = vmatpush1.xpose.msra.mxu0 0.0
  %3402 = vmatprep.subr.mxu0 0.0
  %3403 = vmatpush1.xpose.msra.mxu0 0.0
  %3404 = vmatprep.subr.mxu0 0.0
  %3405 = vmatpush1.xpose.msra.mxu0 0.0
  %3406 = vmatprep.subr.mxu0 0.0
  %3407 = vmatpush1.xpose.msra.mxu0 0.0
  %3408 = vmatprep.subr.mxu0 0.0
  %3409 = vmatpush1.xpose.msra.mxu0 0.0
  %3410 = vmatprep.subr.mxu0 0.0
  %3411 = vmatpush1.xpose.msra.mxu0 0.0
  %3412 = vmatprep.subr.mxu0 0.0
  %3413 = vmatpush1.xpose.msra.mxu0 0.0
  %3414 = vmatprep.subr.mxu0 0.0
  %3415 = vmatpush1.xpose.msra.mxu0 0.0
  %3416 = vmatprep.subr.mxu0 0.0
  %3417 = vmatpush1.xpose.msra.mxu0 0.0
  %3418 = vmatprep.subr.mxu0 0.0
  %3419 = vmatpush1.xpose.msra.mxu0 0.0
  %3420 = vmatprep.subr.mxu0 0.0
  %3421 = vmatpush1.xpose.msra.mxu0 0.0
  %3422 = vmatprep.subr.mxu0 0.0
  %3423 = vmatpush1.xpose.msra.mxu0 0.0
  %3424 = vmatprep.subr.mxu0 0.0
  %3425 = vmatpush1.xpose.msra.mxu0 0.0
  %3426 = vmatprep.subr.mxu0 0.0
  %3427 = vmatpush1.xpose.msra.mxu0 0.0
  %3428 = vmatprep.subr.mxu0 0.0
  %3429 = vmatpush1.xpose.msra.mxu0 0.0
  %3430 = vmatprep.subr.mxu0 0.0
  %3431 = vmatpush1.xpose.msra.mxu0 0.0
  %3432 = vmatprep.subr.mxu0 0.0
  %3433 = vmatpush1.xpose.msra.mxu0 0.0
  %3434 = vmatprep.subr.mxu0 0.0
  %3435 = vmatpush1.xpose.msra.mxu0 0.0
  %3436 = vmatprep.subr.mxu0 0.0
  %3437 = vmatpush1.xpose.msra.mxu0 0.0
  %3438 = vmatprep.subr.mxu0 0.0
  %3439 = vmatpush1.xpose.msra.mxu0 0.0
  %3440 = vmatprep.subr.mxu0 0.0
  %3441 = vmatpush1.xpose.msra.mxu0 0.0
  %3442 = vmatprep.subr.mxu0 0.0
  %3443 = vmatpush1.xpose.msra.mxu0 0.0
  %3444 = vmatprep.subr.mxu0 0.0
  %3445 = vmatpush1.xpose.msra.mxu0 0.0
  %3446 = vmatprep.mubr.f32.mxu0 0.0
  %3447 = vmatmul.mubr.f32.gmra.mrb[0].mxu0 %v3374
  %v3448 = vpop.f32.mrb[0].mxu0
  %v3449 = vadd.f32 %v128, %v3448
  %v3450 = vpop.f32.mrb[0].mxu0
  %3451 = vmatprep.mubr.f32.mxu0 0.0
  %3452 = vmatmul.mubr.f32.gmra.mrb[0].mxu0 %v3376
  %v3453 = vpop.f32.mrb[0].mxu0
  %v3454 = vadd.f32 %v129, %v3453
  %v3455 = vpop.f32.mrb[0].mxu0
  %3456 = vdwg.mxu0
  %v3457 = vsel %vm730, %v3449, -inf
  %3458 = vmax.xlane.f32.xlu0 %v3457
  %v3459 = vpop.xlane.xlu0 %3458
  %v3460 = vsel %vm730, %v3454, -inf
  %3461 = vmax.xlane.f32.xlu0 %v3460
  %v3462 = vpop.xlane.xlu0 %3461
  %v3463 = vsub.f32 %v3449, %v3459
  %v3464 = vsub.f32 %v3454, %v3462
  %v3465 = vmul.f32 %v3463, 1.442695
  %v3466 = vpow.pop %v3465
  %v3467 = vmul.f32 %v3464, 1.442695
  %v3468 = vpow.pop %v3467
  %v3469 = vsel %vm730, %v3466, 0.0
  %3470 = vadd.xlane.f32.xlu0 %v3469
  %v3471 = vpop.xlane.xlu0 %3470
  %v3472 = vsel %vm730, %v3468, 0.0
  %3473 = vadd.xlane.f32.xlu0 %v3472
  %v3474 = vpop.xlane.xlu0 %3473
  %v3475 = vrcp.pop %v3471
  %v3476 = vrcp.pop %v3474
  %v3477 = vmul.f32 %v3466, %v3475
  %v3478 = vmul.f32 %v3468, %v3476
  %3479 = vrot.lane.b32.xlu0 %v2137, 40
  %v3480 = vpop.permute.xlu0 %3479
  %3481 = vrot.lane.b32.xlu0 %v2142, 40
  %v3482 = vpop.permute.xlu0 %3481
  %v3486 = vsel %vm730, %v3477, 0
  %v3489 = vsel %vm730, %v3478, 0
  %3491 = vmatprep.subr.mxu0 0.0
  %3492 = vmatpush1.msra.mxu0 %v3480
  %3493 = vmatprep.subr.mxu0 0.0
  %3494 = vmatpush1.msra.mxu0 %v3482
  %3495 = vmatprep.subr.mxu0 0.0
  %3496 = vmatpush1.msra.mxu0 0.0
  %3497 = vmatprep.subr.mxu0 0.0
  %3498 = vmatpush1.msra.mxu0 0.0
  %3499 = vmatprep.subr.mxu0 0.0
  %3500 = vmatpush1.msra.mxu0 0.0
  %3501 = vmatprep.subr.mxu0 0.0
  %3502 = vmatpush1.msra.mxu0 0.0
  %3503 = vmatprep.subr.mxu0 0.0
  %3504 = vmatpush1.msra.mxu0 0.0
  %3505 = vmatprep.subr.mxu0 0.0
  %3506 = vmatpush1.msra.mxu0 0.0
  %3507 = vmatprep.subr.mxu0 0.0
  %3508 = vmatpush1.msra.mxu0 0.0
  %3509 = vmatprep.subr.mxu0 0.0
  %3510 = vmatpush1.msra.mxu0 0.0
  %3511 = vmatprep.subr.mxu0 0.0
  %3512 = vmatpush1.msra.mxu0 0.0
  %3513 = vmatprep.subr.mxu0 0.0
  %3514 = vmatpush1.msra.mxu0 0.0
  %3515 = vmatprep.subr.mxu0 0.0
  %3516 = vmatpush1.msra.mxu0 0.0
  %3517 = vmatprep.subr.mxu0 0.0
  %3518 = vmatpush1.msra.mxu0 0.0
  %3519 = vmatprep.subr.mxu0 0.0
  %3520 = vmatpush1.msra.mxu0 0.0
  %3521 = vmatprep.subr.mxu0 0.0
  %3522 = vmatpush1.msra.mxu0 0.0
  %3523 = vmatprep.subr.mxu0 0.0
  %3524 = vmatpush1.msra.mxu0 0.0
  %3525 = vmatprep.subr.mxu0 0.0
  %3526 = vmatpush1.msra.mxu0 0.0
  %3527 = vmatprep.subr.mxu0 0.0
  %3528 = vmatpush1.msra.mxu0 0.0
  %3529 = vmatprep.subr.mxu0 0.0
  %3530 = vmatpush1.msra.mxu0 0.0
  %3531 = vmatprep.subr.mxu0 0.0
  %3532 = vmatpush1.msra.mxu0 0.0
  %3533 = vmatprep.subr.mxu0 0.0
  %3534 = vmatpush1.msra.mxu0 0.0
  %3535 = vmatprep.subr.mxu0 0.0
  %3536 = vmatpush1.msra.mxu0 0.0
  %3537 = vmatprep.subr.mxu0 0.0
  %3538 = vmatpush1.msra.mxu0 0.0
  %3539 = vmatprep.subr.mxu0 0.0
  %3540 = vmatpush1.msra.mxu0 0.0
  %3541 = vmatprep.subr.mxu0 0.0
  %3542 = vmatpush1.msra.mxu0 0.0
  %3543 = vmatprep.subr.mxu0 0.0
  %3544 = vmatpush1.msra.mxu0 0.0
  %3545 = vmatprep.subr.mxu0 0.0
  %3546 = vmatpush1.msra.mxu0 0.0
  %3547 = vmatprep.subr.mxu0 0.0
  %3548 = vmatpush1.msra.mxu0 0.0
  %3549 = vmatprep.subr.mxu0 0.0
  %3550 = vmatpush1.msra.mxu0 0.0
  %3551 = vmatprep.subr.mxu0 0.0
  %3552 = vmatpush1.msra.mxu0 0.0
  %3553 = vmatprep.subr.mxu0 0.0
  %3554 = vmatpush1.msra.mxu0 0.0
  %3555 = vmatprep.mubr.f32.mxu0 0.0
  %3556 = vmatmul.mubr.f32.gmra.mrb[0].mxu0 %v3486
  %v3557 = vpop.f32.mrb[0].mxu0
  %v3558 = vadd.f32 0.0, %v3557
  %v3559 = vpop.f32.mrb[0].mxu0
  %3560 = vmatprep.mubr.f32.mxu0 0.0
  %3561 = vmatmul.mubr.f32.gmra.mrb[0].mxu0 %v3489
  %v3562 = vpop.f32.mrb[0].mxu0
  %v3563 = vadd.f32 0.0, %v3562
  %v3564 = vpop.f32.mrb[0].mxu0
  %3565 = vdwg.mxu0
  %v3567 = vsel %vm644, %v3558, 0
  %v3570 = vsel %vm644, %v3563, 0
  %3572 = vmatprep.subr.mxu0 0.0
  %3573 = vmatpush1.msra.mxu0 %v2520
  %3574 = vmatprep.subr.mxu0 0.0
  %3575 = vmatpush1.msra.mxu0 0.0
  %3576 = vmatprep.subr.mxu0 0.0
  %3577 = vmatpush1.msra.mxu0 0.0
  %3578 = vmatprep.subr.mxu0 0.0
  %3579 = vmatpush1.msra.mxu0 0.0
  %3580 = vmatprep.subr.mxu0 0.0
  %3581 = vmatpush1.msra.mxu0 0.0
  %3582 = vmatprep.subr.mxu0 0.0
  %3583 = vmatpush1.msra.mxu0 0.0
  %3584 = vmatprep.subr.mxu0 0.0
  %3585 = vmatpush1.msra.mxu0 0.0
  %3586 = vmatprep.subr.mxu0 0.0
  %3587 = vmatpush1.msra.mxu0 0.0
  %3588 = vmatprep.subr.mxu0 0.0
  %3589 = vmatpush1.msra.mxu0 0.0
  %3590 = vmatprep.subr.mxu0 0.0
  %3591 = vmatpush1.msra.mxu0 0.0
  %3592 = vmatprep.subr.mxu0 0.0
  %3593 = vmatpush1.msra.mxu0 0.0
  %3594 = vmatprep.subr.mxu0 0.0
  %3595 = vmatpush1.msra.mxu0 0.0
  %3596 = vmatprep.subr.mxu0 0.0
  %3597 = vmatpush1.msra.mxu0 0.0
  %3598 = vmatprep.subr.mxu0 0.0
  %3599 = vmatpush1.msra.mxu0 0.0
  %3600 = vmatprep.subr.mxu0 0.0
  %3601 = vmatpush1.msra.mxu0 0.0
  %3602 = vmatprep.subr.mxu0 0.0
  %3603 = vmatpush1.msra.mxu0 0.0
  %3604 = vmatprep.subr.mxu0 0.0
  %3605 = vmatpush1.msra.mxu0 0.0
  %3606 = vmatprep.subr.mxu0 0.0
  %3607 = vmatpush1.msra.mxu0 0.0
  %3608 = vmatprep.subr.mxu0 0.0
  %3609 = vmatpush1.msra.mxu0 0.0
  %3610 = vmatprep.subr.mxu0 0.0
  %3611 = vmatpush1.msra.mxu0 0.0
  %3612 = vmatprep.subr.mxu0 0.0
  %3613 = vmatpush1.msra.mxu0 0.0
  %3614 = vmatprep.subr.mxu0 0.0
  %3615 = vmatpush1.msra.mxu0 0.0
  %3616 = vmatprep.subr.mxu0 0.0
  %3617 = vmatpush1.msra.mxu0 0.0
  %3618 = vmatprep.subr.mxu0 0.0
  %3619 = vmatpush1.msra.mxu0 0.0
  %3620 = vmatprep.subr.mxu0 0.0
  %3621 = vmatpush1.msra.mxu0 0.0
  %3622 = vmatprep.subr.mxu0 0.0
  %3623 = vmatpush1.msra.mxu0 0.0
  %3624 = vmatprep.subr.mxu0 0.0
  %3625 = vmatpush1.msra.mxu0 0.0
  %3626 = vmatprep.subr.mxu0 0.0
  %3627 = vmatpush1.msra.mxu0 0.0
  %3628 = vmatprep.subr.mxu0 0.0
  %3629 = vmatpush1.msra.mxu0 0.0
  %3630 = vmatprep.subr.mxu0 0.0
  %3631 = vmatpush1.msra.mxu0 0.0
  %3632 = vmatprep.subr.mxu0 0.0
  %3633 = vmatpush1.msra.mxu0 0.0
  %3634 = vmatprep.subr.mxu0 0.0
  %3635 = vmatpush1.msra.mxu0 0.0
  %3636 = vmatprep.mubr.f32.mxu0 0.0
  %3637 = vmatmul.mubr.f32.gmra.mrb[0].mxu0 %v3567
  %v3638 = vpop.f32.mrb[0].mxu0
  %v3639 = vadd.f32 0.0, %v3638
  %v3640 = vpop.f32.mrb[0].mxu0
  %3641 = vmatprep.mubr.f32.mxu0 0.0
  %3642 = vmatmul.mubr.f32.gmra.mrb[0].mxu0 %v3570
  %v3643 = vpop.f32.mrb[0].mxu0
  %v3644 = vadd.f32 0.0, %v3643
  %v3645 = vpop.f32.mrb[0].mxu0
  %3646 = vdwg.mxu0
  %v3647 = vadd.f32 %v3364, %v3639
  %v3648 = vadd.f32 %v3365, %v3644
  %v3649 = vadd.f32 %v2013, %v3647
  %v3650 = vadd.f32 %v2014, %v3648
  %v3651 = vld [vmem:[%s1 + $0x2b8] sm:$0x1]
  %v3652 = vlaneseq
  %v3653 = vshrl.u32 %v3652, 7
  %v3654 = vsub.s32 0, %v3653
  %v3655 = vrot.slane %v3651, %v3654
  %v3656 = vadd.f32 %v3649, %v3655
  %v3657 = vadd.f32 %v3650, %v3655
  %v3658 = vld [vmem:[%s1 + $0x2c0] sm:$0x1]
  %v3659 = vld [vmem:[%s1 + $0x2c8] sm:$0x1]
  %v3660 = vsel %vm132, %v3656, 0.0
  %3661 = vadd.xlane.f32.xlu0 %v3660
  %v3662 = vpop.xlane.xlu0 %3661
  %v3663 = vsel %vm132, %v3657, 0.0
  %3664 = vadd.xlane.f32.xlu0 %v3663
  %v3665 = vpop.xlane.xlu0 %3664
  %v3666 = vmul.f32 %v3662, %v139
  %v3667 = vmul.f32 %v3665, %v139
  %v3668 = vsub.f32 %v3656, %v3666
  %v3669 = vsub.f32 %v3657, %v3667
  %v3670 = vmul.f32 %v3668, %v3668
  %v3671 = vmul.f32 %v3669, %v3669
  %v3672 = vsel %vm132, %v3670, 0.0
  %3673 = vadd.xlane.f32.xlu0 %v3672
  %v3674 = vpop.xlane.xlu0 %3673
  %v3675 = vsel %vm132, %v3671, 0.0
  %3676 = vadd.xlane.f32.xlu0 %v3675
  %v3677 = vpop.xlane.xlu0 %3676
  %v3678 = vmul.f32 %v3674, %v139
  %v3679 = vmul.f32 %v3677, %v139
  %v3680 = vadd.f32 %v3678, 1e-06
  %v3681 = vadd.f32 %v3679, 1e-06
  %v3682 = vrsqrt.pop %v3680
  %v3683 = vrsqrt.pop %v3681
  %v3684 = vmul.f32 %v3668, %v3682
  %v3685 = vmul.f32 %v3669, %v3683
  %v3686 = vlaneseq
  %v3687 = vshrl.u32 %v3686, 7
  %v3688 = vsub.s32 0, %v3687
  %v3689 = vrot.slane %v3658, %v3688
  %v3690 = vmul.f32 %v3684, %v3689
  %v3691 = vmul.f32 %v3685, %v3689
  %v3692 = vlaneseq
  %v3693 = vshrl.u32 %v3692, 7
  %v3694 = vsub.s32 0, %v3693
  %v3695 = vrot.slane %v3659, %v3694
  %v3696 = vadd.f32 %v3690, %v3695
  %v3697 = vadd.f32 %v3691, %v3695
  %v3698 = vld [vmem:[%s1 + $0x2d0] sm:$0xff]
  %v3699 = vld [vmem:[%s1 + $0x2d8] sm:$0xff]
  %v3700 = vld [vmem:[%s1 + $0x2e0] sm:$0xff]
  %v3701 = vld [vmem:[%s1 + $0x2e8] sm:$0xff]
  %v3702 = vld [vmem:[%s1 + $0x2f0] sm:$0x1]
  %v3703 = vlaneseq
  %v3704 = vshrl.u32 %v3703, 7
  %v3705 = vsub.s32 0, %v3704
  %v3706 = vrot.slane %v3702, %v3705
  %v3708 = vsel %vm132, %v3696, 0
  %v3711 = vsel %vm132, %v3697, 0
  %3713 = vmatprep.subr.mxu0 0.0
  %3714 = vmatpush1.msra.mxu0 %v3698
  %3715 = vmatprep.subr.mxu0 0.0
  %3716 = vmatpush1.msra.mxu0 %v3699
  %3717 = vmatprep.subr.mxu0 0.0
  %3718 = vmatpush1.msra.mxu0 %v3700
  %3719 = vmatprep.subr.mxu0 0.0
  %3720 = vmatpush1.msra.mxu0 %v3701
  %3721 = vmatprep.subr.mxu0 0.0
  %3722 = vmatpush1.msra.mxu0 0.0
  %3723 = vmatprep.subr.mxu0 0.0
  %3724 = vmatpush1.msra.mxu0 0.0
  %3725 = vmatprep.subr.mxu0 0.0
  %3726 = vmatpush1.msra.mxu0 0.0
  %3727 = vmatprep.subr.mxu0 0.0
  %3728 = vmatpush1.msra.mxu0 0.0
  %3729 = vmatprep.subr.mxu0 0.0
  %3730 = vmatpush1.msra.mxu0 0.0
  %3731 = vmatprep.subr.mxu0 0.0
  %3732 = vmatpush1.msra.mxu0 0.0
  %3733 = vmatprep.subr.mxu0 0.0
  %3734 = vmatpush1.msra.mxu0 0.0
  %3735 = vmatprep.subr.mxu0 0.0
  %3736 = vmatpush1.msra.mxu0 0.0
  %3737 = vmatprep.subr.mxu0 0.0
  %3738 = vmatpush1.msra.mxu0 0.0
  %3739 = vmatprep.subr.mxu0 0.0
  %3740 = vmatpush1.msra.mxu0 0.0
  %3741 = vmatprep.subr.mxu0 0.0
  %3742 = vmatpush1.msra.mxu0 0.0
  %3743 = vmatprep.subr.mxu0 0.0
  %3744 = vmatpush1.msra.mxu0 0.0
  %3745 = vmatprep.subr.mxu0 0.0
  %3746 = vmatpush1.msra.mxu0 0.0
  %3747 = vmatprep.subr.mxu0 0.0
  %3748 = vmatpush1.msra.mxu0 0.0
  %3749 = vmatprep.subr.mxu0 0.0
  %3750 = vmatpush1.msra.mxu0 0.0
  %3751 = vmatprep.subr.mxu0 0.0
  %3752 = vmatpush1.msra.mxu0 0.0
  %3753 = vmatprep.subr.mxu0 0.0
  %3754 = vmatpush1.msra.mxu0 0.0
  %3755 = vmatprep.subr.mxu0 0.0
  %3756 = vmatpush1.msra.mxu0 0.0
  %3757 = vmatprep.subr.mxu0 0.0
  %3758 = vmatpush1.msra.mxu0 0.0
  %3759 = vmatprep.subr.mxu0 0.0
  %3760 = vmatpush1.msra.mxu0 0.0
  %3761 = vmatprep.subr.mxu0 0.0
  %3762 = vmatpush1.msra.mxu0 0.0
  %3763 = vmatprep.subr.mxu0 0.0
  %3764 = vmatpush1.msra.mxu0 0.0
  %3765 = vmatprep.subr.mxu0 0.0
  %3766 = vmatpush1.msra.mxu0 0.0
  %3767 = vmatprep.subr.mxu0 0.0
  %3768 = vmatpush1.msra.mxu0 0.0
  %3769 = vmatprep.subr.mxu0 0.0
  %3770 = vmatpush1.msra.mxu0 0.0
  %3771 = vmatprep.subr.mxu0 0.0
  %3772 = vmatpush1.msra.mxu0 0.0
  %3773 = vmatprep.subr.mxu0 0.0
  %3774 = vmatpush1.msra.mxu0 0.0
  %3775 = vmatprep.subr.mxu0 0.0
  %3776 = vmatpush1.msra.mxu0 0.0
  %3777 = vmatprep.mubr.f32.mxu0 0.0
  %3778 = vmatmul.mubr.f32.gmra.mrb[0].mxu0 %v3708
  %v3779 = vpop.f32.mrb[0].mxu0
  %v3780 = vadd.f32 %v3706, %v3779
  %v3781 = vpop.f32.mrb[0].mxu0
  %3782 = vmatprep.mubr.f32.mxu0 0.0
  %3783 = vmatmul.mubr.f32.gmra.mrb[0].mxu0 %v3711
  %v3784 = vpop.f32.mrb[0].mxu0
  %v3785 = vadd.f32 %v3706, %v3784
  %v3786 = vpop.f32.mrb[0].mxu0
  %3787 = vdwg.mxu0
  %v3788 = vmul.f32 %v3780, 0.5
  %v3789 = vmul.f32 %v3785, 0.5
  %v3790 = vmul.f32 %v3780, 0.70710677
  %v3791 = vmul.f32 %v3785, 0.70710677
  %v3792 = verf.f32.pop %v3790
  %v3793 = verf.f32.pop %v3791
  %v3794 = vadd.f32 %v3792, 1.0
  %v3795 = vadd.f32 %v3793, 1.0
  %v3796 = vmul.f32 %v3788, %v3794
  %v3797 = vmul.f32 %v3789, %v3795
  %v3798 = vld [vmem:[%s1 + $0x2f8] sm:$0xff]
  %v3799 = vld [vmem:[%s1 + $0x300] sm:$0xff]
  %v3800 = vld [vmem:[%s1 + $0x308] sm:$0xff]
  %v3801 = vld [vmem:[%s1 + $0x310] sm:$0xff]
  %v3802 = vld [vmem:[%s1 + $0x318] sm:$0xff]
  %v3803 = vld [vmem:[%s1 + $0x320] sm:$0xff]
  %v3804 = vld [vmem:[%s1 + $0x328] sm:$0xff]
  %v3805 = vld [vmem:[%s1 + $0x330] sm:$0xff]
  %v3806 = vld [vmem:[%s1 + $0x338] sm:$0xff]
  %v3807 = vld [vmem:[%s1 + $0x340] sm:$0xff]
  %v3808 = vld [vmem:[%s1 + $0x348] sm:$0xff]
  %v3809 = vld [vmem:[%s1 + $0x350] sm:$0xff]
  %v3810 = vld [vmem:[%s1 + $0x358] sm:$0xff]
  %v3811 = vld [vmem:[%s1 + $0x360] sm:$0xff]
  %v3812 = vld [vmem:[%s1 + $0x368] sm:$0xff]
  %v3813 = vld [vmem:[%s1 + $0x370] sm:$0xff]
  %v3814 = vld [vmem:[%s1 + $0x378] sm:$0x1]
  %v3815 = vlaneseq
  %v3816 = vshrl.u32 %v3815, 7
  %v3817 = vsub.s32 0, %v3816
  %v3818 = vrot.slane %v3814, %v3817
  %3819 = vmatprep.subr.mxu0 0.0
  %3820 = vmatpush1.msra.mxu0 %v3798
  %3821 = vmatprep.subr.mxu0 0.0
  %3822 = vmatpush1.msra.mxu0 %v3799
  %3823 = vmatprep.subr.mxu0 0.0
  %3824 = vmatpush1.msra.mxu0 %v3800
  %3825 = vmatprep.subr.mxu0 0.0
  %3826 = vmatpush1.msra.mxu0 %v3801
  %3827 = vmatprep.subr.mxu0 0.0
  %3828 = vmatpush1.msra.mxu0 %v3802
  %3829 = vmatprep.subr.mxu0 0.0
  %3830 = vmatpush1.msra.mxu0 %v3803
  %3831 = vmatprep.subr.mxu0 0.0
  %3832 = vmatpush1.msra.mxu0 %v3804
  %3833 = vmatprep.subr.mxu0 0.0
  %3834 = vmatpush1.msra.mxu0 %v3805
  %3835 = vmatprep.subr.mxu0 0.0
  %3836 = vmatpush1.msra.mxu0 %v3806
  %3837 = vmatprep.subr.mxu0 0.0
  %3838 = vmatpush1.msra.mxu0 %v3807
  %3839 = vmatprep.subr.mxu0 0.0
  %3840 = vmatpush1.msra.mxu0 %v3808
  %3841 = vmatprep.subr.mxu0 0.0
  %3842 = vmatpush1.msra.mxu0 %v3809
  %3843 = vmatprep.subr.mxu0 0.0
  %3844 = vmatpush1.msra.mxu0 %v3810
  %3845 = vmatprep.subr.mxu0 0.0
  %3846 = vmatpush1.msra.mxu0 %v3811
  %3847 = vmatprep.subr.mxu0 0.0
  %3848 = vmatpush1.msra.mxu0 %v3812
  %3849 = vmatprep.subr.mxu0 0.0
  %3850 = vmatpush1.msra.mxu0 %v3813
  %3851 = vmatprep.subr.mxu0 0.0
  %3852 = vmatpush1.msra.mxu0 0.0
  %3853 = vmatprep.subr.mxu0 0.0
  %3854 = vmatpush1.msra.mxu0 0.0
  %3855 = vmatprep.subr.mxu0 0.0
  %3856 = vmatpush1.msra.mxu0 0.0
  %3857 = vmatprep.subr.mxu0 0.0
  %3858 = vmatpush1.msra.mxu0 0.0
  %3859 = vmatprep.subr.mxu0 0.0
  %3860 = vmatpush1.msra.mxu0 0.0
  %3861 = vmatprep.subr.mxu0 0.0
  %3862 = vmatpush1.msra.mxu0 0.0
  %3863 = vmatprep.subr.mxu0 0.0
  %3864 = vmatpush1.msra.mxu0 0.0
  %3865 = vmatprep.subr.mxu0 0.0
  %3866 = vmatpush1.msra.mxu0 0.0
  %3867 = vmatprep.subr.mxu0 0.0
  %3868 = vmatpush1.msra.mxu0 0.0
  %3869 = vmatprep.subr.mxu0 0.0
  %3870 = vmatpush1.msra.mxu0 0.0
  %3871 = vmatprep.subr.mxu0 0.0
  %3872 = vmatpush1.msra.mxu0 0.0
  %3873 = vmatprep.subr.mxu0 0.0
  %3874 = vmatpush1.msra.mxu0 0.0
  %3875 = vmatprep.subr.mxu0 0.0
  %3876 = vmatpush1.msra.mxu0 0.0
  %3877 = vmatprep.subr.mxu0 0.0
  %3878 = vmatpush1.msra.mxu0 0.0
  %3879 = vmatprep.subr.mxu0 0.0
  %3880 = vmatpush1.msra.mxu0 0.0
  %3881 = vmatprep.subr.mxu0 0.0
  %3882 = vmatpush1.msra.mxu0 0.0
  %3883 = vmatprep.mubr.f32.mxu0 0.0
  %3884 = vmatmul.mubr.f32.gmra.mrb[0].mxu0 %v3796
  %v3885 = vpop.f32.mrb[0].mxu0
  %v3886 = vadd.f32 %v3818, %v3885
  %v3887 = vpop.f32.mrb[0].mxu0
  %3888 = vmatprep.mubr.f32.mxu0 0.0
  %3889 = vmatmul.mubr.f32.gmra.mrb[0].mxu0 %v3797
  %v3890 = vpop.f32.mrb[0].mxu0
  %v3891 = vadd.f32 %v3818, %v3890
  %v3892 = vpop.f32.mrb[0].mxu0
  %3893 = vdwg.mxu0
  %v3894 = vadd.f32 %v3656, %v3886
  %v3895 = vadd.f32 %v3657, %v3891
  %v3896 = vld [vmem:[%s1 + $0x380] sm:$0x1]
  %v3897 = vld [vmem:[%s1 + $0x388] sm:$0x1]
  %v3898 = vsel %vm132, %v3894, 0.0
  %3899 = vadd.xlane.f32.xlu0 %v3898
  %v3900 = vpop.xlane.xlu0 %3899
  %v3901 = vsel %vm132, %v3895, 0.0
  %3902 = vadd.xlane.f32.xlu0 %v3901
  %v3903 = vpop.xlane.xlu0 %3902
  %v3904 = vmul.f32 %v3900, %v139
  %v3905 = vmul.f32 %v3903, %v139
  %v3906 = vsub.f32 %v3894, %v3904
  %v3907 = vsub.f32 %v3895, %v3905
  %v3908 = vmul.f32 %v3906, %v3906
  %v3909 = vmul.f32 %v3907, %v3907
  %v3910 = vsel %vm132, %v3908, 0.0
  %3911 = vadd.xlane.f32.xlu0 %v3910
  %v3912 = vpop.xlane.xlu0 %3911
  %v3913 = vsel %vm132, %v3909, 0.0
  %3914 = vadd.xlane.f32.xlu0 %v3913
  %v3915 = vpop.xlane.xlu0 %3914
  %v3916 = vmul.f32 %v3912, %v139
  %v3917 = vmul.f32 %v3915, %v139
  %v3918 = vadd.f32 %v3916, 1e-06
  %v3919 = vadd.f32 %v3917, 1e-06
  %v3920 = vrsqrt.pop %v3918
  %v3921 = vrsqrt.pop %v3919
  %v3922 = vmul.f32 %v3906, %v3920
  %v3923 = vmul.f32 %v3907, %v3921
  %v3924 = vlaneseq
  %v3925 = vshrl.u32 %v3924, 7
  %v3926 = vsub.s32 0, %v3925
  %v3927 = vrot.slane %v3896, %v3926
  %v3928 = vmul.f32 %v3922, %v3927
  %v3929 = vmul.f32 %v3923, %v3927
  %v3930 = vlaneseq
  %v3931 = vshrl.u32 %v3930, 7
  %v3932 = vsub.s32 0, %v3931
  %v3933 = vrot.slane %v3897, %v3932
  %v3934 = vadd.f32 %v3928, %v3933
  %v3935 = vadd.f32 %v3929, %v3933
  %v3936 = vld [vmem:[%s1 + $0x390] sm:$0xff]
  %v3937 = vld [vmem:[%s1 + $0x398] sm:$0xff]
  %v3938 = vld [vmem:[%s1 + $0x3a0] sm:$0xff]
  %v3939 = vld [vmem:[%s1 + $0x3a8] sm:$0xff]
  %v3940 = vld [vmem:[%s1 + $0x3b0] sm:$0x1]
  %v3941 = vlaneseq
  %v3942 = vshrl.u32 %v3941, 7
  %v3943 = vsub.s32 0, %v3942
  %v3944 = vrot.slane %v3940, %v3943
  %v3946 = vsel %vm132, %v3934, 0
  %v3949 = vsel %vm132, %v3935, 0
  %3951 = vmatprep.subr.mxu0 0.0
  %3952 = vmatpush1.msra.mxu0 %v3936
  %3953 = vmatprep.subr.mxu0 0.0
  %3954 = vmatpush1.msra.mxu0 %v3937
  %3955 = vmatprep.subr.mxu0 0.0
  %3956 = vmatpush1.msra.mxu0 %v3938
  %3957 = vmatprep.subr.mxu0 0.0
  %3958 = vmatpush1.msra.mxu0 %v3939
  %3959 = vmatprep.subr.mxu0 0.0
  %3960 = vmatpush1.msra.mxu0 0.0
  %3961 = vmatprep.subr.mxu0 0.0
  %3962 = vmatpush1.msra.mxu0 0.0
  %3963 = vmatprep.subr.mxu0 0.0
  %3964 = vmatpush1.msra.mxu0 0.0
  %3965 = vmatprep.subr.mxu0 0.0
  %3966 = vmatpush1.msra.mxu0 0.0
  %3967 = vmatprep.subr.mxu0 0.0
  %3968 = vmatpush1.msra.mxu0 0.0
  %3969 = vmatprep.subr.mxu0 0.0
  %3970 = vmatpush1.msra.mxu0 0.0
  %3971 = vmatprep.subr.mxu0 0.0
  %3972 = vmatpush1.msra.mxu0 0.0
  %3973 = vmatprep.subr.mxu0 0.0
  %3974 = vmatpush1.msra.mxu0 0.0
  %3975 = vmatprep.subr.mxu0 0.0
  %3976 = vmatpush1.msra.mxu0 0.0
  %3977 = vmatprep.subr.mxu0 0.0
  %3978 = vmatpush1.msra.mxu0 0.0
  %3979 = vmatprep.subr.mxu0 0.0
  %3980 = vmatpush1.msra.mxu0 0.0
  %3981 = vmatprep.subr.mxu0 0.0
  %3982 = vmatpush1.msra.mxu0 0.0
  %3983 = vmatprep.subr.mxu0 0.0
  %3984 = vmatpush1.msra.mxu0 0.0
  %3985 = vmatprep.subr.mxu0 0.0
  %3986 = vmatpush1.msra.mxu0 0.0
  %3987 = vmatprep.subr.mxu0 0.0
  %3988 = vmatpush1.msra.mxu0 0.0
  %3989 = vmatprep.subr.mxu0 0.0
  %3990 = vmatpush1.msra.mxu0 0.0
  %3991 = vmatprep.subr.mxu0 0.0
  %3992 = vmatpush1.msra.mxu0 0.0
  %3993 = vmatprep.subr.mxu0 0.0
  %3994 = vmatpush1.msra.mxu0 0.0
  %3995 = vmatprep.subr.mxu0 0.0
  %3996 = vmatpush1.msra.mxu0 0.0
  %3997 = vmatprep.subr.mxu0 0.0
  %3998 = vmatpush1.msra.mxu0 0.0
  %3999 = vmatprep.subr.mxu0 0.0
  %4000 = vmatpush1.msra.mxu0 0.0
  %4001 = vmatprep.subr.mxu0 0.0
  %4002 = vmatpush1.msra.mxu0 0.0
  %4003 = vmatprep.subr.mxu0 0.0
  %4004 = vmatpush1.msra.mxu0 0.0
  %4005 = vmatprep.subr.mxu0 0.0
  %4006 = vmatpush1.msra.mxu0 0.0
  %4007 = vmatprep.subr.mxu0 0.0
  %4008 = vmatpush1.msra.mxu0 0.0
  %4009 = vmatprep.subr.mxu0 0.0
  %4010 = vmatpush1.msra.mxu0 0.0
  %4011 = vmatprep.subr.mxu0 0.0
  %4012 = vmatpush1.msra.mxu0 0.0
  %4013 = vmatprep.subr.mxu0 0.0
  %4014 = vmatpush1.msra.mxu0 0.0
  %4015 = vmatprep.mubr.f32.mxu0 0.0
  %4016 = vmatmul.mubr.f32.gmra.mrb[0].mxu0 %v3946
  %v4017 = vpop.f32.mrb[0].mxu0
  %v4018 = vadd.f32 %v3944, %v4017
  %v4019 = vpop.f32.mrb[0].mxu0
  %4020 = vmatprep.mubr.f32.mxu0 0.0
  %4021 = vmatmul.mubr.f32.gmra.mrb[0].mxu0 %v3949
  %v4022 = vpop.f32.mrb[0].mxu0
  %v4023 = vadd.f32 %v3944, %v4022
  %v4024 = vpop.f32.mrb[0].mxu0
  %4025 = vdwg.mxu0
  %4026 = vst [vmem:[%s2] sm:$0xff] %v4018
  %4027 = vst [vmem:[%s2 + $0x8] sm:$0xff] %v4023
  // Predicated region
  $region10: #{fwd.1} parent=0 // pred_check
    _
  $region11: #{fwd.1} parent=0 // pred_check_branch
    %4029 = sbr.rel (0) target = $region13
  $region12: #{fwd.1} parent=0 // pred_region
    _
  $region13: #{fwd.1} parent=0 // pred_fallthru
    _
  // Predicated region
  $region14: #{fwd.1} parent=0 // pred_check
    _
  $region15: #{fwd.1} parent=0 // pred_check_branch
    %4031 = sbr.rel (0) target = $region17
  $region16: #{fwd.1} parent=0 // pred_region
    _
  $region17: #{fwd.1} parent=0 // pred_fallthru
    _

</llo_original>
